<compile_context>
chip_gen: v5e
topology: v5e:2x2
jax: 0.10.0
libtpu: 0.0.40
codegen_flags: <defaults>
</compile_context>

<pallas_src>
import functools

import jax
import jax.numpy as jnp
from jax.experimental import pallas as pl
from jax.experimental.pallas import tpu as pltpu


# ----------------------------------------------------------------------------
# Fused kernel
# ----------------------------------------------------------------------------

def _fused_kernel(*refs, expand, stride, bblk, h, w, ho, wo, pad_l, use_res):
    """expand(1x1)+BN+ReLU6 -> dw3x3+BN+ReLU6 -> project(1x1)+BN (+residual).

    Ref layout (channel-first I/O, B_blk images per grid step):
      x_ref:    (B_blk, Cin, H*W)     input pixels (NCHW flattened)
      w1_ref:   (Cin, Hd)             expand weight, BN scale folded   [if expand]
      b1_ref:   (1, Hd)               expand bias (f32)                [if expand]
      wdw_ref:  (3, 3, Hd)            depthwise weight, BN folded (f32)
      bdw_ref:  (1, Hd)               depthwise bias (f32)
      w2t_ref:  (Cout, Hd)            projection weight, PRE-TRANSPOSED
      b2_ref:   (Cout, 1)             projection bias (f32)
      o_ref:    (B_blk, Cout, Ho*Wo)  output, lane-dense on pixels
      epad_ref: (B_blk, H+2, Wp, Hd)  f32 scratch; interior lives at
                                      [1:H+1, pad_l:pad_l+W] (sublane aligned)
    """
    if expand:
        (x_ref, w1_ref, b1_ref, wdw_ref, bdw_ref, w2t_ref, b2_ref,
         o_ref, epad_ref) = refs
    else:
        x_ref, wdw_ref, bdw_ref, w2t_ref, b2_ref, o_ref, epad_ref = refs

    hd = epad_ref.shape[-1]
    wp = epad_ref.shape[-2]

    # Hoist every weight/bias load (and the 9 per-tap weight slices) out of the
    # per-image loop -- JAX does not CSE repeated loads/broadcasts.
    if expand:
        w1 = w1_ref[...]                                   # (Cin, Hd)
        b1 = b1_ref[...]                                   # (1, Hd)   f32
    wdw = wdw_ref[...]                                     # (3, 3, Hd) f32
    wtaps = [[wdw[dh, dw_, :] for dw_ in range(3)] for dh in range(3)]
    bdw = bdw_ref[...]                                     # (1, Hd)   f32
    w2t = w2t_ref[...]                                     # (Cout, Hd)
    b2 = b2_ref[...]                                       # (Cout, 1) f32

    zrow = jnp.zeros((1, wp, hd), jnp.float32)
    zcol = jnp.zeros((h + 2, 1, hd), jnp.float32)

    for b in range(bblk):                                  # static unroll
        x_b = x_ref[b]                                     # (Cin, H*W)

        # ---- 1x1 expand + BN bias + ReLU6 (MXU; Cin contracted directly, the
        #      LHS transpose is absorbed on the MXU path -- no explicit x.T) --
        if expand:
            e = jax.lax.dot_general(
                x_b, w1, (((0,), (0,)), ((), ())),
                preferred_element_type=jnp.float32)        # (H*W, Hd)
            e = jnp.clip(e + b1, 0.0, 6.0)
        else:
            e = x_b.T.astype(jnp.float32)                  # Hd == Cin (small)

        # ---- refresh the zero halo border, then store the aligned interior --
        # Only the halo cells the taps can actually read are zeroed (rows 0 and
        # H+1, plus the two halo columns); the interior is fully overwritten
        # every step and columns < pad_l-1 / > pad_l+W are never read.  Doing
        # this per step (instead of once at program_id==0) keeps the batch axis
        # safely "parallel" on multi-TensorCore parts.
        epad_ref[b, 0:1, :, :] = zrow
        epad_ref[b, h + 1:h + 2, :, :] = zrow
        epad_ref[b, :, pad_l - 1:pad_l, :] = zcol
        epad_ref[b, :, pad_l + w:pad_l + w + 1, :] = zcol
        epad_ref[b, 1:h + 1, pad_l:pad_l + w, :] = e.reshape(h, w, hd)
        # TODO(synk): e.reshape retiles when W is not a multiple of 8 (real
        # 14x14 / 28x28 stages); a W-padded expand output would avoid that.

        # ---- depthwise 3x3 + BN bias + ReLU6 (VPU, f32 accumulate) ----------
        # Taps are static windows read directly from the scratch ref.  The
        # depthwise is evaluated densely and subsampled once for stride 2 (a
        # single strided slice instead of nine sublane-strided reads).
        acc = jnp.zeros((h, w, hd), jnp.float32)
        for dh in range(3):
            for dw_ in range(3):
                c0 = pad_l - 1 + dw_
                win = epad_ref[b, dh:dh + h, c0:c0 + w, :]
                acc = acc + win * wtaps[dh][dw_]
        if stride == 2:
            acc = acc[::2, ::2, :]
        y = jnp.clip(acc + bdw, 0.0, 6.0)                  # (Ho, Wo, Hd)

        # ---- 1x1 projection + BN bias (+ residual), channel-first output ----
        # w2t is (Cout, Hd) so the MXU emits (Cout, Ho*Wo) directly -- no XLU
        # transpose of the result, and the store stays lane-dense on pixels.
        yk = y.reshape(ho * wo, hd).astype(w2t.dtype)
        out_b = jax.lax.dot_general(
            w2t, yk, (((1,), (1,)), ((), ())),
            preferred_element_type=jnp.float32)            # (Cout, Ho*Wo)
        out_b = out_b + b2
        if use_res:
            out_b = out_b + x_b.astype(jnp.float32)
        o_ref[b] = out_b.astype(o_ref.dtype)


# ----------------------------------------------------------------------------
# Helpers
# ----------------------------------------------------------------------------

def _make_bn(key, c, eps=1e-5):
    k1, k2, k3, k4 = jax.random.split(key, 4)
    gamma = 1.0 + 0.1 * jax.random.normal(k1, (c,), jnp.float32)
    beta = 0.1 * jax.random.normal(k2, (c,), jnp.float32)
    mean = 0.1 * jax.random.normal(k3, (c,), jnp.float32)
    var = jnp.abs(jax.random.normal(k4, (c,), jnp.float32)) + 0.5
    scale = gamma / jnp.sqrt(var + eps)
    bias = beta - mean * scale
    return scale, bias


def _vmem_limit_bytes():
    """Scoped VMEM limit derived from the actual part, with headroom."""
    try:
        cap = int(pltpu.get_tpu_info().vmem_capacity_bytes)
    except Exception:
        cap = 64 * 1024 * 1024          # conservative (v7x-sized) fallback
    return (cap * 3) // 4


def _pick_batch_block(n, c, oup, h, w, wp, hd, ho, wo, itemsize, vmem_limit,
                      max_blk=8):
    """Largest divisor of N (<= max_blk) whose per-step VMEM footprint fits."""
    per_img = 4 * ((h + 2) * wp * hd        # padded f32 scratch
                   + 2 * h * w * hd)        # expanded act + depthwise acc
    per_img += 2 * itemsize * (c * h * w + oup * ho * wo)   # dbl-buffered I/O
    budget = max(vmem_limit // 2, 1)        # headroom for weights / temporaries
    best = 1
    for b in range(1, min(n, max_blk) + 1):
        if n % b == 0 and b * per_img <= budget:
            best = b
    # TODO(synk): on 2-TensorCore parts prefer a divisor that leaves >= 2 grid
    # steps (or add a second parallel axis) so both cores stay busy.
    return best


# ----------------------------------------------------------------------------
# Module (deterministic synthetic parameters, BN scale folded into weights)
# ----------------------------------------------------------------------------

class InvertedResidualPallas:
    def __init__(self, key, inp, oup, stride, expand_ratio,
                 dtype=jnp.float32, eps=1e-5):
        assert stride in (1, 2)
        self.inp, self.oup, self.stride = inp, oup, stride
        self.dtype = dtype
        self.hidden = int(round(inp * expand_ratio))
        self.expand = expand_ratio != 1
        self.use_res_connect = (stride == 1) and (inp == oup)

        keys = jax.random.split(key, 6)
        if self.expand:
            w1 = 0.1 * jax.random.normal(keys[0], (inp, self.hidden), jnp.float32)
            s1, b1 = _make_bn(keys[1], self.hidden, eps)
            self.w1 = w1 * s1[None, :]            # fold BN scale into weight
            self.b1 = b1.reshape(1, self.hidden)
            self.w1_c = self.w1.astype(dtype)     # compute-dtype copy (MXU)
        wdw = 0.1 * jax.random.normal(keys[2], (3, 3, self.hidden), jnp.float32)
        sdw, bdw = _make_bn(keys[3], self.hidden, eps)
        self.wdw = wdw * sdw[None, None, :]       # f32 (depthwise stays on VPU)
        self.bdw = bdw.reshape(1, self.hidden)
        w2 = 0.1 * jax.random.normal(keys[4], (self.hidden, oup), jnp.float32)
        s2, b2 = _make_bn(keys[5], oup, eps)
        self.w2 = w2 * s2[None, :]                # (hidden, oup) f32, for ref
        self.b2 = b2.reshape(oup, 1)
        self.w2t_c = self.w2.T.astype(dtype)      # (oup, hidden) pre-transposed

    def __call__(self, x_nchw):
        n, c, h, w = x_nchw.shape
        assert c == self.inp
        ho = (h + 2 - 3) // self.stride + 1
        wo = (w + 2 - 3) // self.stride + 1
        hd, oup = self.hidden, self.oup

        pad_l = 8                                  # sublane-aligned interior
        wp = ((pad_l + w + 1 + 7) // 8) * 8        # scratch width (>= pad_l+w+1)

        vmem_limit = _vmem_limit_bytes()
        itemsize = jnp.dtype(self.dtype).itemsize
        bblk = _pick_batch_block(n, c, oup, h, w, wp, hd, ho, wo,
                                 itemsize, vmem_limit)

        # NCHW -> (N, Cin, H*W): metadata-only reshape (no transpose pass).
        x_flat = x_nchw.reshape(n, c, h * w).astype(self.dtype)

        args = [x_flat]
        in_specs = [pl.BlockSpec((bblk, c, h * w), lambda i: (i, 0, 0))]
        if self.expand:
            args += [self.w1_c, self.b1]
            in_specs += [pl.BlockSpec((c, hd), lambda i: (0, 0)),
                         pl.BlockSpec((1, hd), lambda i: (0, 0))]
        args += [self.wdw, self.bdw, self.w2t_c, self.b2]
        in_specs += [pl.BlockSpec((3, 3, hd), lambda i: (0, 0, 0)),
                     pl.BlockSpec((1, hd), lambda i: (0, 0)),
                     pl.BlockSpec((oup, hd), lambda i: (0, 0)),
                     pl.BlockSpec((oup, 1), lambda i: (0, 0))]

        kern = functools.partial(
            _fused_kernel, expand=self.expand, stride=self.stride, bblk=bblk,
            h=h, w=w, ho=ho, wo=wo, pad_l=pad_l, use_res=self.use_res_connect)

        out = pl.pallas_call(
            kern,
            out_shape=jax.ShapeDtypeStruct((n, oup, ho * wo), self.dtype),
            grid_spec=pltpu.PrefetchScalarGridSpec(
                num_scalar_prefetch=0,
                grid=(n // bblk,),
                in_specs=in_specs,
                out_specs=pl.BlockSpec((bblk, oup, ho * wo),
                                       lambda i: (i, 0, 0)),
                scratch_shapes=[pltpu.VMEM((bblk, h + 2, wp, hd), jnp.float32)]),
            compiler_params=pltpu.CompilerParams(
                dimension_semantics=("parallel",),
                vmem_limit_bytes=vmem_limit),
        )(*args)

        # (N, Cout, Ho*Wo) -> NCHW: metadata-only reshape.
        return out.reshape(n, oup, ho, wo)


# ----------------------------------------------------------------------------
# Pure-JAX reference (same folded parameters), for correctness check
# ----------------------------------------------------------------------------

def _ref_forward(mod, x_nchw):
    x = jnp.transpose(x_nchw, (0, 2, 3, 1)).astype(jnp.float32)   # NHWC
    dn = ("NHWC", "HWIO", "NHWC")
    prec = jax.lax.Precision.HIGHEST
    hh = x
    if mod.expand:
        hh = jax.lax.conv_general_dilated(
            hh, mod.w1.reshape(1, 1, mod.inp, mod.hidden), (1, 1), "VALID",
            dimension_numbers=dn, precision=prec)
        hh = jnp.clip(hh + mod.b1.reshape(-1), 0.0, 6.0)
    hh = jax.lax.conv_general_dilated(
        hh, mod.wdw.reshape(3, 3, 1, mod.hidden), (mod.stride, mod.stride),
        ((1, 1), (1, 1)), dimension_numbers=dn,
        feature_group_count=mod.hidden, precision=prec)
    hh = jnp.clip(hh + mod.bdw.reshape(-1), 0.0, 6.0)
    hh = jax.lax.conv_general_dilated(
        hh, mod.w2.reshape(1, 1, mod.hidden, mod.oup), (1, 1), "VALID",
        dimension_numbers=dn, precision=prec)
    hh = hh + mod.b2.reshape(-1)
    if mod.use_res_connect:
        hh = hh + x
    return jnp.transpose(hh, (0, 3, 1, 2))


# ----------------------------------------------------------------------------

if __name__ == "__main__":
    key = jax.random.PRNGKey(0)
    kx, k1, k2, k3 = jax.random.split(key, 4)
    x = jax.random.normal(kx, (2, 8, 16, 16), jnp.float32)   # NCHW

    # case 1: stride=1, inp==oup, expand_ratio=6 -> residual path
    blk1 = InvertedResidualPallas(k1, inp=8, oup=8, stride=1, expand_ratio=6)
    y1 = jax.block_until_ready(blk1(x))
    r1 = _ref_forward(blk1, x)
    assert y1.shape == (2, 8, 16, 16)
    assert jnp.allclose(y1, r1, atol=1e-4, rtol=1e-4), "stride=1 block mismatch"

    # case 2: stride=2, channel change -> no residual, strided depthwise
    blk2 = InvertedResidualPallas(k2, inp=8, oup=16, stride=2, expand_ratio=6)
    y2 = jax.block_until_ready(blk2(x))
    r2 = _ref_forward(blk2, x)
    assert y2.shape == (2, 16, 8, 8)
    assert jnp.allclose(y2, r2, atol=1e-4, rtol=1e-4), "stride=2 block mismatch"

    # case 3: expand_ratio=1 (no expand conv), residual path
    blk3 = InvertedResidualPallas(k3, inp=8, oup=8, stride=1, expand_ratio=1)
    y3 = jax.block_until_ready(blk3(x))
    r3 = _ref_forward(blk3, x)
    assert y3.shape == (2, 8, 16, 16)
    assert jnp.allclose(y3, r3, atol=1e-4, rtol=1e-4), "expand_ratio=1 mismatch"

    # case 4: bf16 activations / matmul weights (f32 accumulate).  Looser
    # tolerance: the residual path adds the bf16-quantized input and the
    # output itself is quantized to bf16 (inference-acceptable difference).
    blk4 = InvertedResidualPallas(k1, inp=8, oup=8, stride=1, expand_ratio=6,
                                  dtype=jnp.bfloat16)
    y4 = jax.block_until_ready(blk4(x))
    r4 = _ref_forward(blk4, x)
    assert y4.dtype == jnp.bfloat16
    assert jnp.allclose(y4.astype(jnp.float32), r4, atol=1e-1, rtol=1e-1), \
        "bf16 block mismatch"

    print("KERNEL_OK")
</pallas_src>

<mosaic_0001>
module attributes {stable_mosaic.version = 11 : i64} {
  func.func @_fused_kernel(%arg0: i32, %arg1: memref<2x8x256xf32, #tpu.memory_space<vmem>>, %arg2: memref<8x48xf32, #tpu.memory_space<vmem>>, %arg3: memref<1x48xf32, #tpu.memory_space<vmem>>, %arg4: memref<3x3x48xf32, #tpu.memory_space<vmem>>, %arg5: memref<1x48xf32, #tpu.memory_space<vmem>>, %arg6: memref<8x48xf32, #tpu.memory_space<vmem>>, %arg7: memref<8x1xf32, #tpu.memory_space<vmem>>, %arg8: memref<2x8x256xf32, #tpu.memory_space<vmem>>, %arg9: memref<2x18x32x48xf32, #tpu.memory_space<vmem>>) attributes {dimension_semantics = [#tpu.dimension_semantics<parallel>], iteration_bounds = array<i64: 1>, scalar_prefetch = 0 : i64, scratch_operands = 1 : i64, tpu.core_type = #tpu.core_type<tc>, window_params = [{transform_indices = @transform_0, window_bounds = array<i64: 2, 8, 256>}, {pipeline_mode = #tpu.pipeline_mode<synchronous>, transform_indices = @transform_1, window_bounds = array<i64: 8, 48>}, {pipeline_mode = #tpu.pipeline_mode<synchronous>, transform_indices = @transform_2, window_bounds = array<i64: 1, 48>}, {pipeline_mode = #tpu.pipeline_mode<synchronous>, transform_indices = @transform_3, window_bounds = array<i64: 3, 3, 48>}, {pipeline_mode = #tpu.pipeline_mode<synchronous>, transform_indices = @transform_4, window_bounds = array<i64: 1, 48>}, {pipeline_mode = #tpu.pipeline_mode<synchronous>, transform_indices = @transform_5, window_bounds = array<i64: 8, 48>}, {pipeline_mode = #tpu.pipeline_mode<synchronous>, transform_indices = @transform_6, window_bounds = array<i64: 8, 1>}, {transform_indices = @transform_7, window_bounds = array<i64: 2, 8, 256>}]} {
    %c0 = arith.constant 0 : index
    %c0_0 = arith.constant 0 : index
    %0 = vector.load %arg2[%c0, %c0_0] : memref<8x48xf32, #tpu.memory_space<vmem>>, vector<8x48xf32>
    %c0_1 = arith.constant 0 : index
    %c0_2 = arith.constant 0 : index
    %1 = vector.load %arg3[%c0_1, %c0_2] : memref<1x48xf32, #tpu.memory_space<vmem>>, vector<1x48xf32>
    %c0_3 = arith.constant 0 : index
    %c0_4 = arith.constant 0 : index
    %c0_5 = arith.constant 0 : index
    %2 = vector.load %arg4[%c0_3, %c0_4, %c0_5] : memref<3x3x48xf32, #tpu.memory_space<vmem>>, vector<3x3x48xf32>
    %3 = vector.extract_strided_slice %2 {offsets = [0, 0, 0], sizes = [1, 1, 48], strides = [1, 1, 1]} : vector<3x3x48xf32> to vector<1x1x48xf32>
    %4 = vector.shape_cast %3 : vector<1x1x48xf32> to vector<48xf32>
    %5 = vector.extract_strided_slice %2 {offsets = [0, 1, 0], sizes = [1, 1, 48], strides = [1, 1, 1]} : vector<3x3x48xf32> to vector<1x1x48xf32>
    %6 = vector.shape_cast %5 : vector<1x1x48xf32> to vector<48xf32>
    %7 = vector.extract_strided_slice %2 {offsets = [0, 2, 0], sizes = [1, 1, 48], strides = [1, 1, 1]} : vector<3x3x48xf32> to vector<1x1x48xf32>
    %8 = vector.shape_cast %7 : vector<1x1x48xf32> to vector<48xf32>
    %9 = vector.extract_strided_slice %2 {offsets = [1, 0, 0], sizes = [1, 1, 48], strides = [1, 1, 1]} : vector<3x3x48xf32> to vector<1x1x48xf32>
    %10 = vector.shape_cast %9 : vector<1x1x48xf32> to vector<48xf32>
    %11 = vector.extract_strided_slice %2 {offsets = [1, 1, 0], sizes = [1, 1, 48], strides = [1, 1, 1]} : vector<3x3x48xf32> to vector<1x1x48xf32>
    %12 = vector.shape_cast %11 : vector<1x1x48xf32> to vector<48xf32>
    %13 = vector.extract_strided_slice %2 {offsets = [1, 2, 0], sizes = [1, 1, 48], strides = [1, 1, 1]} : vector<3x3x48xf32> to vector<1x1x48xf32>
    %14 = vector.shape_cast %13 : vector<1x1x48xf32> to vector<48xf32>
    %15 = vector.extract_strided_slice %2 {offsets = [2, 0, 0], sizes = [1, 1, 48], strides = [1, 1, 1]} : vector<3x3x48xf32> to vector<1x1x48xf32>
    %16 = vector.shape_cast %15 : vector<1x1x48xf32> to vector<48xf32>
    %17 = vector.extract_strided_slice %2 {offsets = [2, 1, 0], sizes = [1, 1, 48], strides = [1, 1, 1]} : vector<3x3x48xf32> to vector<1x1x48xf32>
    %18 = vector.shape_cast %17 : vector<1x1x48xf32> to vector<48xf32>
    %19 = vector.extract_strided_slice %2 {offsets = [2, 2, 0], sizes = [1, 1, 48], strides = [1, 1, 1]} : vector<3x3x48xf32> to vector<1x1x48xf32>
    %20 = vector.shape_cast %19 : vector<1x1x48xf32> to vector<48xf32>
    %c0_6 = arith.constant 0 : index
    %c0_7 = arith.constant 0 : index
    %21 = vector.load %arg5[%c0_6, %c0_7] : memref<1x48xf32, #tpu.memory_space<vmem>>, vector<1x48xf32>
    %c0_8 = arith.constant 0 : index
    %c0_9 = arith.constant 0 : index
    %22 = vector.load %arg6[%c0_8, %c0_9] : memref<8x48xf32, #tpu.memory_space<vmem>>, vector<8x48xf32>
    %c0_10 = arith.constant 0 : index
    %c0_11 = arith.constant 0 : index
    %23 = vector.load %arg7[%c0_10, %c0_11] : memref<8x1xf32, #tpu.memory_space<vmem>>, vector<8x1xf32>
    %cst = arith.constant 0.000000e+00 : f32
    %24 = vector.broadcast %cst : f32 to vector<1x32x48xf32>
    %cst_12 = arith.constant 0.000000e+00 : f32
    %25 = vector.broadcast %cst_12 : f32 to vector<18x1x48xf32>
    %c0_13 = arith.constant 0 : index
    %c0_14 = arith.constant 0 : index
    %c0_15 = arith.constant 0 : index
    %26 = vector.load %arg1[%c0_13, %c0_14, %c0_15] : memref<2x8x256xf32, #tpu.memory_space<vmem>>, vector<1x8x256xf32>
    %27 = vector.shape_cast %26 : vector<1x8x256xf32> to vector<8x256xf32>
    %cst_16 = arith.constant dense<0.000000e+00> : vector<256x48xf32>
    %28 = tpu.matmul %27, %0, %cst_16 {dimension_numbers = #tpu.dot_dimension_numbers<[0], [0], [1], [1], [0, 1, 1, 1], [], []>} : vector<8x256xf32>, vector<8x48xf32>, vector<256x48xf32> -> vector<256x48xf32>
    %29 = vector.broadcast %1 : vector<1x48xf32> to vector<256x48xf32>
    %30 = arith.addf %28, %29 : vector<256x48xf32>
    %cst_17 = arith.constant 0.000000e+00 : f32
    %cst_18 = arith.constant 6.000000e+00 : f32
    %31 = vector.broadcast %cst_17 : f32 to vector<256x48xf32>
    %32 = arith.maximumf %31, %30 : vector<256x48xf32>
    %33 = vector.broadcast %cst_18 : f32 to vector<256x48xf32>
    %34 = arith.minimumf %33, %32 : vector<256x48xf32>
    %c0_19 = arith.constant 0 : index
    %c0_20 = arith.constant 0 : index
    %c0_21 = arith.constant 0 : index
    %c0_22 = arith.constant 0 : index
    %35 = vector.load %arg9[%c0_19, %c0_20, %c0_21, %c0_22] : memref<2x18x32x48xf32, #tpu.memory_space<vmem>>, vector<1x1x32x48xf32>
    %36 = vector.shape_cast %35 : vector<1x1x32x48xf32> to vector<1x32x48xf32>
    %37 = vector.shape_cast %24 : vector<1x32x48xf32> to vector<1x1x32x48xf32>
    tpu.vector_store %arg9[%c0_19, %c0_20, %c0_21, %c0_22], %37 {strides = array<i32>} : memref<2x18x32x48xf32, #tpu.memory_space<vmem>>, vector<1x1x32x48xf32>,
    %c0_23 = arith.constant 0 : index
    %c17 = arith.constant 17 : index
    %c0_24 = arith.constant 0 : index
    %c0_25 = arith.constant 0 : index
    %38 = vector.load %arg9[%c0_23, %c17, %c0_24, %c0_25] : memref<2x18x32x48xf32, #tpu.memory_space<vmem>>, vector<1x1x32x48xf32>
    %39 = vector.shape_cast %38 : vector<1x1x32x48xf32> to vector<1x32x48xf32>
    %40 = vector.shape_cast %24 : vector<1x32x48xf32> to vector<1x1x32x48xf32>
    tpu.vector_store %arg9[%c0_23, %c17, %c0_24, %c0_25], %40 {strides = array<i32>} : memref<2x18x32x48xf32, #tpu.memory_space<vmem>>, vector<1x1x32x48xf32>,
    %c0_26 = arith.constant 0 : index
    %c0_27 = arith.constant 0 : index
    %c7 = arith.constant 7 : index
    %c0_28 = arith.constant 0 : index
    %41 = vector.load %arg9[%c0_26, %c0_27, %c7, %c0_28] : memref<2x18x32x48xf32, #tpu.memory_space<vmem>>, vector<1x18x1x48xf32>
    %42 = vector.shape_cast %41 : vector<1x18x1x48xf32> to vector<18x1x48xf32>
    %43 = vector.shape_cast %25 : vector<18x1x48xf32> to vector<1x18x1x48xf32>
    tpu.vector_store %arg9[%c0_26, %c0_27, %c7, %c0_28], %43 {strides = array<i32>} : memref<2x18x32x48xf32, #tpu.memory_space<vmem>>, vector<1x18x1x48xf32>,
    %c0_29 = arith.constant 0 : index
    %c0_30 = arith.constant 0 : index
    %c24 = arith.constant 24 : index
    %c0_31 = arith.constant 0 : index
    %44 = vector.load %arg9[%c0_29, %c0_30, %c24, %c0_31] : memref<2x18x32x48xf32, #tpu.memory_space<vmem>>, vector<1x18x1x48xf32>
    %45 = vector.shape_cast %44 : vector<1x18x1x48xf32> to vector<18x1x48xf32>
    %46 = vector.shape_cast %25 : vector<18x1x48xf32> to vector<1x18x1x48xf32>
    tpu.vector_store %arg9[%c0_29, %c0_30, %c24, %c0_31], %46 {strides = array<i32>} : memref<2x18x32x48xf32, #tpu.memory_space<vmem>>, vector<1x18x1x48xf32>,
    %47 = vector.shape_cast %34 : vector<256x48xf32> to vector<16x16x48xf32>
    %c0_32 = arith.constant 0 : index
    %c1 = arith.constant 1 : index
    %c8 = arith.constant 8 : index
    %c0_33 = arith.constant 0 : index
    %48 = vector.load %arg9[%c0_32, %c1, %c8, %c0_33] : memref<2x18x32x48xf32, #tpu.memory_space<vmem>>, vector<1x16x16x48xf32>
    %49 = vector.shape_cast %48 : vector<1x16x16x48xf32> to vector<16x16x48xf32>
    %50 = vector.shape_cast %47 : vector<16x16x48xf32> to vector<1x16x16x48xf32>
    tpu.vector_store %arg9[%c0_32, %c1, %c8, %c0_33], %50 {strides = array<i32>} : memref<2x18x32x48xf32, #tpu.memory_space<vmem>>, vector<1x16x16x48xf32>,
    %cst_34 = arith.constant 0.000000e+00 : f32
    %51 = vector.broadcast %cst_34 : f32 to vector<16x16x48xf32>
    %c0_35 = arith.constant 0 : index
    %c0_36 = arith.constant 0 : index
    %c7_37 = arith.constant 7 : index
    %c0_38 = arith.constant 0 : index
    %52 = vector.load %arg9[%c0_35, %c0_36, %c7_37, %c0_38] : memref<2x18x32x48xf32, #tpu.memory_space<vmem>>, vector<1x16x16x48xf32>
    %53 = vector.shape_cast %52 : vector<1x16x16x48xf32> to vector<16x16x48xf32>
    %54 = vector.shape_cast %4 : vector<48xf32> to vector<1x1x48xf32>
    %55 = vector.broadcast %54 : vector<1x1x48xf32> to vector<16x16x48xf32>
    %56 = arith.mulf %53, %55 : vector<16x16x48xf32>
    %57 = arith.addf %51, %56 : vector<16x16x48xf32>
    %c0_39 = arith.constant 0 : index
    %c0_40 = arith.constant 0 : index
    %c8_41 = arith.constant 8 : index
    %c0_42 = arith.constant 0 : index
    %58 = vector.load %arg9[%c0_39, %c0_40, %c8_41, %c0_42] : memref<2x18x32x48xf32, #tpu.memory_space<vmem>>, vector<1x16x16x48xf32>
    %59 = vector.shape_cast %58 : vector<1x16x16x48xf32> to vector<16x16x48xf32>
    %60 = vector.shape_cast %6 : vector<48xf32> to vector<1x1x48xf32>
    %61 = vector.broadcast %60 : vector<1x1x48xf32> to vector<16x16x48xf32>
    %62 = arith.mulf %59, %61 : vector<16x16x48xf32>
    %63 = arith.addf %57, %62 : vector<16x16x48xf32>
    %c0_43 = arith.constant 0 : index
    %c0_44 = arith.constant 0 : index
    %c9 = arith.constant 9 : index
    %c0_45 = arith.constant 0 : index
    %64 = vector.load %arg9[%c0_43, %c0_44, %c9, %c0_45] : memref<2x18x32x48xf32, #tpu.memory_space<vmem>>, vector<1x16x16x48xf32>
    %65 = vector.shape_cast %64 : vector<1x16x16x48xf32> to vector<16x16x48xf32>
    %66 = vector.shape_cast %8 : vector<48xf32> to vector<1x1x48xf32>
    %67 = vector.broadcast %66 : vector<1x1x48xf32> to vector<16x16x48xf32>
    %68 = arith.mulf %65, %67 : vector<16x16x48xf32>
    %69 = arith.addf %63, %68 : vector<16x16x48xf32>
    %c0_46 = arith.constant 0 : index
    %c1_47 = arith.constant 1 : index
    %c7_48 = arith.constant 7 : index
    %c0_49 = arith.constant 0 : index
    %70 = vector.load %arg9[%c0_46, %c1_47, %c7_48, %c0_49] : memref<2x18x32x48xf32, #tpu.memory_space<vmem>>, vector<1x16x16x48xf32>
    %71 = vector.shape_cast %70 : vector<1x16x16x48xf32> to vector<16x16x48xf32>
    %72 = vector.shape_cast %10 : vector<48xf32> to vector<1x1x48xf32>
    %73 = vector.broadcast %72 : vector<1x1x48xf32> to vector<16x16x48xf32>
    %74 = arith.mulf %71, %73 : vector<16x16x48xf32>
    %75 = arith.addf %69, %74 : vector<16x16x48xf32>
    %c0_50 = arith.constant 0 : index
    %c1_51 = arith.constant 1 : index
    %c8_52 = arith.constant 8 : index
    %c0_53 = arith.constant 0 : index
    %76 = vector.load %arg9[%c0_50, %c1_51, %c8_52, %c0_53] : memref<2x18x32x48xf32, #tpu.memory_space<vmem>>, vector<1x16x16x48xf32>
    %77 = vector.shape_cast %76 : vector<1x16x16x48xf32> to vector<16x16x48xf32>
    %78 = vector.shape_cast %12 : vector<48xf32> to vector<1x1x48xf32>
    %79 = vector.broadcast %78 : vector<1x1x48xf32> to vector<16x16x48xf32>
    %80 = arith.mulf %77, %79 : vector<16x16x48xf32>
    %81 = arith.addf %75, %80 : vector<16x16x48xf32>
    %c0_54 = arith.constant 0 : index
    %c1_55 = arith.constant 1 : index
    %c9_56 = arith.constant 9 : index
    %c0_57 = arith.constant 0 : index
    %82 = vector.load %arg9[%c0_54, %c1_55, %c9_56, %c0_57] : memref<2x18x32x48xf32, #tpu.memory_space<vmem>>, vector<1x16x16x48xf32>
    %83 = vector.shape_cast %82 : vector<1x16x16x48xf32> to vector<16x16x48xf32>
    %84 = vector.shape_cast %14 : vector<48xf32> to vector<1x1x48xf32>
    %85 = vector.broadcast %84 : vector<1x1x48xf32> to vector<16x16x48xf32>
    %86 = arith.mulf %83, %85 : vector<16x16x48xf32>
    %87 = arith.addf %81, %86 : vector<16x16x48xf32>
    %c0_58 = arith.constant 0 : index
    %c2 = arith.constant 2 : index
    %c7_59 = arith.constant 7 : index
    %c0_60 = arith.constant 0 : index
    %88 = vector.load %arg9[%c0_58, %c2, %c7_59, %c0_60] : memref<2x18x32x48xf32, #tpu.memory_space<vmem>>, vector<1x16x16x48xf32>
    %89 = vector.shape_cast %88 : vector<1x16x16x48xf32> to vector<16x16x48xf32>
    %90 = vector.shape_cast %16 : vector<48xf32> to vector<1x1x48xf32>
    %91 = vector.broadcast %90 : vector<1x1x48xf32> to vector<16x16x48xf32>
    %92 = arith.mulf %89, %91 : vector<16x16x48xf32>
    %93 = arith.addf %87, %92 : vector<16x16x48xf32>
    %c0_61 = arith.constant 0 : index
    %c2_62 = arith.constant 2 : index
    %c8_63 = arith.constant 8 : index
    %c0_64 = arith.constant 0 : index
    %94 = vector.load %arg9[%c0_61, %c2_62, %c8_63, %c0_64] : memref<2x18x32x48xf32, #tpu.memory_space<vmem>>, vector<1x16x16x48xf32>
    %95 = vector.shape_cast %94 : vector<1x16x16x48xf32> to vector<16x16x48xf32>
    %96 = vector.shape_cast %18 : vector<48xf32> to vector<1x1x48xf32>
    %97 = vector.broadcast %96 : vector<1x1x48xf32> to vector<16x16x48xf32>
    %98 = arith.mulf %95, %97 : vector<16x16x48xf32>
    %99 = arith.addf %93, %98 : vector<16x16x48xf32>
    %c0_65 = arith.constant 0 : index
    %c2_66 = arith.constant 2 : index
    %c9_67 = arith.constant 9 : index
    %c0_68 = arith.constant 0 : index
    %100 = vector.load %arg9[%c0_65, %c2_66, %c9_67, %c0_68] : memref<2x18x32x48xf32, #tpu.memory_space<vmem>>, vector<1x16x16x48xf32>
    %101 = vector.shape_cast %100 : vector<1x16x16x48xf32> to vector<16x16x48xf32>
    %102 = vector.shape_cast %20 : vector<48xf32> to vector<1x1x48xf32>
    %103 = vector.broadcast %102 : vector<1x1x48xf32> to vector<16x16x48xf32>
    %104 = arith.mulf %101, %103 : vector<16x16x48xf32>
    %105 = arith.addf %99, %104 : vector<16x16x48xf32>
    %106 = vector.shape_cast %21 : vector<1x48xf32> to vector<1x1x48xf32>
    %107 = vector.broadcast %106 : vector<1x1x48xf32> to vector<16x16x48xf32>
    %108 = arith.addf %105, %107 : vector<16x16x48xf32>
    %cst_69 = arith.constant 0.000000e+00 : f32
    %cst_70 = arith.constant 6.000000e+00 : f32
    %109 = vector.broadcast %cst_69 : f32 to vector<16x16x48xf32>
    %110 = arith.maximumf %109, %108 : vector<16x16x48xf32>
    %111 = vector.broadcast %cst_70 : f32 to vector<16x16x48xf32>
    %112 = arith.minimumf %111, %110 : vector<16x16x48xf32>
    %113 = vector.shape_cast %112 : vector<16x16x48xf32> to vector<256x48xf32>
    %cst_71 = arith.constant dense<0.000000e+00> : vector<8x256xf32>
    %114 = tpu.matmul %22, %113, %cst_71 {dimension_numbers = #tpu.dot_dimension_numbers<[1], [1], [0], [0], [0, 0, 1, 0], [], []>} : vector<8x48xf32>, vector<256x48xf32>, vector<8x256xf32> -> vector<8x256xf32>
    %115 = vector.broadcast %23 : vector<8x1xf32> to vector<8x256xf32>
    %116 = arith.addf %114, %115 : vector<8x256xf32>
    %117 = arith.addf %116, %27 : vector<8x256xf32>
    %c0_72 = arith.constant 0 : index
    %c0_73 = arith.constant 0 : index
    %c0_74 = arith.constant 0 : index
    %118 = vector.load %arg8[%c0_72, %c0_73, %c0_74] : memref<2x8x256xf32, #tpu.memory_space<vmem>>, vector<1x8x256xf32>
    %119 = vector.shape_cast %118 : vector<1x8x256xf32> to vector<8x256xf32>
    %120 = vector.shape_cast %117 : vector<8x256xf32> to vector<1x8x256xf32>
    tpu.vector_store %arg8[%c0_72, %c0_73, %c0_74], %120 {strides = array<i32>} : memref<2x8x256xf32, #tpu.memory_space<vmem>>, vector<1x8x256xf32>,
    %c1_75 = arith.constant 1 : index
    %c0_76 = arith.constant 0 : index
    %c0_77 = arith.constant 0 : index
    %121 = vector.load %arg1[%c1_75, %c0_76, %c0_77] : memref<2x8x256xf32, #tpu.memory_space<vmem>>, vector<1x8x256xf32>
    %122 = vector.shape_cast %121 : vector<1x8x256xf32> to vector<8x256xf32>
    %cst_78 = arith.constant dense<0.000000e+00> : vector<256x48xf32>
    %123 = tpu.matmul %122, %0, %cst_78 {dimension_numbers = #tpu.dot_dimension_numbers<[0], [0], [1], [1], [0, 1, 1, 1], [], []>} : vector<8x256xf32>, vector<8x48xf32>, vector<256x48xf32> -> vector<256x48xf32>
    %124 = vector.broadcast %1 : vector<1x48xf32> to vector<256x48xf32>
    %125 = arith.addf %123, %124 : vector<256x48xf32>
    %cst_79 = arith.constant 0.000000e+00 : f32
    %cst_80 = arith.constant 6.000000e+00 : f32
    %126 = vector.broadcast %cst_79 : f32 to vector<256x48xf32>
    %127 = arith.maximumf %126, %125 : vector<256x48xf32>
    %128 = vector.broadcast %cst_80 : f32 to vector<256x48xf32>
    %129 = arith.minimumf %128, %127 : vector<256x48xf32>
    %c1_81 = arith.constant 1 : index
    %c0_82 = arith.constant 0 : index
    %c0_83 = arith.constant 0 : index
    %c0_84 = arith.constant 0 : index
    %130 = vector.load %arg9[%c1_81, %c0_82, %c0_83, %c0_84] : memref<2x18x32x48xf32, #tpu.memory_space<vmem>>, vector<1x1x32x48xf32>
    %131 = vector.shape_cast %130 : vector<1x1x32x48xf32> to vector<1x32x48xf32>
    %132 = vector.shape_cast %24 : vector<1x32x48xf32> to vector<1x1x32x48xf32>
    tpu.vector_store %arg9[%c1_81, %c0_82, %c0_83, %c0_84], %132 {strides = array<i32>} : memref<2x18x32x48xf32, #tpu.memory_space<vmem>>, vector<1x1x32x48xf32>,
    %c1_85 = arith.constant 1 : index
    %c17_86 = arith.constant 17 : index
    %c0_87 = arith.constant 0 : index
    %c0_88 = arith.constant 0 : index
    %133 = vector.load %arg9[%c1_85, %c17_86, %c0_87, %c0_88] : memref<2x18x32x48xf32, #tpu.memory_space<vmem>>, vector<1x1x32x48xf32>
    %134 = vector.shape_cast %133 : vector<1x1x32x48xf32> to vector<1x32x48xf32>
    %135 = vector.shape_cast %24 : vector<1x32x48xf32> to vector<1x1x32x48xf32>
    tpu.vector_store %arg9[%c1_85, %c17_86, %c0_87, %c0_88], %135 {strides = array<i32>} : memref<2x18x32x48xf32, #tpu.memory_space<vmem>>, vector<1x1x32x48xf32>,
    %c1_89 = arith.constant 1 : index
    %c0_90 = arith.constant 0 : index
    %c7_91 = arith.constant 7 : index
    %c0_92 = arith.constant 0 : index
    %136 = vector.load %arg9[%c1_89, %c0_90, %c7_91, %c0_92] : memref<2x18x32x48xf32, #tpu.memory_space<vmem>>, vector<1x18x1x48xf32>
    %137 = vector.shape_cast %136 : vector<1x18x1x48xf32> to vector<18x1x48xf32>
    %138 = vector.shape_cast %25 : vector<18x1x48xf32> to vector<1x18x1x48xf32>
    tpu.vector_store %arg9[%c1_89, %c0_90, %c7_91, %c0_92], %138 {strides = array<i32>} : memref<2x18x32x48xf32, #tpu.memory_space<vmem>>, vector<1x18x1x48xf32>,
    %c1_93 = arith.constant 1 : index
    %c0_94 = arith.constant 0 : index
    %c24_95 = arith.constant 24 : index
    %c0_96 = arith.constant 0 : index
    %139 = vector.load %arg9[%c1_93, %c0_94, %c24_95, %c0_96] : memref<2x18x32x48xf32, #tpu.memory_space<vmem>>, vector<1x18x1x48xf32>
    %140 = vector.shape_cast %139 : vector<1x18x1x48xf32> to vector<18x1x48xf32>
    %141 = vector.shape_cast %25 : vector<18x1x48xf32> to vector<1x18x1x48xf32>
    tpu.vector_store %arg9[%c1_93, %c0_94, %c24_95, %c0_96], %141 {strides = array<i32>} : memref<2x18x32x48xf32, #tpu.memory_space<vmem>>, vector<1x18x1x48xf32>,
    %142 = vector.shape_cast %129 : vector<256x48xf32> to vector<16x16x48xf32>
    %c1_97 = arith.constant 1 : index
    %c1_98 = arith.constant 1 : index
    %c8_99 = arith.constant 8 : index
    %c0_100 = arith.constant 0 : index
    %143 = vector.load %arg9[%c1_97, %c1_98, %c8_99, %c0_100] : memref<2x18x32x48xf32, #tpu.memory_space<vmem>>, vector<1x16x16x48xf32>
    %144 = vector.shape_cast %143 : vector<1x16x16x48xf32> to vector<16x16x48xf32>
    %145 = vector.shape_cast %142 : vector<16x16x48xf32> to vector<1x16x16x48xf32>
    tpu.vector_store %arg9[%c1_97, %c1_98, %c8_99, %c0_100], %145 {strides = array<i32>} : memref<2x18x32x48xf32, #tpu.memory_space<vmem>>, vector<1x16x16x48xf32>,
    %cst_101 = arith.constant 0.000000e+00 : f32
    %146 = vector.broadcast %cst_101 : f32 to vector<16x16x48xf32>
    %c1_102 = arith.constant 1 : index
    %c0_103 = arith.constant 0 : index
    %c7_104 = arith.constant 7 : index
    %c0_105 = arith.constant 0 : index
    %147 = vector.load %arg9[%c1_102, %c0_103, %c7_104, %c0_105] : memref<2x18x32x48xf32, #tpu.memory_space<vmem>>, vector<1x16x16x48xf32>
    %148 = vector.shape_cast %147 : vector<1x16x16x48xf32> to vector<16x16x48xf32>
    %149 = vector.shape_cast %4 : vector<48xf32> to vector<1x1x48xf32>
    %150 = vector.broadcast %149 : vector<1x1x48xf32> to vector<16x16x48xf32>
    %151 = arith.mulf %148, %150 : vector<16x16x48xf32>
    %152 = arith.addf %146, %151 : vector<16x16x48xf32>
    %c1_106 = arith.constant 1 : index
    %c0_107 = arith.constant 0 : index
    %c8_108 = arith.constant 8 : index
    %c0_109 = arith.constant 0 : index
    %153 = vector.load %arg9[%c1_106, %c0_107, %c8_108, %c0_109] : memref<2x18x32x48xf32, #tpu.memory_space<vmem>>, vector<1x16x16x48xf32>
    %154 = vector.shape_cast %153 : vector<1x16x16x48xf32> to vector<16x16x48xf32>
    %155 = vector.shape_cast %6 : vector<48xf32> to vector<1x1x48xf32>
    %156 = vector.broadcast %155 : vector<1x1x48xf32> to vector<16x16x48xf32>
    %157 = arith.mulf %154, %156 : vector<16x16x48xf32>
    %158 = arith.addf %152, %157 : vector<16x16x48xf32>
    %c1_110 = arith.constant 1 : index
    %c0_111 = arith.constant 0 : index
    %c9_112 = arith.constant 9 : index
    %c0_113 = arith.constant 0 : index
    %159 = vector.load %arg9[%c1_110, %c0_111, %c9_112, %c0_113] : memref<2x18x32x48xf32, #tpu.memory_space<vmem>>, vector<1x16x16x48xf32>
    %160 = vector.shape_cast %159 : vector<1x16x16x48xf32> to vector<16x16x48xf32>
    %161 = vector.shape_cast %8 : vector<48xf32> to vector<1x1x48xf32>
    %162 = vector.broadcast %161 : vector<1x1x48xf32> to vector<16x16x48xf32>
    %163 = arith.mulf %160, %162 : vector<16x16x48xf32>
    %164 = arith.addf %158, %163 : vector<16x16x48xf32>
    %c1_114 = arith.constant 1 : index
    %c1_115 = arith.constant 1 : index
    %c7_116 = arith.constant 7 : index
    %c0_117 = arith.constant 0 : index
    %165 = vector.load %arg9[%c1_114, %c1_115, %c7_116, %c0_117] : memref<2x18x32x48xf32, #tpu.memory_space<vmem>>, vector<1x16x16x48xf32>
    %166 = vector.shape_cast %165 : vector<1x16x16x48xf32> to vector<16x16x48xf32>
    %167 = vector.shape_cast %10 : vector<48xf32> to vector<1x1x48xf32>
    %168 = vector.broadcast %167 : vector<1x1x48xf32> to vector<16x16x48xf32>
    %169 = arith.mulf %166, %168 : vector<16x16x48xf32>
    %170 = arith.addf %164, %169 : vector<16x16x48xf32>
    %c1_118 = arith.constant 1 : index
    %c1_119 = arith.constant 1 : index
    %c8_120 = arith.constant 8 : index
    %c0_121 = arith.constant 0 : index
    %171 = vector.load %arg9[%c1_118, %c1_119, %c8_120, %c0_121] : memref<2x18x32x48xf32, #tpu.memory_space<vmem>>, vector<1x16x16x48xf32>
    %172 = vector.shape_cast %171 : vector<1x16x16x48xf32> to vector<16x16x48xf32>
    %173 = vector.shape_cast %12 : vector<48xf32> to vector<1x1x48xf32>
    %174 = vector.broadcast %173 : vector<1x1x48xf32> to vector<16x16x48xf32>
    %175 = arith.mulf %172, %174 : vector<16x16x48xf32>
    %176 = arith.addf %170, %175 : vector<16x16x48xf32>
    %c1_122 = arith.constant 1 : index
    %c1_123 = arith.constant 1 : index
    %c9_124 = arith.constant 9 : index
    %c0_125 = arith.constant 0 : index
    %177 = vector.load %arg9[%c1_122, %c1_123, %c9_124, %c0_125] : memref<2x18x32x48xf32, #tpu.memory_space<vmem>>, vector<1x16x16x48xf32>
    %178 = vector.shape_cast %177 : vector<1x16x16x48xf32> to vector<16x16x48xf32>
    %179 = vector.shape_cast %14 : vector<48xf32> to vector<1x1x48xf32>
    %180 = vector.broadcast %179 : vector<1x1x48xf32> to vector<16x16x48xf32>
    %181 = arith.mulf %178, %180 : vector<16x16x48xf32>
    %182 = arith.addf %176, %181 : vector<16x16x48xf32>
    %c1_126 = arith.constant 1 : index
    %c2_127 = arith.constant 2 : index
    %c7_128 = arith.constant 7 : index
    %c0_129 = arith.constant 0 : index
    %183 = vector.load %arg9[%c1_126, %c2_127, %c7_128, %c0_129] : memref<2x18x32x48xf32, #tpu.memory_space<vmem>>, vector<1x16x16x48xf32>
    %184 = vector.shape_cast %183 : vector<1x16x16x48xf32> to vector<16x16x48xf32>
    %185 = vector.shape_cast %16 : vector<48xf32> to vector<1x1x48xf32>
    %186 = vector.broadcast %185 : vector<1x1x48xf32> to vector<16x16x48xf32>
    %187 = arith.mulf %184, %186 : vector<16x16x48xf32>
    %188 = arith.addf %182, %187 : vector<16x16x48xf32>
    %c1_130 = arith.constant 1 : index
    %c2_131 = arith.constant 2 : index
    %c8_132 = arith.constant 8 : index
    %c0_133 = arith.constant 0 : index
    %189 = vector.load %arg9[%c1_130, %c2_131, %c8_132, %c0_133] : memref<2x18x32x48xf32, #tpu.memory_space<vmem>>, vector<1x16x16x48xf32>
    %190 = vector.shape_cast %189 : vector<1x16x16x48xf32> to vector<16x16x48xf32>
    %191 = vector.shape_cast %18 : vector<48xf32> to vector<1x1x48xf32>
    %192 = vector.broadcast %191 : vector<1x1x48xf32> to vector<16x16x48xf32>
    %193 = arith.mulf %190, %192 : vector<16x16x48xf32>
    %194 = arith.addf %188, %193 : vector<16x16x48xf32>
    %c1_134 = arith.constant 1 : index
    %c2_135 = arith.constant 2 : index
    %c9_136 = arith.constant 9 : index
    %c0_137 = arith.constant 0 : index
    %195 = vector.load %arg9[%c1_134, %c2_135, %c9_136, %c0_137] : memref<2x18x32x48xf32, #tpu.memory_space<vmem>>, vector<1x16x16x48xf32>
    %196 = vector.shape_cast %195 : vector<1x16x16x48xf32> to vector<16x16x48xf32>
    %197 = vector.shape_cast %20 : vector<48xf32> to vector<1x1x48xf32>
    %198 = vector.broadcast %197 : vector<1x1x48xf32> to vector<16x16x48xf32>
    %199 = arith.mulf %196, %198 : vector<16x16x48xf32>
    %200 = arith.addf %194, %199 : vector<16x16x48xf32>
    %201 = vector.shape_cast %21 : vector<1x48xf32> to vector<1x1x48xf32>
    %202 = vector.broadcast %201 : vector<1x1x48xf32> to vector<16x16x48xf32>
    %203 = arith.addf %200, %202 : vector<16x16x48xf32>
    %cst_138 = arith.constant 0.000000e+00 : f32
    %cst_139 = arith.constant 6.000000e+00 : f32
    %204 = vector.broadcast %cst_138 : f32 to vector<16x16x48xf32>
    %205 = arith.maximumf %204, %203 : vector<16x16x48xf32>
    %206 = vector.broadcast %cst_139 : f32 to vector<16x16x48xf32>
    %207 = arith.minimumf %206, %205 : vector<16x16x48xf32>
    %208 = vector.shape_cast %207 : vector<16x16x48xf32> to vector<256x48xf32>
    %cst_140 = arith.constant dense<0.000000e+00> : vector<8x256xf32>
    %209 = tpu.matmul %22, %208, %cst_140 {dimension_numbers = #tpu.dot_dimension_numbers<[1], [1], [0], [0], [0, 0, 1, 0], [], []>} : vector<8x48xf32>, vector<256x48xf32>, vector<8x256xf32> -> vector<8x256xf32>
    %210 = vector.broadcast %23 : vector<8x1xf32> to vector<8x256xf32>
    %211 = arith.addf %209, %210 : vector<8x256xf32>
    %212 = arith.addf %211, %122 : vector<8x256xf32>
    %c1_141 = arith.constant 1 : index
    %c0_142 = arith.constant 0 : index
    %c0_143 = arith.constant 0 : index
    %213 = vector.load %arg8[%c1_141, %c0_142, %c0_143] : memref<2x8x256xf32, #tpu.memory_space<vmem>>, vector<1x8x256xf32>
    %214 = vector.shape_cast %213 : vector<1x8x256xf32> to vector<8x256xf32>
    %215 = vector.shape_cast %212 : vector<8x256xf32> to vector<1x8x256xf32>
    tpu.vector_store %arg8[%c1_141, %c0_142, %c0_143], %215 {strides = array<i32>} : memref<2x8x256xf32, #tpu.memory_space<vmem>>, vector<1x8x256xf32>,
    return
  }
  func.func @transform_0(%arg0: i32) -> (i32, i32, i32) {
    %c0_i32 = arith.constant 0 : i32
    %c0_i32_0 = arith.constant 0 : i32
    %c0_i32_1 = arith.constant 0 : i32
    return %arg0, %c0_i32, %c0_i32_0 : i32, i32, i32
  }
  func.func @transform_1(%arg0: i32) -> (i32, i32) {
    %c0_i32 = arith.constant 0 : i32
    %c0_i32_0 = arith.constant 0 : i32
    %c0_i32_1 = arith.constant 0 : i32
    return %c0_i32, %c0_i32_0 : i32, i32
  }
  func.func @transform_2(%arg0: i32) -> (i32, i32) {
    %c0_i32 = arith.constant 0 : i32
    %c0_i32_0 = arith.constant 0 : i32
    %c0_i32_1 = arith.constant 0 : i32
    return %c0_i32, %c0_i32_0 : i32, i32
  }
  func.func @transform_3(%arg0: i32) -> (i32, i32, i32) {
    %c0_i32 = arith.constant 0 : i32
    %c0_i32_0 = arith.constant 0 : i32
    %c0_i32_1 = arith.constant 0 : i32
    %c0_i32_2 = arith.constant 0 : i32
    return %c0_i32, %c0_i32_0, %c0_i32_1 : i32, i32, i32
  }
  func.func @transform_4(%arg0: i32) -> (i32, i32) {
    %c0_i32 = arith.constant 0 : i32
    %c0_i32_0 = arith.constant 0 : i32
    %c0_i32_1 = arith.constant 0 : i32
    return %c0_i32, %c0_i32_0 : i32, i32
  }
  func.func @transform_5(%arg0: i32) -> (i32, i32) {
    %c0_i32 = arith.constant 0 : i32
    %c0_i32_0 = arith.constant 0 : i32
    %c0_i32_1 = arith.constant 0 : i32
    return %c0_i32, %c0_i32_0 : i32, i32
  }
  func.func @transform_6(%arg0: i32) -> (i32, i32) {
    %c0_i32 = arith.constant 0 : i32
    %c0_i32_0 = arith.constant 0 : i32
    %c0_i32_1 = arith.constant 0 : i32
    return %c0_i32, %c0_i32_0 : i32, i32
  }
  func.func @transform_7(%arg0: i32) -> (i32, i32, i32) {
    %c0_i32 = arith.constant 0 : i32
    %c0_i32_0 = arith.constant 0 : i32
    %c0_i32_1 = arith.constant 0 : i32
    return %arg0, %c0_i32, %c0_i32_0 : i32, i32, i32
  }
}

</mosaic_0001>

<llo_original>
// kernel: tpu_custom_call.1
$region0: #{tpu_custom_call.1}
  #allocation0 [shape = 'u32[]', space=smem, size = 0x4, offset = 0x4, fixed_abs, tag = 'smem constant byte address 0x4 - core index']
  #allocation1 [shape = 'u32[72,128]{1,0:T(1,128)}', space=vmem, size = 0x9000, scoped, tag = 'internal scratch']
  #allocation2 [shape = 'f32[2,18,32,48]{3,2,1,0:T(8,128)}', space=vmem, size = 0x90000, scoped, tag = 'scratch operand']
  %s0 = inlined_call_operand.hbm [shape: f32[2,8,256], index: 0, kind: input, shape index: {}]
  %s1 = inlined_call_operand.vmem [shape: f32[8,48], index: 1, kind: input, shape index: {}]
  %s2 = inlined_call_operand.vmem [shape: f32[1,48], index: 2, kind: input, shape index: {}]
  %s3 = inlined_call_operand.hbm [shape: f32[3,3,48], index: 3, kind: input, shape index: {}]
  %s4 = inlined_call_operand.vmem [shape: f32[1,48], index: 4, kind: input, shape index: {}]
  %s5 = inlined_call_operand.hbm [shape: f32[8,48], index: 5, kind: input, shape index: {}]
  %s6 = inlined_call_operand.vmem [shape: f32[8,1], index: 6, kind: input, shape index: {}]
  %s7 = inlined_call_operand.hbm [shape: f32[2,8,256], index: 7, kind: output, shape index: {}]
  %s8 = sld [smem:[#allocation0]]
  $region50: #{tpu_custom_call.1} parent=0
    _
  %s10 = ssub.s32 1, %s8
  %s11 = scalar_select 0, %s10, %s8
  $region1: #{tpu_custom_call.1} parent=0
    #allocation3 [shape = 'u8[16384]{0}', space=vmem, size = 0x4000, scoped, tag = 'input window, operand 0, single buffered']
    #allocation4 [shape = 's32[1]{0}', space=sflag, size = 0x4, scoped, tag = 'scoped memory for tpu_custom_call.1']
    #allocation5 [shape = 's32[1]{0}', space=sflag, size = 0x4, scoped, tag = 'scoped memory for tpu_custom_call.1']
    #allocation6 [shape = 'u8[6144]{0}', space=vmem, size = 0x1800, scoped, tag = 'input window, operand 3, single buffered']
    #allocation7 [shape = 's32[1]{0}', space=sflag, size = 0x4, scoped, tag = 'scoped memory for tpu_custom_call.1']
    #allocation8 [shape = 'u8[4096]{0}', space=vmem, size = 0x1000, scoped, tag = 'input window, operand 5, single buffered']
    #allocation9 [shape = 'u8[16384]{0}', space=vmem, size = 0x4000, scoped, tag = 'output window, operand 0, single buffered']
    %12 = vsyncpa [#allocation4], 0
    %13 = vsyncpa [#allocation7], 0
    %14 = vsyncpa [#allocation5], 0
    // Predicated region
    $region2: #{tpu_custom_call.1} parent=1 // pred_check
      _
    $region3: #{tpu_custom_call.1} parent=1 // pred_check_branch
      %16 = sbr.rel (0) target = $region5
    $region4: #{tpu_custom_call.1} parent=1 // pred_region
      %18 = vsyncadd [#allocation4], 0
      %s19 = sshll.u32 %s0, 4
      %s20 = int_to_ptr.hbm [resolvable:$true] %s19
      %s21 = sshll.u32 [#allocation3], 4
      %s22 = int_to_ptr.vmem [resolvable:$true] %s21
      %27 = dma.hbm_to_vmem [thread:$0]  %s20, 512, %s22, [#allocation4], 256, 256, 16
    $region5: #{tpu_custom_call.1} parent=1 // pred_fallthru
      _
    // Predicated region
    $region6: #{tpu_custom_call.1} parent=1 // pred_check
      _
    $region7: #{tpu_custom_call.1} parent=1 // pred_check_branch
      %29 = sbr.rel (0) target = $region9
    $region8: #{tpu_custom_call.1} parent=1 // pred_region
      _
    $region9: #{tpu_custom_call.1} parent=1 // pred_fallthru
      _
    // Predicated region
    $region10: #{tpu_custom_call.1} parent=1 // pred_check
      _
    $region11: #{tpu_custom_call.1} parent=1 // pred_check_branch
      %31 = sbr.rel (0) target = $region13
    $region12: #{tpu_custom_call.1} parent=1 // pred_region
      _
    $region13: #{tpu_custom_call.1} parent=1 // pred_fallthru
      _
    // Predicated region
    $region14: #{tpu_custom_call.1} parent=1 // pred_check
      _
    $region15: #{tpu_custom_call.1} parent=1 // pred_check_branch
      %33 = sbr.rel (0) target = $region17
    $region16: #{tpu_custom_call.1} parent=1 // pred_region
      %35 = vsyncadd [#allocation7], 0
      %s36 = sshll.u32 %s3, 4
      %s37 = int_to_ptr.hbm [resolvable:$true] %s36
      %s38 = sshll.u32 [#allocation6], 4
      %s39 = int_to_ptr.vmem [resolvable:$true] %s38
      %44 = dma.hbm_to_vmem [thread:$0]  %s37, 192, %s39, [#allocation7], 64, 64, 4
    $region17: #{tpu_custom_call.1} parent=1 // pred_fallthru
      _
    // Predicated region
    $region18: #{tpu_custom_call.1} parent=1 // pred_check
      _
    $region19: #{tpu_custom_call.1} parent=1 // pred_check_branch
      %46 = sbr.rel (0) target = $region21
    $region20: #{tpu_custom_call.1} parent=1 // pred_region
      _
    $region21: #{tpu_custom_call.1} parent=1 // pred_fallthru
      _
    // Predicated region
    $region22: #{tpu_custom_call.1} parent=1 // pred_check
      _
    $region23: #{tpu_custom_call.1} parent=1 // pred_check_branch
      %48 = sbr.rel (0) target = $region25
    $region24: #{tpu_custom_call.1} parent=1 // pred_region
      %50 = vsyncadd [#allocation7], 0
      %s52 = sshll.u32 %s5, 4
      %s53 = int_to_ptr.hbm [resolvable:$true] %s52
      %s54 = sshll.u32 [#allocation8], 4
      %s55 = int_to_ptr.vmem [resolvable:$true] %s54
      %57 = dma.hbm_to_vmem [thread:$0]  %s53, 128, %s55, [#allocation7]
    $region25: #{tpu_custom_call.1} parent=1 // pred_fallthru
      _
    // Predicated region
    $region26: #{tpu_custom_call.1} parent=1 // pred_check
      _
    $region27: #{tpu_custom_call.1} parent=1 // pred_check_branch
      %59 = sbr.rel (0) target = $region29
    $region28: #{tpu_custom_call.1} parent=1 // pred_region
      _
    $region29: #{tpu_custom_call.1} parent=1 // pred_fallthru
      _
    // Predicated region
    $region30: #{tpu_custom_call.1} parent=1 // pred_check
      _
    $region31: #{tpu_custom_call.1} parent=1 // pred_check_branch
      %61 = sbr.rel (0) target = $region33
    $region32: #{tpu_custom_call.1} parent=1 // pred_region
      %63 = dma.done [#allocation4], 512
    $region33: #{tpu_custom_call.1} parent=1 // pred_fallthru
      _
    // Predicated region
    $region34: #{tpu_custom_call.1} parent=1 // pred_check
      _
    $region35: #{tpu_custom_call.1} parent=1 // pred_check_branch
      %65 = sbr.rel (0) target = $region37
    $region36: #{tpu_custom_call.1} parent=1 // pred_region
      %67 = dma.done [#allocation7], 192
    $region37: #{tpu_custom_call.1} parent=1 // pred_fallthru
      _
    // Predicated region
    $region38: #{tpu_custom_call.1} parent=1 // pred_check
      _
    $region39: #{tpu_custom_call.1} parent=1 // pred_check_branch
      %69 = sbr.rel (0) target = $region41
    $region40: #{tpu_custom_call.1} parent=1 // pred_region
      %71 = dma.done [#allocation7], 128
    $region41: #{tpu_custom_call.1} parent=1 // pred_fallthru
      _
    %v72 = vld [vmem:[%s1] sm:$0xff]
    %v73 = vld [vmem:[%s2] sm:$0x1]
    %v74 = vld [vmem:[#allocation6] sm:$0x7]
    %v75 = vld [vmem:[#allocation6 + $0x4] sm:$0x7]
    %v76 = vld [vmem:[#allocation6 + $0x8] sm:$0x7]
    %v77 = vld [vmem:[%s4] sm:$0x1]
    %v78 = vld [vmem:[#allocation8] sm:$0xff]
    %v79 = vld [vmem:[%s6] sm:$0xff]
    %v80 = vld [vmem:[#allocation3] sm:$0xff]
    %v81 = vld [vmem:[#allocation3 + $0x8] sm:$0xff]
    %v83 = vperm.slane %v73, 0
    %85 = vxpose.xlu0.b32.start [1/16] %v80, 128
    %86 = vxpose.xlu0.b32.cont [2/16] 0.0, 128
    %87 = vxpose.xlu0.b32.cont [3/16] 0.0, 128
    %88 = vxpose.xlu0.b32.cont [4/16] 0.0, 128
    %89 = vxpose.xlu0.b32.cont [5/16] 0.0, 128
    %90 = vxpose.xlu0.b32.cont [6/16] 0.0, 128
    %91 = vxpose.xlu0.b32.cont [7/16] 0.0, 128
    %92 = vxpose.xlu0.b32.cont [8/16] 0.0, 128
    %93 = vxpose.xlu0.b32.cont [9/16] 0.0, 128
    %94 = vxpose.xlu0.b32.cont [10/16] 0.0, 128
    %95 = vxpose.xlu0.b32.cont [11/16] 0.0, 128
    %96 = vxpose.xlu0.b32.cont [12/16] 0.0, 128
    %97 = vxpose.xlu0.b32.cont [13/16] 0.0, 128
    %98 = vxpose.xlu0.b32.cont [14/16] 0.0, 128
    %99 = vxpose.xlu0.b32.cont [15/16] 0.0, 128
    %100 = vxpose.xlu0.b32.end [16/16] 0.0, 128
    %v101 = vpop.trf.xlu0
    %v102 = vpop.trf.xlu0
    %v103 = vpop.trf.xlu0
    %v104 = vpop.trf.xlu0
    %v105 = vpop.trf.xlu0
    %v106 = vpop.trf.xlu0
    %v107 = vpop.trf.xlu0
    %v108 = vpop.trf.xlu0
    %v109 = vpop.trf.xlu0
    %v110 = vpop.trf.xlu0
    %v111 = vpop.trf.xlu0
    %v112 = vpop.trf.xlu0
    %v113 = vpop.trf.xlu0
    %v114 = vpop.trf.xlu0
    %v115 = vpop.trf.xlu0
    %v116 = vpop.trf.xlu0
    %117 = vxpose.xlu0.b32.start [1/16] %v81, 128
    %118 = vxpose.xlu0.b32.cont [2/16] 0.0, 128
    %119 = vxpose.xlu0.b32.cont [3/16] 0.0, 128
    %120 = vxpose.xlu0.b32.cont [4/16] 0.0, 128
    %121 = vxpose.xlu0.b32.cont [5/16] 0.0, 128
    %122 = vxpose.xlu0.b32.cont [6/16] 0.0, 128
    %123 = vxpose.xlu0.b32.cont [7/16] 0.0, 128
    %124 = vxpose.xlu0.b32.cont [8/16] 0.0, 128
    %125 = vxpose.xlu0.b32.cont [9/16] 0.0, 128
    %126 = vxpose.xlu0.b32.cont [10/16] 0.0, 128
    %127 = vxpose.xlu0.b32.cont [11/16] 0.0, 128
    %128 = vxpose.xlu0.b32.cont [12/16] 0.0, 128
    %129 = vxpose.xlu0.b32.cont [13/16] 0.0, 128
    %130 = vxpose.xlu0.b32.cont [14/16] 0.0, 128
    %131 = vxpose.xlu0.b32.cont [15/16] 0.0, 128
    %132 = vxpose.xlu0.b32.end [16/16] 0.0, 128
    %v133 = vpop.trf.xlu0
    %v134 = vpop.trf.xlu0
    %v135 = vpop.trf.xlu0
    %v136 = vpop.trf.xlu0
    %v137 = vpop.trf.xlu0
    %v138 = vpop.trf.xlu0
    %v139 = vpop.trf.xlu0
    %v140 = vpop.trf.xlu0
    %v141 = vpop.trf.xlu0
    %v142 = vpop.trf.xlu0
    %v143 = vpop.trf.xlu0
    %v144 = vpop.trf.xlu0
    %v145 = vpop.trf.xlu0
    %v146 = vpop.trf.xlu0
    %v147 = vpop.trf.xlu0
    %v148 = vpop.trf.xlu0
    %vm149 = vcmask 64512
    %v151 = vsel %vm149, %v101, 0
    %v154 = vsel %vm149, %v102, 0
    %v157 = vsel %vm149, %v103, 0
    %v160 = vsel %vm149, %v104, 0
    %v163 = vsel %vm149, %v105, 0
    %v166 = vsel %vm149, %v106, 0
    %v169 = vsel %vm149, %v107, 0
    %v172 = vsel %vm149, %v108, 0
    %v175 = vsel %vm149, %v109, 0
    %v178 = vsel %vm149, %v110, 0
    %v181 = vsel %vm149, %v111, 0
    %v184 = vsel %vm149, %v112, 0
    %v187 = vsel %vm149, %v113, 0
    %v190 = vsel %vm149, %v114, 0
    %v193 = vsel %vm149, %v115, 0
    %v196 = vsel %vm149, %v116, 0
    %v199 = vsel %vm149, %v133, 0
    %v202 = vsel %vm149, %v134, 0
    %v205 = vsel %vm149, %v135, 0
    %v208 = vsel %vm149, %v136, 0
    %v211 = vsel %vm149, %v137, 0
    %v214 = vsel %vm149, %v138, 0
    %v217 = vsel %vm149, %v139, 0
    %v220 = vsel %vm149, %v140, 0
    %v223 = vsel %vm149, %v141, 0
    %v226 = vsel %vm149, %v142, 0
    %v229 = vsel %vm149, %v143, 0
    %v232 = vsel %vm149, %v144, 0
    %v235 = vsel %vm149, %v145, 0
    %v238 = vsel %vm149, %v146, 0
    %v241 = vsel %vm149, %v147, 0
    %v244 = vsel %vm149, %v148, 0
    %246 = vmatpush.msra.mxu0 0.0
    %247 = vmatpush.msra.mxu0 0.0
    %248 = vmatpush.msra.mxu0 0.0
    %249 = vmatpush.msra.mxu0 0.0
    %250 = vmatpush.msra.mxu0 0.0
    %251 = vmatpush.msra.mxu0 0.0
    %252 = vmatpush.msra.mxu0 0.0
    %253 = vmatpush.msra.mxu0 0.0
    %254 = vmatpush.msra.mxu0 0.0
    %255 = vmatpush.msra.mxu0 0.0
    %256 = vmatpush.msra.mxu0 0.0
    %257 = vmatpush.msra.mxu0 0.0
    %258 = vmatpush.msra.mxu0 0.0
    %259 = vmatpush.msra.mxu0 0.0
    %260 = vmatpush.msra.mxu0 0.0
    %261 = vmatpush.msra.mxu0 %v72
    %262 = vmatmul.f32.gmra.mxu0 %v151
    %v263 = vpop.f32.mrf.mxu0
    %v264 = vadd.f32 %v83, %v263
    %265 = vmatmul.f32.gmra.mxu0 %v154
    %v266 = vpop.f32.mrf.mxu0
    %v267 = vadd.f32 %v83, %v266
    %268 = vmatmul.f32.gmra.mxu0 %v157
    %v269 = vpop.f32.mrf.mxu0
    %v270 = vadd.f32 %v83, %v269
    %271 = vmatmul.f32.gmra.mxu0 %v160
    %v272 = vpop.f32.mrf.mxu0
    %v273 = vadd.f32 %v83, %v272
    %274 = vmatmul.f32.gmra.mxu0 %v163
    %v275 = vpop.f32.mrf.mxu0
    %v276 = vadd.f32 %v83, %v275
    %277 = vmatmul.f32.gmra.mxu0 %v166
    %v278 = vpop.f32.mrf.mxu0
    %v279 = vadd.f32 %v83, %v278
    %280 = vmatmul.f32.gmra.mxu0 %v169
    %v281 = vpop.f32.mrf.mxu0
    %v282 = vadd.f32 %v83, %v281
    %283 = vmatmul.f32.gmra.mxu0 %v172
    %v284 = vpop.f32.mrf.mxu0
    %v285 = vadd.f32 %v83, %v284
    %286 = vmatmul.f32.gmra.mxu0 %v175
    %v287 = vpop.f32.mrf.mxu0
    %v288 = vadd.f32 %v83, %v287
    %289 = vmatmul.f32.gmra.mxu0 %v178
    %v290 = vpop.f32.mrf.mxu0
    %v291 = vadd.f32 %v83, %v290
    %292 = vmatmul.f32.gmra.mxu0 %v181
    %v293 = vpop.f32.mrf.mxu0
    %v294 = vadd.f32 %v83, %v293
    %295 = vmatmul.f32.gmra.mxu0 %v184
    %v296 = vpop.f32.mrf.mxu0
    %v297 = vadd.f32 %v83, %v296
    %298 = vmatmul.f32.gmra.mxu0 %v187
    %v299 = vpop.f32.mrf.mxu0
    %v300 = vadd.f32 %v83, %v299
    %301 = vmatmul.f32.gmra.mxu0 %v190
    %v302 = vpop.f32.mrf.mxu0
    %v303 = vadd.f32 %v83, %v302
    %304 = vmatmul.f32.gmra.mxu0 %v193
    %v305 = vpop.f32.mrf.mxu0
    %v306 = vadd.f32 %v83, %v305
    %307 = vmatmul.f32.gmra.mxu0 %v196
    %v308 = vpop.f32.mrf.mxu0
    %v309 = vadd.f32 %v83, %v308
    %310 = vmatmul.f32.gmra.mxu0 %v199
    %v311 = vpop.f32.mrf.mxu0
    %v312 = vadd.f32 %v83, %v311
    %313 = vmatmul.f32.gmra.mxu0 %v202
    %v314 = vpop.f32.mrf.mxu0
    %v315 = vadd.f32 %v83, %v314
    %316 = vmatmul.f32.gmra.mxu0 %v205
    %v317 = vpop.f32.mrf.mxu0
    %v318 = vadd.f32 %v83, %v317
    %319 = vmatmul.f32.gmra.mxu0 %v208
    %v320 = vpop.f32.mrf.mxu0
    %v321 = vadd.f32 %v83, %v320
    %322 = vmatmul.f32.gmra.mxu0 %v211
    %v323 = vpop.f32.mrf.mxu0
    %v324 = vadd.f32 %v83, %v323
    %325 = vmatmul.f32.gmra.mxu0 %v214
    %v326 = vpop.f32.mrf.mxu0
    %v327 = vadd.f32 %v83, %v326
    %328 = vmatmul.f32.gmra.mxu0 %v217
    %v329 = vpop.f32.mrf.mxu0
    %v330 = vadd.f32 %v83, %v329
    %331 = vmatmul.f32.gmra.mxu0 %v220
    %v332 = vpop.f32.mrf.mxu0
    %v333 = vadd.f32 %v83, %v332
    %334 = vmatmul.f32.gmra.mxu0 %v223
    %v335 = vpop.f32.mrf.mxu0
    %v336 = vadd.f32 %v83, %v335
    %337 = vmatmul.f32.gmra.mxu0 %v226
    %v338 = vpop.f32.mrf.mxu0
    %v339 = vadd.f32 %v83, %v338
    %340 = vmatmul.f32.gmra.mxu0 %v229
    %v341 = vpop.f32.mrf.mxu0
    %v342 = vadd.f32 %v83, %v341
    %343 = vmatmul.f32.gmra.mxu0 %v232
    %v344 = vpop.f32.mrf.mxu0
    %v345 = vadd.f32 %v83, %v344
    %346 = vmatmul.f32.gmra.mxu0 %v235
    %v347 = vpop.f32.mrf.mxu0
    %v348 = vadd.f32 %v83, %v347
    %349 = vmatmul.f32.gmra.mxu0 %v238
    %v350 = vpop.f32.mrf.mxu0
    %v351 = vadd.f32 %v83, %v350
    %352 = vmatmul.f32.gmra.mxu0 %v241
    %v353 = vpop.f32.mrf.mxu0
    %v354 = vadd.f32 %v83, %v353
    %355 = vmatmul.f32.gmra.mxu0 %v244
    %v356 = vpop.f32.mrf.mxu0
    %v357 = vadd.f32 %v83, %v356
    %358 = vdwg.mxu0
    %v359 = vmax.f32 %v264, 0.0
    %v360 = vmax.f32 %v267, 0.0
    %v361 = vmax.f32 %v270, 0.0
    %v362 = vmax.f32 %v273, 0.0
    %v363 = vmax.f32 %v276, 0.0
    %v364 = vmax.f32 %v279, 0.0
    %v365 = vmax.f32 %v282, 0.0
    %v366 = vmax.f32 %v285, 0.0
    %v367 = vmax.f32 %v288, 0.0
    %v368 = vmax.f32 %v291, 0.0
    %v369 = vmax.f32 %v294, 0.0
    %v370 = vmax.f32 %v297, 0.0
    %v371 = vmax.f32 %v300, 0.0
    %v372 = vmax.f32 %v303, 0.0
    %v373 = vmax.f32 %v306, 0.0
    %v374 = vmax.f32 %v309, 0.0
    %v375 = vmax.f32 %v312, 0.0
    %v376 = vmax.f32 %v315, 0.0
    %v377 = vmax.f32 %v318, 0.0
    %v378 = vmax.f32 %v321, 0.0
    %v379 = vmax.f32 %v324, 0.0
    %v380 = vmax.f32 %v327, 0.0
    %v381 = vmax.f32 %v330, 0.0
    %v382 = vmax.f32 %v333, 0.0
    %v383 = vmax.f32 %v336, 0.0
    %v384 = vmax.f32 %v339, 0.0
    %v385 = vmax.f32 %v342, 0.0
    %v386 = vmax.f32 %v345, 0.0
    %v387 = vmax.f32 %v348, 0.0
    %v388 = vmax.f32 %v351, 0.0
    %v389 = vmax.f32 %v354, 0.0
    %v390 = vmax.f32 %v357, 0.0
    %v391 = vmin.f32 %v359, 6.0
    %v392 = vmin.f32 %v360, 6.0
    %v393 = vmin.f32 %v361, 6.0
    %v394 = vmin.f32 %v362, 6.0
    %v395 = vmin.f32 %v363, 6.0
    %v396 = vmin.f32 %v364, 6.0
    %v397 = vmin.f32 %v365, 6.0
    %v398 = vmin.f32 %v366, 6.0
    %v399 = vmin.f32 %v367, 6.0
    %v400 = vmin.f32 %v368, 6.0
    %v401 = vmin.f32 %v369, 6.0
    %v402 = vmin.f32 %v370, 6.0
    %v403 = vmin.f32 %v371, 6.0
    %v404 = vmin.f32 %v372, 6.0
    %v405 = vmin.f32 %v373, 6.0
    %v406 = vmin.f32 %v374, 6.0
    %v407 = vmin.f32 %v375, 6.0
    %v408 = vmin.f32 %v376, 6.0
    %v409 = vmin.f32 %v377, 6.0
    %v410 = vmin.f32 %v378, 6.0
    %v411 = vmin.f32 %v379, 6.0
    %v412 = vmin.f32 %v380, 6.0
    %v413 = vmin.f32 %v381, 6.0
    %v414 = vmin.f32 %v382, 6.0
    %v415 = vmin.f32 %v383, 6.0
    %v416 = vmin.f32 %v384, 6.0
    %v417 = vmin.f32 %v385, 6.0
    %v418 = vmin.f32 %v386, 6.0
    %v419 = vmin.f32 %v387, 6.0
    %v420 = vmin.f32 %v388, 6.0
    %v421 = vmin.f32 %v389, 6.0
    %v422 = vmin.f32 %v390, 6.0
    %vm423 = vcmask 392192
    %424 = vst.msk [vmem:[#allocation2] sm:$0xff] %vm423, 0.0
    %425 = vst.msk [vmem:[#allocation2 + $0x8] sm:$0xff] %vm423, 0.0
    %426 = vst.msk [vmem:[#allocation2 + $0x10] sm:$0xff] %vm423, 0.0
    %427 = vst.msk [vmem:[#allocation2 + $0x18] sm:$0xff] %vm423, 0.0
    %s428 = scalar_lea.vmem [#allocation2], 544
    %429 = vst.msk [vmem:[%s428] sm:$0xff] %vm423, 0.0
    %430 = vst.msk [vmem:[%s428 + $0x8] sm:$0xff] %vm423, 0.0
    %431 = vst.msk [vmem:[%s428 + $0x10] sm:$0xff] %vm423, 0.0
    %432 = vst.msk [vmem:[%s428 + $0x18] sm:$0xff] %vm423, 0.0
    %vm433 = vcmask 385024
    %434 = vst.msk [vmem:[#allocation2 + $0x7] sm:$0x1] %vm433, 0.0
    %435 = vst.msk [vmem:[#allocation2 + $0x27] sm:$0x1] %vm433, 0.0
    %436 = vst.msk [vmem:[#allocation2 + $0x47] sm:$0x1] %vm433, 0.0
    %437 = vst.msk [vmem:[#allocation2 + $0x67] sm:$0x1] %vm433, 0.0
    %438 = vst.msk [vmem:[#allocation2 + $0x87] sm:$0x1] %vm433, 0.0
    %439 = vst.msk [vmem:[#allocation2 + $0xa7] sm:$0x1] %vm433, 0.0
    %440 = vst.msk [vmem:[#allocation2 + $0xc7] sm:$0x1] %vm433, 0.0
    %441 = vst.msk [vmem:[#allocation2 + $0xe7] sm:$0x1] %vm433, 0.0
    %442 = vst.msk [vmem:[#allocation2 + $0x107] sm:$0x1] %vm433, 0.0
    %443 = vst.msk [vmem:[#allocation2 + $0x127] sm:$0x1] %vm433, 0.0
    %444 = vst.msk [vmem:[#allocation2 + $0x147] sm:$0x1] %vm433, 0.0
    %445 = vst.msk [vmem:[#allocation2 + $0x167] sm:$0x1] %vm433, 0.0
    %446 = vst.msk [vmem:[#allocation2 + $0x187] sm:$0x1] %vm433, 0.0
    %447 = vst.msk [vmem:[#allocation2 + $0x1a7] sm:$0x1] %vm433, 0.0
    %448 = vst.msk [vmem:[#allocation2 + $0x1c7] sm:$0x1] %vm433, 0.0
    %449 = vst.msk [vmem:[#allocation2 + $0x1e7] sm:$0x1] %vm433, 0.0
    %450 = vst.msk [vmem:[#allocation2 + $0x207] sm:$0x1] %vm433, 0.0
    %451 = vst.msk [vmem:[#allocation2 + $0x227] sm:$0x1] %vm433, 0.0
    %452 = vst.msk [vmem:[#allocation2 + $0x18] sm:$0x1] %vm433, 0.0
    %453 = vst.msk [vmem:[#allocation2 + $0x38] sm:$0x1] %vm433, 0.0
    %454 = vst.msk [vmem:[#allocation2 + $0x58] sm:$0x1] %vm433, 0.0
    %455 = vst.msk [vmem:[#allocation2 + $0x78] sm:$0x1] %vm433, 0.0
    %456 = vst.msk [vmem:[#allocation2 + $0x98] sm:$0x1] %vm433, 0.0
    %457 = vst.msk [vmem:[#allocation2 + $0xb8] sm:$0x1] %vm433, 0.0
    %458 = vst.msk [vmem:[#allocation2 + $0xd8] sm:$0x1] %vm433, 0.0
    %459 = vst.msk [vmem:[#allocation2 + $0xf8] sm:$0x1] %vm433, 0.0
    %460 = vst.msk [vmem:[#allocation2 + $0x118] sm:$0x1] %vm433, 0.0
    %461 = vst.msk [vmem:[#allocation2 + $0x138] sm:$0x1] %vm433, 0.0
    %462 = vst.msk [vmem:[#allocation2 + $0x158] sm:$0x1] %vm433, 0.0
    %463 = vst.msk [vmem:[#allocation2 + $0x178] sm:$0x1] %vm433, 0.0
    %464 = vst.msk [vmem:[#allocation2 + $0x198] sm:$0x1] %vm433, 0.0
    %465 = vst.msk [vmem:[#allocation2 + $0x1b8] sm:$0x1] %vm433, 0.0
    %466 = vst.msk [vmem:[#allocation2 + $0x1d8] sm:$0x1] %vm433, 0.0
    %467 = vst.msk [vmem:[#allocation2 + $0x1f8] sm:$0x1] %vm433, 0.0
    %468 = vst.msk [vmem:[#allocation2 + $0x218] sm:$0x1] %vm433, 0.0
    %469 = vst.msk [vmem:[#allocation2 + $0x238] sm:$0x1] %vm433, 0.0
    %s470 = scalar_lea.vmem [#allocation2], 32
    %471 = vst.msk [vmem:[%s470 + $0x8] sm:$0xff] %vm423, %v391
    %472 = vst.msk [vmem:[%s470 + $0x10] sm:$0xff] %vm423, %v392
    %473 = vst.msk [vmem:[%s470 + $0x28] sm:$0xff] %vm423, %v393
    %474 = vst.msk [vmem:[%s470 + $0x30] sm:$0xff] %vm423, %v394
    %475 = vst.msk [vmem:[%s470 + $0x48] sm:$0xff] %vm423, %v395
    %476 = vst.msk [vmem:[%s470 + $0x50] sm:$0xff] %vm423, %v396
    %477 = vst.msk [vmem:[%s470 + $0x68] sm:$0xff] %vm423, %v397
    %478 = vst.msk [vmem:[%s470 + $0x70] sm:$0xff] %vm423, %v398
    %479 = vst.msk [vmem:[%s470 + $0x88] sm:$0xff] %vm423, %v399
    %480 = vst.msk [vmem:[%s470 + $0x90] sm:$0xff] %vm423, %v400
    %481 = vst.msk [vmem:[%s470 + $0xa8] sm:$0xff] %vm423, %v401
    %482 = vst.msk [vmem:[%s470 + $0xb0] sm:$0xff] %vm423, %v402
    %483 = vst.msk [vmem:[%s470 + $0xc8] sm:$0xff] %vm423, %v403
    %484 = vst.msk [vmem:[%s470 + $0xd0] sm:$0xff] %vm423, %v404
    %485 = vst.msk [vmem:[%s470 + $0xe8] sm:$0xff] %vm423, %v405
    %486 = vst.msk [vmem:[%s470 + $0xf0] sm:$0xff] %vm423, %v406
    %487 = vst.msk [vmem:[%s470 + $0x108] sm:$0xff] %vm423, %v407
    %488 = vst.msk [vmem:[%s470 + $0x110] sm:$0xff] %vm423, %v408
    %489 = vst.msk [vmem:[%s470 + $0x128] sm:$0xff] %vm423, %v409
    %490 = vst.msk [vmem:[%s470 + $0x130] sm:$0xff] %vm423, %v410
    %491 = vst.msk [vmem:[%s470 + $0x148] sm:$0xff] %vm423, %v411
    %492 = vst.msk [vmem:[%s470 + $0x150] sm:$0xff] %vm423, %v412
    %493 = vst.msk [vmem:[%s470 + $0x168] sm:$0xff] %vm423, %v413
    %494 = vst.msk [vmem:[%s470 + $0x170] sm:$0xff] %vm423, %v414
    %495 = vst.msk [vmem:[%s470 + $0x188] sm:$0xff] %vm423, %v415
    %496 = vst.msk [vmem:[%s470 + $0x190] sm:$0xff] %vm423, %v416
    %497 = vst.msk [vmem:[%s470 + $0x1a8] sm:$0xff] %vm423, %v417
    %498 = vst.msk [vmem:[%s470 + $0x1b0] sm:$0xff] %vm423, %v418
    %499 = vst.msk [vmem:[%s470 + $0x1c8] sm:$0xff] %vm423, %v419
    %500 = vst.msk [vmem:[%s470 + $0x1d0] sm:$0xff] %vm423, %v420
    %501 = vst.msk [vmem:[%s470 + $0x1e8] sm:$0xff] %vm423, %v421
    %502 = vst.msk [vmem:[%s470 + $0x1f0] sm:$0xff] %vm423, %v422
    %v503 = vld [vmem:[#allocation2 + $0x7] sm:$0xff]
    %v504 = vld [vmem:[#allocation2 + $0xf] sm:$0xff]
    %v505 = vld [vmem:[#allocation2 + $0x27] sm:$0xff]
    %v506 = vld [vmem:[#allocation2 + $0x2f] sm:$0xff]
    %v507 = vld [vmem:[#allocation2 + $0x47] sm:$0xff]
    %v508 = vld [vmem:[#allocation2 + $0x4f] sm:$0xff]
    %v509 = vld [vmem:[#allocation2 + $0x67] sm:$0xff]
    %v510 = vld [vmem:[#allocation2 + $0x6f] sm:$0xff]
    %v511 = vld [vmem:[#allocation2 + $0x87] sm:$0xff]
    %v512 = vld [vmem:[#allocation2 + $0x8f] sm:$0xff]
    %v513 = vld [vmem:[#allocation2 + $0xa7] sm:$0xff]
    %v514 = vld [vmem:[#allocation2 + $0xaf] sm:$0xff]
    %v515 = vld [vmem:[#allocation2 + $0xc7] sm:$0xff]
    %v516 = vld [vmem:[#allocation2 + $0xcf] sm:$0xff]
    %v517 = vld [vmem:[#allocation2 + $0xe7] sm:$0xff]
    %v518 = vld [vmem:[#allocation2 + $0xef] sm:$0xff]
    %v519 = vld [vmem:[#allocation2 + $0x107] sm:$0xff]
    %v520 = vld [vmem:[#allocation2 + $0x10f] sm:$0xff]
    %v521 = vld [vmem:[#allocation2 + $0x127] sm:$0xff]
    %v522 = vld [vmem:[#allocation2 + $0x12f] sm:$0xff]
    %v523 = vld [vmem:[#allocation2 + $0x147] sm:$0xff]
    %v524 = vld [vmem:[#allocation2 + $0x14f] sm:$0xff]
    %v525 = vld [vmem:[#allocation2 + $0x167] sm:$0xff]
    %v526 = vld [vmem:[#allocation2 + $0x16f] sm:$0xff]
    %v527 = vld [vmem:[#allocation2 + $0x187] sm:$0xff]
    %v528 = vld [vmem:[#allocation2 + $0x18f] sm:$0xff]
    %v529 = vld [vmem:[#allocation2 + $0x1a7] sm:$0xff]
    %v530 = vld [vmem:[#allocation2 + $0x1af] sm:$0xff]
    %v531 = vld [vmem:[#allocation2 + $0x1c7] sm:$0xff]
    %v532 = vld [vmem:[#allocation2 + $0x1cf] sm:$0xff]
    %v533 = vld [vmem:[#allocation2 + $0x1e7] sm:$0xff]
    %v534 = vld [vmem:[#allocation2 + $0x1ef] sm:$0xff]
    %v535 = vperm.slane %v74, 0
    %v536 = vmul.f32 %v503, %v535
    %v537 = vmul.f32 %v504, %v535
    %v538 = vmul.f32 %v505, %v535
    %v539 = vmul.f32 %v506, %v535
    %v540 = vmul.f32 %v507, %v535
    %v541 = vmul.f32 %v508, %v535
    %v542 = vmul.f32 %v509, %v535
    %v543 = vmul.f32 %v510, %v535
    %v544 = vmul.f32 %v511, %v535
    %v545 = vmul.f32 %v512, %v535
    %v546 = vmul.f32 %v513, %v535
    %v547 = vmul.f32 %v514, %v535
    %v548 = vmul.f32 %v515, %v535
    %v549 = vmul.f32 %v516, %v535
    %v550 = vmul.f32 %v517, %v535
    %v551 = vmul.f32 %v518, %v535
    %v552 = vmul.f32 %v519, %v535
    %v553 = vmul.f32 %v520, %v535
    %v554 = vmul.f32 %v521, %v535
    %v555 = vmul.f32 %v522, %v535
    %v556 = vmul.f32 %v523, %v535
    %v557 = vmul.f32 %v524, %v535
    %v558 = vmul.f32 %v525, %v535
    %v559 = vmul.f32 %v526, %v535
    %v560 = vmul.f32 %v527, %v535
    %v561 = vmul.f32 %v528, %v535
    %v562 = vmul.f32 %v529, %v535
    %v563 = vmul.f32 %v530, %v535
    %v564 = vmul.f32 %v531, %v535
    %v565 = vmul.f32 %v532, %v535
    %v566 = vmul.f32 %v533, %v535
    %v567 = vmul.f32 %v534, %v535
    %v568 = vadd.f32 %v536, 0.0
    %v569 = vadd.f32 %v537, 0.0
    %v570 = vadd.f32 %v538, 0.0
    %v571 = vadd.f32 %v539, 0.0
    %v572 = vadd.f32 %v540, 0.0
    %v573 = vadd.f32 %v541, 0.0
    %v574 = vadd.f32 %v542, 0.0
    %v575 = vadd.f32 %v543, 0.0
    %v576 = vadd.f32 %v544, 0.0
    %v577 = vadd.f32 %v545, 0.0
    %v578 = vadd.f32 %v546, 0.0
    %v579 = vadd.f32 %v547, 0.0
    %v580 = vadd.f32 %v548, 0.0
    %v581 = vadd.f32 %v549, 0.0
    %v582 = vadd.f32 %v550, 0.0
    %v583 = vadd.f32 %v551, 0.0
    %v584 = vadd.f32 %v552, 0.0
    %v585 = vadd.f32 %v553, 0.0
    %v586 = vadd.f32 %v554, 0.0
    %v587 = vadd.f32 %v555, 0.0
    %v588 = vadd.f32 %v556, 0.0
    %v589 = vadd.f32 %v557, 0.0
    %v590 = vadd.f32 %v558, 0.0
    %v591 = vadd.f32 %v559, 0.0
    %v592 = vadd.f32 %v560, 0.0
    %v593 = vadd.f32 %v561, 0.0
    %v594 = vadd.f32 %v562, 0.0
    %v595 = vadd.f32 %v563, 0.0
    %v596 = vadd.f32 %v564, 0.0
    %v597 = vadd.f32 %v565, 0.0
    %v598 = vadd.f32 %v566, 0.0
    %v599 = vadd.f32 %v567, 0.0
    %v600 = vld [vmem:[#allocation2 + $0x8] sm:$0xff]
    %v601 = vld [vmem:[#allocation2 + $0x10] sm:$0xff]
    %v602 = vld [vmem:[#allocation2 + $0x28] sm:$0xff]
    %v603 = vld [vmem:[#allocation2 + $0x30] sm:$0xff]
    %v604 = vld [vmem:[#allocation2 + $0x48] sm:$0xff]
    %v605 = vld [vmem:[#allocation2 + $0x50] sm:$0xff]
    %v606 = vld [vmem:[#allocation2 + $0x68] sm:$0xff]
    %v607 = vld [vmem:[#allocation2 + $0x70] sm:$0xff]
    %v608 = vld [vmem:[#allocation2 + $0x88] sm:$0xff]
    %v609 = vld [vmem:[#allocation2 + $0x90] sm:$0xff]
    %v610 = vld [vmem:[#allocation2 + $0xa8] sm:$0xff]
    %v611 = vld [vmem:[#allocation2 + $0xb0] sm:$0xff]
    %v612 = vld [vmem:[#allocation2 + $0xc8] sm:$0xff]
    %v613 = vld [vmem:[#allocation2 + $0xd0] sm:$0xff]
    %v614 = vld [vmem:[#allocation2 + $0xe8] sm:$0xff]
    %v615 = vld [vmem:[#allocation2 + $0xf0] sm:$0xff]
    %v616 = vld [vmem:[#allocation2 + $0x108] sm:$0xff]
    %v617 = vld [vmem:[#allocation2 + $0x110] sm:$0xff]
    %v618 = vld [vmem:[#allocation2 + $0x128] sm:$0xff]
    %v619 = vld [vmem:[#allocation2 + $0x130] sm:$0xff]
    %v620 = vld [vmem:[#allocation2 + $0x148] sm:$0xff]
    %v621 = vld [vmem:[#allocation2 + $0x150] sm:$0xff]
    %v622 = vld [vmem:[#allocation2 + $0x168] sm:$0xff]
    %v623 = vld [vmem:[#allocation2 + $0x170] sm:$0xff]
    %v624 = vld [vmem:[#allocation2 + $0x188] sm:$0xff]
    %v625 = vld [vmem:[#allocation2 + $0x190] sm:$0xff]
    %v626 = vld [vmem:[#allocation2 + $0x1a8] sm:$0xff]
    %v627 = vld [vmem:[#allocation2 + $0x1b0] sm:$0xff]
    %v628 = vld [vmem:[#allocation2 + $0x1c8] sm:$0xff]
    %v629 = vld [vmem:[#allocation2 + $0x1d0] sm:$0xff]
    %v630 = vld [vmem:[#allocation2 + $0x1e8] sm:$0xff]
    %v631 = vld [vmem:[#allocation2 + $0x1f0] sm:$0xff]
    %v632 = vperm.slane %v74, 1
    %v633 = vmul.f32 %v600, %v632
    %v634 = vmul.f32 %v601, %v632
    %v635 = vmul.f32 %v602, %v632
    %v636 = vmul.f32 %v603, %v632
    %v637 = vmul.f32 %v604, %v632
    %v638 = vmul.f32 %v605, %v632
    %v639 = vmul.f32 %v606, %v632
    %v640 = vmul.f32 %v607, %v632
    %v641 = vmul.f32 %v608, %v632
    %v642 = vmul.f32 %v609, %v632
    %v643 = vmul.f32 %v610, %v632
    %v644 = vmul.f32 %v611, %v632
    %v645 = vmul.f32 %v612, %v632
    %v646 = vmul.f32 %v613, %v632
    %v647 = vmul.f32 %v614, %v632
    %v648 = vmul.f32 %v615, %v632
    %v649 = vmul.f32 %v616, %v632
    %v650 = vmul.f32 %v617, %v632
    %v651 = vmul.f32 %v618, %v632
    %v652 = vmul.f32 %v619, %v632
    %v653 = vmul.f32 %v620, %v632
    %v654 = vmul.f32 %v621, %v632
    %v655 = vmul.f32 %v622, %v632
    %v656 = vmul.f32 %v623, %v632
    %v657 = vmul.f32 %v624, %v632
    %v658 = vmul.f32 %v625, %v632
    %v659 = vmul.f32 %v626, %v632
    %v660 = vmul.f32 %v627, %v632
    %v661 = vmul.f32 %v628, %v632
    %v662 = vmul.f32 %v629, %v632
    %v663 = vmul.f32 %v630, %v632
    %v664 = vmul.f32 %v631, %v632
    %v665 = vadd.f32 %v568, %v633
    %v666 = vadd.f32 %v569, %v634
    %v667 = vadd.f32 %v570, %v635
    %v668 = vadd.f32 %v571, %v636
    %v669 = vadd.f32 %v572, %v637
    %v670 = vadd.f32 %v573, %v638
    %v671 = vadd.f32 %v574, %v639
    %v672 = vadd.f32 %v575, %v640
    %v673 = vadd.f32 %v576, %v641
    %v674 = vadd.f32 %v577, %v642
    %v675 = vadd.f32 %v578, %v643
    %v676 = vadd.f32 %v579, %v644
    %v677 = vadd.f32 %v580, %v645
    %v678 = vadd.f32 %v581, %v646
    %v679 = vadd.f32 %v582, %v647
    %v680 = vadd.f32 %v583, %v648
    %v681 = vadd.f32 %v584, %v649
    %v682 = vadd.f32 %v585, %v650
    %v683 = vadd.f32 %v586, %v651
    %v684 = vadd.f32 %v587, %v652
    %v685 = vadd.f32 %v588, %v653
    %v686 = vadd.f32 %v589, %v654
    %v687 = vadd.f32 %v590, %v655
    %v688 = vadd.f32 %v591, %v656
    %v689 = vadd.f32 %v592, %v657
    %v690 = vadd.f32 %v593, %v658
    %v691 = vadd.f32 %v594, %v659
    %v692 = vadd.f32 %v595, %v660
    %v693 = vadd.f32 %v596, %v661
    %v694 = vadd.f32 %v597, %v662
    %v695 = vadd.f32 %v598, %v663
    %v696 = vadd.f32 %v599, %v664
    %v697 = vld [vmem:[#allocation2 + $0x9] sm:$0xff]
    %v698 = vld [vmem:[#allocation2 + $0x11] sm:$0xff]
    %v699 = vld [vmem:[#allocation2 + $0x29] sm:$0xff]
    %v700 = vld [vmem:[#allocation2 + $0x31] sm:$0xff]
    %v701 = vld [vmem:[#allocation2 + $0x49] sm:$0xff]
    %v702 = vld [vmem:[#allocation2 + $0x51] sm:$0xff]
    %v703 = vld [vmem:[#allocation2 + $0x69] sm:$0xff]
    %v704 = vld [vmem:[#allocation2 + $0x71] sm:$0xff]
    %v705 = vld [vmem:[#allocation2 + $0x89] sm:$0xff]
    %v706 = vld [vmem:[#allocation2 + $0x91] sm:$0xff]
    %v707 = vld [vmem:[#allocation2 + $0xa9] sm:$0xff]
    %v708 = vld [vmem:[#allocation2 + $0xb1] sm:$0xff]
    %v709 = vld [vmem:[#allocation2 + $0xc9] sm:$0xff]
    %v710 = vld [vmem:[#allocation2 + $0xd1] sm:$0xff]
    %v711 = vld [vmem:[#allocation2 + $0xe9] sm:$0xff]
    %v712 = vld [vmem:[#allocation2 + $0xf1] sm:$0xff]
    %v713 = vld [vmem:[#allocation2 + $0x109] sm:$0xff]
    %v714 = vld [vmem:[#allocation2 + $0x111] sm:$0xff]
    %v715 = vld [vmem:[#allocation2 + $0x129] sm:$0xff]
    %v716 = vld [vmem:[#allocation2 + $0x131] sm:$0xff]
    %v717 = vld [vmem:[#allocation2 + $0x149] sm:$0xff]
    %v718 = vld [vmem:[#allocation2 + $0x151] sm:$0xff]
    %v719 = vld [vmem:[#allocation2 + $0x169] sm:$0xff]
    %v720 = vld [vmem:[#allocation2 + $0x171] sm:$0xff]
    %v721 = vld [vmem:[#allocation2 + $0x189] sm:$0xff]
    %v722 = vld [vmem:[#allocation2 + $0x191] sm:$0xff]
    %v723 = vld [vmem:[#allocation2 + $0x1a9] sm:$0xff]
    %v724 = vld [vmem:[#allocation2 + $0x1b1] sm:$0xff]
    %v725 = vld [vmem:[#allocation2 + $0x1c9] sm:$0xff]
    %v726 = vld [vmem:[#allocation2 + $0x1d1] sm:$0xff]
    %v727 = vld [vmem:[#allocation2 + $0x1e9] sm:$0xff]
    %v728 = vld [vmem:[#allocation2 + $0x1f1] sm:$0xff]
    %v729 = vperm.slane %v74, 2
    %v730 = vmul.f32 %v697, %v729
    %v731 = vmul.f32 %v698, %v729
    %v732 = vmul.f32 %v699, %v729
    %v733 = vmul.f32 %v700, %v729
    %v734 = vmul.f32 %v701, %v729
    %v735 = vmul.f32 %v702, %v729
    %v736 = vmul.f32 %v703, %v729
    %v737 = vmul.f32 %v704, %v729
    %v738 = vmul.f32 %v705, %v729
    %v739 = vmul.f32 %v706, %v729
    %v740 = vmul.f32 %v707, %v729
    %v741 = vmul.f32 %v708, %v729
    %v742 = vmul.f32 %v709, %v729
    %v743 = vmul.f32 %v710, %v729
    %v744 = vmul.f32 %v711, %v729
    %v745 = vmul.f32 %v712, %v729
    %v746 = vmul.f32 %v713, %v729
    %v747 = vmul.f32 %v714, %v729
    %v748 = vmul.f32 %v715, %v729
    %v749 = vmul.f32 %v716, %v729
    %v750 = vmul.f32 %v717, %v729
    %v751 = vmul.f32 %v718, %v729
    %v752 = vmul.f32 %v719, %v729
    %v753 = vmul.f32 %v720, %v729
    %v754 = vmul.f32 %v721, %v729
    %v755 = vmul.f32 %v722, %v729
    %v756 = vmul.f32 %v723, %v729
    %v757 = vmul.f32 %v724, %v729
    %v758 = vmul.f32 %v725, %v729
    %v759 = vmul.f32 %v726, %v729
    %v760 = vmul.f32 %v727, %v729
    %v761 = vmul.f32 %v728, %v729
    %v762 = vadd.f32 %v665, %v730
    %v763 = vadd.f32 %v666, %v731
    %v764 = vadd.f32 %v667, %v732
    %v765 = vadd.f32 %v668, %v733
    %v766 = vadd.f32 %v669, %v734
    %v767 = vadd.f32 %v670, %v735
    %v768 = vadd.f32 %v671, %v736
    %v769 = vadd.f32 %v672, %v737
    %v770 = vadd.f32 %v673, %v738
    %v771 = vadd.f32 %v674, %v739
    %v772 = vadd.f32 %v675, %v740
    %v773 = vadd.f32 %v676, %v741
    %v774 = vadd.f32 %v677, %v742
    %v775 = vadd.f32 %v678, %v743
    %v776 = vadd.f32 %v679, %v744
    %v777 = vadd.f32 %v680, %v745
    %v778 = vadd.f32 %v681, %v746
    %v779 = vadd.f32 %v682, %v747
    %v780 = vadd.f32 %v683, %v748
    %v781 = vadd.f32 %v684, %v749
    %v782 = vadd.f32 %v685, %v750
    %v783 = vadd.f32 %v686, %v751
    %v784 = vadd.f32 %v687, %v752
    %v785 = vadd.f32 %v688, %v753
    %v786 = vadd.f32 %v689, %v754
    %v787 = vadd.f32 %v690, %v755
    %v788 = vadd.f32 %v691, %v756
    %v789 = vadd.f32 %v692, %v757
    %v790 = vadd.f32 %v693, %v758
    %v791 = vadd.f32 %v694, %v759
    %v792 = vadd.f32 %v695, %v760
    %v793 = vadd.f32 %v696, %v761
    %v794 = vld [vmem:[%s470 + $0x7] sm:$0xff]
    %v795 = vld [vmem:[%s470 + $0xf] sm:$0xff]
    %v796 = vld [vmem:[%s470 + $0x27] sm:$0xff]
    %v797 = vld [vmem:[%s470 + $0x2f] sm:$0xff]
    %v798 = vld [vmem:[%s470 + $0x47] sm:$0xff]
    %v799 = vld [vmem:[%s470 + $0x4f] sm:$0xff]
    %v800 = vld [vmem:[%s470 + $0x67] sm:$0xff]
    %v801 = vld [vmem:[%s470 + $0x6f] sm:$0xff]
    %v802 = vld [vmem:[%s470 + $0x87] sm:$0xff]
    %v803 = vld [vmem:[%s470 + $0x8f] sm:$0xff]
    %v804 = vld [vmem:[%s470 + $0xa7] sm:$0xff]
    %v805 = vld [vmem:[%s470 + $0xaf] sm:$0xff]
    %v806 = vld [vmem:[%s470 + $0xc7] sm:$0xff]
    %v807 = vld [vmem:[%s470 + $0xcf] sm:$0xff]
    %v808 = vld [vmem:[%s470 + $0xe7] sm:$0xff]
    %v809 = vld [vmem:[%s470 + $0xef] sm:$0xff]
    %v810 = vld [vmem:[%s470 + $0x107] sm:$0xff]
    %v811 = vld [vmem:[%s470 + $0x10f] sm:$0xff]
    %v812 = vld [vmem:[%s470 + $0x127] sm:$0xff]
    %v813 = vld [vmem:[%s470 + $0x12f] sm:$0xff]
    %v814 = vld [vmem:[%s470 + $0x147] sm:$0xff]
    %v815 = vld [vmem:[%s470 + $0x14f] sm:$0xff]
    %v816 = vld [vmem:[%s470 + $0x167] sm:$0xff]
    %v817 = vld [vmem:[%s470 + $0x16f] sm:$0xff]
    %v818 = vld [vmem:[%s470 + $0x187] sm:$0xff]
    %v819 = vld [vmem:[%s470 + $0x18f] sm:$0xff]
    %v820 = vld [vmem:[%s470 + $0x1a7] sm:$0xff]
    %v821 = vld [vmem:[%s470 + $0x1af] sm:$0xff]
    %v822 = vld [vmem:[%s470 + $0x1c7] sm:$0xff]
    %v823 = vld [vmem:[%s470 + $0x1cf] sm:$0xff]
    %v824 = vld [vmem:[%s470 + $0x1e7] sm:$0xff]
    %v825 = vld [vmem:[%s470 + $0x1ef] sm:$0xff]
    %v826 = vperm.slane %v75, 0
    %v827 = vmul.f32 %v794, %v826
    %v828 = vmul.f32 %v795, %v826
    %v829 = vmul.f32 %v796, %v826
    %v830 = vmul.f32 %v797, %v826
    %v831 = vmul.f32 %v798, %v826
    %v832 = vmul.f32 %v799, %v826
    %v833 = vmul.f32 %v800, %v826
    %v834 = vmul.f32 %v801, %v826
    %v835 = vmul.f32 %v802, %v826
    %v836 = vmul.f32 %v803, %v826
    %v837 = vmul.f32 %v804, %v826
    %v838 = vmul.f32 %v805, %v826
    %v839 = vmul.f32 %v806, %v826
    %v840 = vmul.f32 %v807, %v826
    %v841 = vmul.f32 %v808, %v826
    %v842 = vmul.f32 %v809, %v826
    %v843 = vmul.f32 %v810, %v826
    %v844 = vmul.f32 %v811, %v826
    %v845 = vmul.f32 %v812, %v826
    %v846 = vmul.f32 %v813, %v826
    %v847 = vmul.f32 %v814, %v826
    %v848 = vmul.f32 %v815, %v826
    %v849 = vmul.f32 %v816, %v826
    %v850 = vmul.f32 %v817, %v826
    %v851 = vmul.f32 %v818, %v826
    %v852 = vmul.f32 %v819, %v826
    %v853 = vmul.f32 %v820, %v826
    %v854 = vmul.f32 %v821, %v826
    %v855 = vmul.f32 %v822, %v826
    %v856 = vmul.f32 %v823, %v826
    %v857 = vmul.f32 %v824, %v826
    %v858 = vmul.f32 %v825, %v826
    %v859 = vadd.f32 %v762, %v827
    %v860 = vadd.f32 %v763, %v828
    %v861 = vadd.f32 %v764, %v829
    %v862 = vadd.f32 %v765, %v830
    %v863 = vadd.f32 %v766, %v831
    %v864 = vadd.f32 %v767, %v832
    %v865 = vadd.f32 %v768, %v833
    %v866 = vadd.f32 %v769, %v834
    %v867 = vadd.f32 %v770, %v835
    %v868 = vadd.f32 %v771, %v836
    %v869 = vadd.f32 %v772, %v837
    %v870 = vadd.f32 %v773, %v838
    %v871 = vadd.f32 %v774, %v839
    %v872 = vadd.f32 %v775, %v840
    %v873 = vadd.f32 %v776, %v841
    %v874 = vadd.f32 %v777, %v842
    %v875 = vadd.f32 %v778, %v843
    %v876 = vadd.f32 %v779, %v844
    %v877 = vadd.f32 %v780, %v845
    %v878 = vadd.f32 %v781, %v846
    %v879 = vadd.f32 %v782, %v847
    %v880 = vadd.f32 %v783, %v848
    %v881 = vadd.f32 %v784, %v849
    %v882 = vadd.f32 %v785, %v850
    %v883 = vadd.f32 %v786, %v851
    %v884 = vadd.f32 %v787, %v852
    %v885 = vadd.f32 %v788, %v853
    %v886 = vadd.f32 %v789, %v854
    %v887 = vadd.f32 %v790, %v855
    %v888 = vadd.f32 %v791, %v856
    %v889 = vadd.f32 %v792, %v857
    %v890 = vadd.f32 %v793, %v858
    %v891 = vld [vmem:[%s470 + $0x8] sm:$0xff]
    %v892 = vld [vmem:[%s470 + $0x10] sm:$0xff]
    %v893 = vld [vmem:[%s470 + $0x28] sm:$0xff]
    %v894 = vld [vmem:[%s470 + $0x30] sm:$0xff]
    %v895 = vld [vmem:[%s470 + $0x48] sm:$0xff]
    %v896 = vld [vmem:[%s470 + $0x50] sm:$0xff]
    %v897 = vld [vmem:[%s470 + $0x68] sm:$0xff]
    %v898 = vld [vmem:[%s470 + $0x70] sm:$0xff]
    %v899 = vld [vmem:[%s470 + $0x88] sm:$0xff]
    %v900 = vld [vmem:[%s470 + $0x90] sm:$0xff]
    %v901 = vld [vmem:[%s470 + $0xa8] sm:$0xff]
    %v902 = vld [vmem:[%s470 + $0xb0] sm:$0xff]
    %v903 = vld [vmem:[%s470 + $0xc8] sm:$0xff]
    %v904 = vld [vmem:[%s470 + $0xd0] sm:$0xff]
    %v905 = vld [vmem:[%s470 + $0xe8] sm:$0xff]
    %v906 = vld [vmem:[%s470 + $0xf0] sm:$0xff]
    %v907 = vld [vmem:[%s470 + $0x108] sm:$0xff]
    %v908 = vld [vmem:[%s470 + $0x110] sm:$0xff]
    %v909 = vld [vmem:[%s470 + $0x128] sm:$0xff]
    %v910 = vld [vmem:[%s470 + $0x130] sm:$0xff]
    %v911 = vld [vmem:[%s470 + $0x148] sm:$0xff]
    %v912 = vld [vmem:[%s470 + $0x150] sm:$0xff]
    %v913 = vld [vmem:[%s470 + $0x168] sm:$0xff]
    %v914 = vld [vmem:[%s470 + $0x170] sm:$0xff]
    %v915 = vld [vmem:[%s470 + $0x188] sm:$0xff]
    %v916 = vld [vmem:[%s470 + $0x190] sm:$0xff]
    %v917 = vld [vmem:[%s470 + $0x1a8] sm:$0xff]
    %v918 = vld [vmem:[%s470 + $0x1b0] sm:$0xff]
    %v919 = vld [vmem:[%s470 + $0x1c8] sm:$0xff]
    %v920 = vld [vmem:[%s470 + $0x1d0] sm:$0xff]
    %v921 = vld [vmem:[%s470 + $0x1e8] sm:$0xff]
    %v922 = vld [vmem:[%s470 + $0x1f0] sm:$0xff]
    %v923 = vperm.slane %v75, 1
    %v924 = vmul.f32 %v891, %v923
    %v925 = vmul.f32 %v892, %v923
    %v926 = vmul.f32 %v893, %v923
    %v927 = vmul.f32 %v894, %v923
    %v928 = vmul.f32 %v895, %v923
    %v929 = vmul.f32 %v896, %v923
    %v930 = vmul.f32 %v897, %v923
    %v931 = vmul.f32 %v898, %v923
    %v932 = vmul.f32 %v899, %v923
    %v933 = vmul.f32 %v900, %v923
    %v934 = vmul.f32 %v901, %v923
    %v935 = vmul.f32 %v902, %v923
    %v936 = vmul.f32 %v903, %v923
    %v937 = vmul.f32 %v904, %v923
    %v938 = vmul.f32 %v905, %v923
    %v939 = vmul.f32 %v906, %v923
    %v940 = vmul.f32 %v907, %v923
    %v941 = vmul.f32 %v908, %v923
    %v942 = vmul.f32 %v909, %v923
    %v943 = vmul.f32 %v910, %v923
    %v944 = vmul.f32 %v911, %v923
    %v945 = vmul.f32 %v912, %v923
    %v946 = vmul.f32 %v913, %v923
    %v947 = vmul.f32 %v914, %v923
    %v948 = vmul.f32 %v915, %v923
    %v949 = vmul.f32 %v916, %v923
    %v950 = vmul.f32 %v917, %v923
    %v951 = vmul.f32 %v918, %v923
    %v952 = vmul.f32 %v919, %v923
    %v953 = vmul.f32 %v920, %v923
    %v954 = vmul.f32 %v921, %v923
    %v955 = vmul.f32 %v922, %v923
    %v956 = vadd.f32 %v859, %v924
    %v957 = vadd.f32 %v860, %v925
    %v958 = vadd.f32 %v861, %v926
    %v959 = vadd.f32 %v862, %v927
    %v960 = vadd.f32 %v863, %v928
    %v961 = vadd.f32 %v864, %v929
    %v962 = vadd.f32 %v865, %v930
    %v963 = vadd.f32 %v866, %v931
    %v964 = vadd.f32 %v867, %v932
    %v965 = vadd.f32 %v868, %v933
    %v966 = vadd.f32 %v869, %v934
    %v967 = vadd.f32 %v870, %v935
    %v968 = vadd.f32 %v871, %v936
    %v969 = vadd.f32 %v872, %v937
    %v970 = vadd.f32 %v873, %v938
    %v971 = vadd.f32 %v874, %v939
    %v972 = vadd.f32 %v875, %v940
    %v973 = vadd.f32 %v876, %v941
    %v974 = vadd.f32 %v877, %v942
    %v975 = vadd.f32 %v878, %v943
    %v976 = vadd.f32 %v879, %v944
    %v977 = vadd.f32 %v880, %v945
    %v978 = vadd.f32 %v881, %v946
    %v979 = vadd.f32 %v882, %v947
    %v980 = vadd.f32 %v883, %v948
    %v981 = vadd.f32 %v884, %v949
    %v982 = vadd.f32 %v885, %v950
    %v983 = vadd.f32 %v886, %v951
    %v984 = vadd.f32 %v887, %v952
    %v985 = vadd.f32 %v888, %v953
    %v986 = vadd.f32 %v889, %v954
    %v987 = vadd.f32 %v890, %v955
    %v988 = vld [vmem:[%s470 + $0x9] sm:$0xff]
    %v989 = vld [vmem:[%s470 + $0x11] sm:$0xff]
    %v990 = vld [vmem:[%s470 + $0x29] sm:$0xff]
    %v991 = vld [vmem:[%s470 + $0x31] sm:$0xff]
    %v992 = vld [vmem:[%s470 + $0x49] sm:$0xff]
    %v993 = vld [vmem:[%s470 + $0x51] sm:$0xff]
    %v994 = vld [vmem:[%s470 + $0x69] sm:$0xff]
    %v995 = vld [vmem:[%s470 + $0x71] sm:$0xff]
    %v996 = vld [vmem:[%s470 + $0x89] sm:$0xff]
    %v997 = vld [vmem:[%s470 + $0x91] sm:$0xff]
    %v998 = vld [vmem:[%s470 + $0xa9] sm:$0xff]
    %v999 = vld [vmem:[%s470 + $0xb1] sm:$0xff]
    %v1000 = vld [vmem:[%s470 + $0xc9] sm:$0xff]
    %v1001 = vld [vmem:[%s470 + $0xd1] sm:$0xff]
    %v1002 = vld [vmem:[%s470 + $0xe9] sm:$0xff]
    %v1003 = vld [vmem:[%s470 + $0xf1] sm:$0xff]
    %v1004 = vld [vmem:[%s470 + $0x109] sm:$0xff]
    %v1005 = vld [vmem:[%s470 + $0x111] sm:$0xff]
    %v1006 = vld [vmem:[%s470 + $0x129] sm:$0xff]
    %v1007 = vld [vmem:[%s470 + $0x131] sm:$0xff]
    %v1008 = vld [vmem:[%s470 + $0x149] sm:$0xff]
    %v1009 = vld [vmem:[%s470 + $0x151] sm:$0xff]
    %v1010 = vld [vmem:[%s470 + $0x169] sm:$0xff]
    %v1011 = vld [vmem:[%s470 + $0x171] sm:$0xff]
    %v1012 = vld [vmem:[%s470 + $0x189] sm:$0xff]
    %v1013 = vld [vmem:[%s470 + $0x191] sm:$0xff]
    %v1014 = vld [vmem:[%s470 + $0x1a9] sm:$0xff]
    %v1015 = vld [vmem:[%s470 + $0x1b1] sm:$0xff]
    %v1016 = vld [vmem:[%s470 + $0x1c9] sm:$0xff]
    %v1017 = vld [vmem:[%s470 + $0x1d1] sm:$0xff]
    %v1018 = vld [vmem:[%s470 + $0x1e9] sm:$0xff]
    %v1019 = vld [vmem:[%s470 + $0x1f1] sm:$0xff]
    %v1020 = vperm.slane %v75, 2
    %v1021 = vmul.f32 %v988, %v1020
    %v1022 = vmul.f32 %v989, %v1020
    %v1023 = vmul.f32 %v990, %v1020
    %v1024 = vmul.f32 %v991, %v1020
    %v1025 = vmul.f32 %v992, %v1020
    %v1026 = vmul.f32 %v993, %v1020
    %v1027 = vmul.f32 %v994, %v1020
    %v1028 = vmul.f32 %v995, %v1020
    %v1029 = vmul.f32 %v996, %v1020
    %v1030 = vmul.f32 %v997, %v1020
    %v1031 = vmul.f32 %v998, %v1020
    %v1032 = vmul.f32 %v999, %v1020
    %v1033 = vmul.f32 %v1000, %v1020
    %v1034 = vmul.f32 %v1001, %v1020
    %v1035 = vmul.f32 %v1002, %v1020
    %v1036 = vmul.f32 %v1003, %v1020
    %v1037 = vmul.f32 %v1004, %v1020
    %v1038 = vmul.f32 %v1005, %v1020
    %v1039 = vmul.f32 %v1006, %v1020
    %v1040 = vmul.f32 %v1007, %v1020
    %v1041 = vmul.f32 %v1008, %v1020
    %v1042 = vmul.f32 %v1009, %v1020
    %v1043 = vmul.f32 %v1010, %v1020
    %v1044 = vmul.f32 %v1011, %v1020
    %v1045 = vmul.f32 %v1012, %v1020
    %v1046 = vmul.f32 %v1013, %v1020
    %v1047 = vmul.f32 %v1014, %v1020
    %v1048 = vmul.f32 %v1015, %v1020
    %v1049 = vmul.f32 %v1016, %v1020
    %v1050 = vmul.f32 %v1017, %v1020
    %v1051 = vmul.f32 %v1018, %v1020
    %v1052 = vmul.f32 %v1019, %v1020
    %v1053 = vadd.f32 %v956, %v1021
    %v1054 = vadd.f32 %v957, %v1022
    %v1055 = vadd.f32 %v958, %v1023
    %v1056 = vadd.f32 %v959, %v1024
    %v1057 = vadd.f32 %v960, %v1025
    %v1058 = vadd.f32 %v961, %v1026
    %v1059 = vadd.f32 %v962, %v1027
    %v1060 = vadd.f32 %v963, %v1028
    %v1061 = vadd.f32 %v964, %v1029
    %v1062 = vadd.f32 %v965, %v1030
    %v1063 = vadd.f32 %v966, %v1031
    %v1064 = vadd.f32 %v967, %v1032
    %v1065 = vadd.f32 %v968, %v1033
    %v1066 = vadd.f32 %v969, %v1034
    %v1067 = vadd.f32 %v970, %v1035
    %v1068 = vadd.f32 %v971, %v1036
    %v1069 = vadd.f32 %v972, %v1037
    %v1070 = vadd.f32 %v973, %v1038
    %v1071 = vadd.f32 %v974, %v1039
    %v1072 = vadd.f32 %v975, %v1040
    %v1073 = vadd.f32 %v976, %v1041
    %v1074 = vadd.f32 %v977, %v1042
    %v1075 = vadd.f32 %v978, %v1043
    %v1076 = vadd.f32 %v979, %v1044
    %v1077 = vadd.f32 %v980, %v1045
    %v1078 = vadd.f32 %v981, %v1046
    %v1079 = vadd.f32 %v982, %v1047
    %v1080 = vadd.f32 %v983, %v1048
    %v1081 = vadd.f32 %v984, %v1049
    %v1082 = vadd.f32 %v985, %v1050
    %v1083 = vadd.f32 %v986, %v1051
    %v1084 = vadd.f32 %v987, %v1052
    %s1085 = scalar_lea.vmem [#allocation2], 64
    %v1086 = vld [vmem:[%s1085 + $0x7] sm:$0xff]
    %v1087 = vld [vmem:[%s1085 + $0xf] sm:$0xff]
    %v1088 = vld [vmem:[%s1085 + $0x27] sm:$0xff]
    %v1089 = vld [vmem:[%s1085 + $0x2f] sm:$0xff]
    %v1090 = vld [vmem:[%s1085 + $0x47] sm:$0xff]
    %v1091 = vld [vmem:[%s1085 + $0x4f] sm:$0xff]
    %v1092 = vld [vmem:[%s1085 + $0x67] sm:$0xff]
    %v1093 = vld [vmem:[%s1085 + $0x6f] sm:$0xff]
    %v1094 = vld [vmem:[%s1085 + $0x87] sm:$0xff]
    %v1095 = vld [vmem:[%s1085 + $0x8f] sm:$0xff]
    %v1096 = vld [vmem:[%s1085 + $0xa7] sm:$0xff]
    %v1097 = vld [vmem:[%s1085 + $0xaf] sm:$0xff]
    %v1098 = vld [vmem:[%s1085 + $0xc7] sm:$0xff]
    %v1099 = vld [vmem:[%s1085 + $0xcf] sm:$0xff]
    %v1100 = vld [vmem:[%s1085 + $0xe7] sm:$0xff]
    %v1101 = vld [vmem:[%s1085 + $0xef] sm:$0xff]
    %v1102 = vld [vmem:[%s1085 + $0x107] sm:$0xff]
    %v1103 = vld [vmem:[%s1085 + $0x10f] sm:$0xff]
    %v1104 = vld [vmem:[%s1085 + $0x127] sm:$0xff]
    %v1105 = vld [vmem:[%s1085 + $0x12f] sm:$0xff]
    %v1106 = vld [vmem:[%s1085 + $0x147] sm:$0xff]
    %v1107 = vld [vmem:[%s1085 + $0x14f] sm:$0xff]
    %v1108 = vld [vmem:[%s1085 + $0x167] sm:$0xff]
    %v1109 = vld [vmem:[%s1085 + $0x16f] sm:$0xff]
    %v1110 = vld [vmem:[%s1085 + $0x187] sm:$0xff]
    %v1111 = vld [vmem:[%s1085 + $0x18f] sm:$0xff]
    %v1112 = vld [vmem:[%s1085 + $0x1a7] sm:$0xff]
    %v1113 = vld [vmem:[%s1085 + $0x1af] sm:$0xff]
    %v1114 = vld [vmem:[%s1085 + $0x1c7] sm:$0xff]
    %v1115 = vld [vmem:[%s1085 + $0x1cf] sm:$0xff]
    %v1116 = vld [vmem:[%s1085 + $0x1e7] sm:$0xff]
    %v1117 = vld [vmem:[%s1085 + $0x1ef] sm:$0xff]
    %v1118 = vperm.slane %v76, 0
    %v1119 = vmul.f32 %v1086, %v1118
    %v1120 = vmul.f32 %v1087, %v1118
    %v1121 = vmul.f32 %v1088, %v1118
    %v1122 = vmul.f32 %v1089, %v1118
    %v1123 = vmul.f32 %v1090, %v1118
    %v1124 = vmul.f32 %v1091, %v1118
    %v1125 = vmul.f32 %v1092, %v1118
    %v1126 = vmul.f32 %v1093, %v1118
    %v1127 = vmul.f32 %v1094, %v1118
    %v1128 = vmul.f32 %v1095, %v1118
    %v1129 = vmul.f32 %v1096, %v1118
    %v1130 = vmul.f32 %v1097, %v1118
    %v1131 = vmul.f32 %v1098, %v1118
    %v1132 = vmul.f32 %v1099, %v1118
    %v1133 = vmul.f32 %v1100, %v1118
    %v1134 = vmul.f32 %v1101, %v1118
    %v1135 = vmul.f32 %v1102, %v1118
    %v1136 = vmul.f32 %v1103, %v1118
    %v1137 = vmul.f32 %v1104, %v1118
    %v1138 = vmul.f32 %v1105, %v1118
    %v1139 = vmul.f32 %v1106, %v1118
    %v1140 = vmul.f32 %v1107, %v1118
    %v1141 = vmul.f32 %v1108, %v1118
    %v1142 = vmul.f32 %v1109, %v1118
    %v1143 = vmul.f32 %v1110, %v1118
    %v1144 = vmul.f32 %v1111, %v1118
    %v1145 = vmul.f32 %v1112, %v1118
    %v1146 = vmul.f32 %v1113, %v1118
    %v1147 = vmul.f32 %v1114, %v1118
    %v1148 = vmul.f32 %v1115, %v1118
    %v1149 = vmul.f32 %v1116, %v1118
    %v1150 = vmul.f32 %v1117, %v1118
    %v1151 = vadd.f32 %v1053, %v1119
    %v1152 = vadd.f32 %v1054, %v1120
    %v1153 = vadd.f32 %v1055, %v1121
    %v1154 = vadd.f32 %v1056, %v1122
    %v1155 = vadd.f32 %v1057, %v1123
    %v1156 = vadd.f32 %v1058, %v1124
    %v1157 = vadd.f32 %v1059, %v1125
    %v1158 = vadd.f32 %v1060, %v1126
    %v1159 = vadd.f32 %v1061, %v1127
    %v1160 = vadd.f32 %v1062, %v1128
    %v1161 = vadd.f32 %v1063, %v1129
    %v1162 = vadd.f32 %v1064, %v1130
    %v1163 = vadd.f32 %v1065, %v1131
    %v1164 = vadd.f32 %v1066, %v1132
    %v1165 = vadd.f32 %v1067, %v1133
    %v1166 = vadd.f32 %v1068, %v1134
    %v1167 = vadd.f32 %v1069, %v1135
    %v1168 = vadd.f32 %v1070, %v1136
    %v1169 = vadd.f32 %v1071, %v1137
    %v1170 = vadd.f32 %v1072, %v1138
    %v1171 = vadd.f32 %v1073, %v1139
    %v1172 = vadd.f32 %v1074, %v1140
    %v1173 = vadd.f32 %v1075, %v1141
    %v1174 = vadd.f32 %v1076, %v1142
    %v1175 = vadd.f32 %v1077, %v1143
    %v1176 = vadd.f32 %v1078, %v1144
    %v1177 = vadd.f32 %v1079, %v1145
    %v1178 = vadd.f32 %v1080, %v1146
    %v1179 = vadd.f32 %v1081, %v1147
    %v1180 = vadd.f32 %v1082, %v1148
    %v1181 = vadd.f32 %v1083, %v1149
    %v1182 = vadd.f32 %v1084, %v1150
    %v1183 = vld [vmem:[%s1085 + $0x8] sm:$0xff]
    %v1184 = vld [vmem:[%s1085 + $0x10] sm:$0xff]
    %v1185 = vld [vmem:[%s1085 + $0x28] sm:$0xff]
    %v1186 = vld [vmem:[%s1085 + $0x30] sm:$0xff]
    %v1187 = vld [vmem:[%s1085 + $0x48] sm:$0xff]
    %v1188 = vld [vmem:[%s1085 + $0x50] sm:$0xff]
    %v1189 = vld [vmem:[%s1085 + $0x68] sm:$0xff]
    %v1190 = vld [vmem:[%s1085 + $0x70] sm:$0xff]
    %v1191 = vld [vmem:[%s1085 + $0x88] sm:$0xff]
    %v1192 = vld [vmem:[%s1085 + $0x90] sm:$0xff]
    %v1193 = vld [vmem:[%s1085 + $0xa8] sm:$0xff]
    %v1194 = vld [vmem:[%s1085 + $0xb0] sm:$0xff]
    %v1195 = vld [vmem:[%s1085 + $0xc8] sm:$0xff]
    %v1196 = vld [vmem:[%s1085 + $0xd0] sm:$0xff]
    %v1197 = vld [vmem:[%s1085 + $0xe8] sm:$0xff]
    %v1198 = vld [vmem:[%s1085 + $0xf0] sm:$0xff]
    %v1199 = vld [vmem:[%s1085 + $0x108] sm:$0xff]
    %v1200 = vld [vmem:[%s1085 + $0x110] sm:$0xff]
    %v1201 = vld [vmem:[%s1085 + $0x128] sm:$0xff]
    %v1202 = vld [vmem:[%s1085 + $0x130] sm:$0xff]
    %v1203 = vld [vmem:[%s1085 + $0x148] sm:$0xff]
    %v1204 = vld [vmem:[%s1085 + $0x150] sm:$0xff]
    %v1205 = vld [vmem:[%s1085 + $0x168] sm:$0xff]
    %v1206 = vld [vmem:[%s1085 + $0x170] sm:$0xff]
    %v1207 = vld [vmem:[%s1085 + $0x188] sm:$0xff]
    %v1208 = vld [vmem:[%s1085 + $0x190] sm:$0xff]
    %v1209 = vld [vmem:[%s1085 + $0x1a8] sm:$0xff]
    %v1210 = vld [vmem:[%s1085 + $0x1b0] sm:$0xff]
    %v1211 = vld [vmem:[%s1085 + $0x1c8] sm:$0xff]
    %v1212 = vld [vmem:[%s1085 + $0x1d0] sm:$0xff]
    %v1213 = vld [vmem:[%s1085 + $0x1e8] sm:$0xff]
    %v1214 = vld [vmem:[%s1085 + $0x1f0] sm:$0xff]
    %v1215 = vperm.slane %v76, 1
    %v1216 = vmul.f32 %v1183, %v1215
    %v1217 = vmul.f32 %v1184, %v1215
    %v1218 = vmul.f32 %v1185, %v1215
    %v1219 = vmul.f32 %v1186, %v1215
    %v1220 = vmul.f32 %v1187, %v1215
    %v1221 = vmul.f32 %v1188, %v1215
    %v1222 = vmul.f32 %v1189, %v1215
    %v1223 = vmul.f32 %v1190, %v1215
    %v1224 = vmul.f32 %v1191, %v1215
    %v1225 = vmul.f32 %v1192, %v1215
    %v1226 = vmul.f32 %v1193, %v1215
    %v1227 = vmul.f32 %v1194, %v1215
    %v1228 = vmul.f32 %v1195, %v1215
    %v1229 = vmul.f32 %v1196, %v1215
    %v1230 = vmul.f32 %v1197, %v1215
    %v1231 = vmul.f32 %v1198, %v1215
    %v1232 = vmul.f32 %v1199, %v1215
    %v1233 = vmul.f32 %v1200, %v1215
    %v1234 = vmul.f32 %v1201, %v1215
    %v1235 = vmul.f32 %v1202, %v1215
    %v1236 = vmul.f32 %v1203, %v1215
    %v1237 = vmul.f32 %v1204, %v1215
    %v1238 = vmul.f32 %v1205, %v1215
    %v1239 = vmul.f32 %v1206, %v1215
    %v1240 = vmul.f32 %v1207, %v1215
    %v1241 = vmul.f32 %v1208, %v1215
    %v1242 = vmul.f32 %v1209, %v1215
    %v1243 = vmul.f32 %v1210, %v1215
    %v1244 = vmul.f32 %v1211, %v1215
    %v1245 = vmul.f32 %v1212, %v1215
    %v1246 = vmul.f32 %v1213, %v1215
    %v1247 = vmul.f32 %v1214, %v1215
    %v1248 = vadd.f32 %v1151, %v1216
    %v1249 = vadd.f32 %v1152, %v1217
    %v1250 = vadd.f32 %v1153, %v1218
    %v1251 = vadd.f32 %v1154, %v1219
    %v1252 = vadd.f32 %v1155, %v1220
    %v1253 = vadd.f32 %v1156, %v1221
    %v1254 = vadd.f32 %v1157, %v1222
    %v1255 = vadd.f32 %v1158, %v1223
    %v1256 = vadd.f32 %v1159, %v1224
    %v1257 = vadd.f32 %v1160, %v1225
    %v1258 = vadd.f32 %v1161, %v1226
    %v1259 = vadd.f32 %v1162, %v1227
    %v1260 = vadd.f32 %v1163, %v1228
    %v1261 = vadd.f32 %v1164, %v1229
    %v1262 = vadd.f32 %v1165, %v1230
    %v1263 = vadd.f32 %v1166, %v1231
    %v1264 = vadd.f32 %v1167, %v1232
    %v1265 = vadd.f32 %v1168, %v1233
    %v1266 = vadd.f32 %v1169, %v1234
    %v1267 = vadd.f32 %v1170, %v1235
    %v1268 = vadd.f32 %v1171, %v1236
    %v1269 = vadd.f32 %v1172, %v1237
    %v1270 = vadd.f32 %v1173, %v1238
    %v1271 = vadd.f32 %v1174, %v1239
    %v1272 = vadd.f32 %v1175, %v1240
    %v1273 = vadd.f32 %v1176, %v1241
    %v1274 = vadd.f32 %v1177, %v1242
    %v1275 = vadd.f32 %v1178, %v1243
    %v1276 = vadd.f32 %v1179, %v1244
    %v1277 = vadd.f32 %v1180, %v1245
    %v1278 = vadd.f32 %v1181, %v1246
    %v1279 = vadd.f32 %v1182, %v1247
    %v1280 = vld [vmem:[%s1085 + $0x9] sm:$0xff]
    %v1281 = vld [vmem:[%s1085 + $0x11] sm:$0xff]
    %v1282 = vld [vmem:[%s1085 + $0x29] sm:$0xff]
    %v1283 = vld [vmem:[%s1085 + $0x31] sm:$0xff]
    %v1284 = vld [vmem:[%s1085 + $0x49] sm:$0xff]
    %v1285 = vld [vmem:[%s1085 + $0x51] sm:$0xff]
    %v1286 = vld [vmem:[%s1085 + $0x69] sm:$0xff]
    %v1287 = vld [vmem:[%s1085 + $0x71] sm:$0xff]
    %v1288 = vld [vmem:[%s1085 + $0x89] sm:$0xff]
    %v1289 = vld [vmem:[%s1085 + $0x91] sm:$0xff]
    %v1290 = vld [vmem:[%s1085 + $0xa9] sm:$0xff]
    %v1291 = vld [vmem:[%s1085 + $0xb1] sm:$0xff]
    %v1292 = vld [vmem:[%s1085 + $0xc9] sm:$0xff]
    %v1293 = vld [vmem:[%s1085 + $0xd1] sm:$0xff]
    %v1294 = vld [vmem:[%s1085 + $0xe9] sm:$0xff]
    %v1295 = vld [vmem:[%s1085 + $0xf1] sm:$0xff]
    %v1296 = vld [vmem:[%s1085 + $0x109] sm:$0xff]
    %v1297 = vld [vmem:[%s1085 + $0x111] sm:$0xff]
    %v1298 = vld [vmem:[%s1085 + $0x129] sm:$0xff]
    %v1299 = vld [vmem:[%s1085 + $0x131] sm:$0xff]
    %v1300 = vld [vmem:[%s1085 + $0x149] sm:$0xff]
    %v1301 = vld [vmem:[%s1085 + $0x151] sm:$0xff]
    %v1302 = vld [vmem:[%s1085 + $0x169] sm:$0xff]
    %v1303 = vld [vmem:[%s1085 + $0x171] sm:$0xff]
    %v1304 = vld [vmem:[%s1085 + $0x189] sm:$0xff]
    %v1305 = vld [vmem:[%s1085 + $0x191] sm:$0xff]
    %v1306 = vld [vmem:[%s1085 + $0x1a9] sm:$0xff]
    %v1307 = vld [vmem:[%s1085 + $0x1b1] sm:$0xff]
    %v1308 = vld [vmem:[%s1085 + $0x1c9] sm:$0xff]
    %v1309 = vld [vmem:[%s1085 + $0x1d1] sm:$0xff]
    %v1310 = vld [vmem:[%s1085 + $0x1e9] sm:$0xff]
    %v1311 = vld [vmem:[%s1085 + $0x1f1] sm:$0xff]
    %v1312 = vperm.slane %v76, 2
    %v1313 = vmul.f32 %v1280, %v1312
    %v1314 = vmul.f32 %v1281, %v1312
    %v1315 = vmul.f32 %v1282, %v1312
    %v1316 = vmul.f32 %v1283, %v1312
    %v1317 = vmul.f32 %v1284, %v1312
    %v1318 = vmul.f32 %v1285, %v1312
    %v1319 = vmul.f32 %v1286, %v1312
    %v1320 = vmul.f32 %v1287, %v1312
    %v1321 = vmul.f32 %v1288, %v1312
    %v1322 = vmul.f32 %v1289, %v1312
    %v1323 = vmul.f32 %v1290, %v1312
    %v1324 = vmul.f32 %v1291, %v1312
    %v1325 = vmul.f32 %v1292, %v1312
    %v1326 = vmul.f32 %v1293, %v1312
    %v1327 = vmul.f32 %v1294, %v1312
    %v1328 = vmul.f32 %v1295, %v1312
    %v1329 = vmul.f32 %v1296, %v1312
    %v1330 = vmul.f32 %v1297, %v1312
    %v1331 = vmul.f32 %v1298, %v1312
    %v1332 = vmul.f32 %v1299, %v1312
    %v1333 = vmul.f32 %v1300, %v1312
    %v1334 = vmul.f32 %v1301, %v1312
    %v1335 = vmul.f32 %v1302, %v1312
    %v1336 = vmul.f32 %v1303, %v1312
    %v1337 = vmul.f32 %v1304, %v1312
    %v1338 = vmul.f32 %v1305, %v1312
    %v1339 = vmul.f32 %v1306, %v1312
    %v1340 = vmul.f32 %v1307, %v1312
    %v1341 = vmul.f32 %v1308, %v1312
    %v1342 = vmul.f32 %v1309, %v1312
    %v1343 = vmul.f32 %v1310, %v1312
    %v1344 = vmul.f32 %v1311, %v1312
    %v1345 = vadd.f32 %v1248, %v1313
    %v1346 = vadd.f32 %v1249, %v1314
    %v1347 = vadd.f32 %v1250, %v1315
    %v1348 = vadd.f32 %v1251, %v1316
    %v1349 = vadd.f32 %v1252, %v1317
    %v1350 = vadd.f32 %v1253, %v1318
    %v1351 = vadd.f32 %v1254, %v1319
    %v1352 = vadd.f32 %v1255, %v1320
    %v1353 = vadd.f32 %v1256, %v1321
    %v1354 = vadd.f32 %v1257, %v1322
    %v1355 = vadd.f32 %v1258, %v1323
    %v1356 = vadd.f32 %v1259, %v1324
    %v1357 = vadd.f32 %v1260, %v1325
    %v1358 = vadd.f32 %v1261, %v1326
    %v1359 = vadd.f32 %v1262, %v1327
    %v1360 = vadd.f32 %v1263, %v1328
    %v1361 = vadd.f32 %v1264, %v1329
    %v1362 = vadd.f32 %v1265, %v1330
    %v1363 = vadd.f32 %v1266, %v1331
    %v1364 = vadd.f32 %v1267, %v1332
    %v1365 = vadd.f32 %v1268, %v1333
    %v1366 = vadd.f32 %v1269, %v1334
    %v1367 = vadd.f32 %v1270, %v1335
    %v1368 = vadd.f32 %v1271, %v1336
    %v1369 = vadd.f32 %v1272, %v1337
    %v1370 = vadd.f32 %v1273, %v1338
    %v1371 = vadd.f32 %v1274, %v1339
    %v1372 = vadd.f32 %v1275, %v1340
    %v1373 = vadd.f32 %v1276, %v1341
    %v1374 = vadd.f32 %v1277, %v1342
    %v1375 = vadd.f32 %v1278, %v1343
    %v1376 = vadd.f32 %v1279, %v1344
    %v1378 = vperm.slane %v77, 0
    %v1380 = vadd.f32 %v1345, %v1378
    %v1381 = vadd.f32 %v1346, %v1378
    %v1382 = vadd.f32 %v1347, %v1378
    %v1383 = vadd.f32 %v1348, %v1378
    %v1384 = vadd.f32 %v1349, %v1378
    %v1385 = vadd.f32 %v1350, %v1378
    %v1386 = vadd.f32 %v1351, %v1378
    %v1387 = vadd.f32 %v1352, %v1378
    %v1388 = vadd.f32 %v1353, %v1378
    %v1389 = vadd.f32 %v1354, %v1378
    %v1390 = vadd.f32 %v1355, %v1378
    %v1391 = vadd.f32 %v1356, %v1378
    %v1392 = vadd.f32 %v1357, %v1378
    %v1393 = vadd.f32 %v1358, %v1378
    %v1394 = vadd.f32 %v1359, %v1378
    %v1395 = vadd.f32 %v1360, %v1378
    %v1396 = vadd.f32 %v1361, %v1378
    %v1397 = vadd.f32 %v1362, %v1378
    %v1398 = vadd.f32 %v1363, %v1378
    %v1399 = vadd.f32 %v1364, %v1378
    %v1400 = vadd.f32 %v1365, %v1378
    %v1401 = vadd.f32 %v1366, %v1378
    %v1402 = vadd.f32 %v1367, %v1378
    %v1403 = vadd.f32 %v1368, %v1378
    %v1404 = vadd.f32 %v1369, %v1378
    %v1405 = vadd.f32 %v1370, %v1378
    %v1406 = vadd.f32 %v1371, %v1378
    %v1407 = vadd.f32 %v1372, %v1378
    %v1408 = vadd.f32 %v1373, %v1378
    %v1409 = vadd.f32 %v1374, %v1378
    %v1410 = vadd.f32 %v1375, %v1378
    %v1411 = vadd.f32 %v1376, %v1378
    %v1412 = vmax.f32 %v1380, 0.0
    %v1413 = vmax.f32 %v1381, 0.0
    %v1414 = vmax.f32 %v1382, 0.0
    %v1415 = vmax.f32 %v1383, 0.0
    %v1416 = vmax.f32 %v1384, 0.0
    %v1417 = vmax.f32 %v1385, 0.0
    %v1418 = vmax.f32 %v1386, 0.0
    %v1419 = vmax.f32 %v1387, 0.0
    %v1420 = vmax.f32 %v1388, 0.0
    %v1421 = vmax.f32 %v1389, 0.0
    %v1422 = vmax.f32 %v1390, 0.0
    %v1423 = vmax.f32 %v1391, 0.0
    %v1424 = vmax.f32 %v1392, 0.0
    %v1425 = vmax.f32 %v1393, 0.0
    %v1426 = vmax.f32 %v1394, 0.0
    %v1427 = vmax.f32 %v1395, 0.0
    %v1428 = vmax.f32 %v1396, 0.0
    %v1429 = vmax.f32 %v1397, 0.0
    %v1430 = vmax.f32 %v1398, 0.0
    %v1431 = vmax.f32 %v1399, 0.0
    %v1432 = vmax.f32 %v1400, 0.0
    %v1433 = vmax.f32 %v1401, 0.0
    %v1434 = vmax.f32 %v1402, 0.0
    %v1435 = vmax.f32 %v1403, 0.0
    %v1436 = vmax.f32 %v1404, 0.0
    %v1437 = vmax.f32 %v1405, 0.0
    %v1438 = vmax.f32 %v1406, 0.0
    %v1439 = vmax.f32 %v1407, 0.0
    %v1440 = vmax.f32 %v1408, 0.0
    %v1441 = vmax.f32 %v1409, 0.0
    %v1442 = vmax.f32 %v1410, 0.0
    %v1443 = vmax.f32 %v1411, 0.0
    %v1444 = vmin.f32 %v1412, 6.0
    %v1445 = vmin.f32 %v1413, 6.0
    %v1446 = vmin.f32 %v1414, 6.0
    %v1447 = vmin.f32 %v1415, 6.0
    %v1448 = vmin.f32 %v1416, 6.0
    %v1449 = vmin.f32 %v1417, 6.0
    %v1450 = vmin.f32 %v1418, 6.0
    %v1451 = vmin.f32 %v1419, 6.0
    %v1452 = vmin.f32 %v1420, 6.0
    %v1453 = vmin.f32 %v1421, 6.0
    %v1454 = vmin.f32 %v1422, 6.0
    %v1455 = vmin.f32 %v1423, 6.0
    %v1456 = vmin.f32 %v1424, 6.0
    %v1457 = vmin.f32 %v1425, 6.0
    %v1458 = vmin.f32 %v1426, 6.0
    %v1459 = vmin.f32 %v1427, 6.0
    %v1460 = vmin.f32 %v1428, 6.0
    %v1461 = vmin.f32 %v1429, 6.0
    %v1462 = vmin.f32 %v1430, 6.0
    %v1463 = vmin.f32 %v1431, 6.0
    %v1464 = vmin.f32 %v1432, 6.0
    %v1465 = vmin.f32 %v1433, 6.0
    %v1466 = vmin.f32 %v1434, 6.0
    %v1467 = vmin.f32 %v1435, 6.0
    %v1468 = vmin.f32 %v1436, 6.0
    %v1469 = vmin.f32 %v1437, 6.0
    %v1470 = vmin.f32 %v1438, 6.0
    %v1471 = vmin.f32 %v1439, 6.0
    %v1472 = vmin.f32 %v1440, 6.0
    %v1473 = vmin.f32 %v1441, 6.0
    %v1474 = vmin.f32 %v1442, 6.0
    %v1475 = vmin.f32 %v1443, 6.0
    %1477 = vset.pattern.permute.xlu0 0
    %1478 = vperm.xlu0 %1477, %v79
    %v1479 = vpop.permute.xlu0 %1478
    %v1482 = vsel %vm423, %v78, 0
    %v1485 = vsel %vm423, %v1444, 0
    %v1488 = vsel %vm423, %v1445, 0
    %v1491 = vsel %vm423, %v1446, 0
    %v1494 = vsel %vm423, %v1447, 0
    %v1497 = vsel %vm423, %v1448, 0
    %v1500 = vsel %vm423, %v1449, 0
    %v1503 = vsel %vm423, %v1450, 0
    %v1506 = vsel %vm423, %v1451, 0
    %v1509 = vsel %vm423, %v1452, 0
    %v1512 = vsel %vm423, %v1453, 0
    %v1515 = vsel %vm423, %v1454, 0
    %v1518 = vsel %vm423, %v1455, 0
    %v1521 = vsel %vm423, %v1456, 0
    %v1524 = vsel %vm423, %v1457, 0
    %v1527 = vsel %vm423, %v1458, 0
    %v1530 = vsel %vm423, %v1459, 0
    %v1533 = vsel %vm423, %v1460, 0
    %v1536 = vsel %vm423, %v1461, 0
    %v1539 = vsel %vm423, %v1462, 0
    %v1542 = vsel %vm423, %v1463, 0
    %v1545 = vsel %vm423, %v1464, 0
    %v1548 = vsel %vm423, %v1465, 0
    %v1551 = vsel %vm423, %v1466, 0
    %v1554 = vsel %vm423, %v1467, 0
    %v1557 = vsel %vm423, %v1468, 0
    %v1560 = vsel %vm423, %v1469, 0
    %v1563 = vsel %vm423, %v1470, 0
    %v1566 = vsel %vm423, %v1471, 0
    %v1569 = vsel %vm423, %v1472, 0
    %v1572 = vsel %vm423, %v1473, 0
    %v1575 = vsel %vm423, %v1474, 0
    %v1578 = vsel %vm423, %v1475, 0
    %1580 = vmatpush.xpose.msra.mxu0 %v1530
    %1581 = vmatpush.xpose.msra.mxu0 %v1527
    %1582 = vmatpush.xpose.msra.mxu0 %v1524
    %1583 = vmatpush.xpose.msra.mxu0 %v1521
    %1584 = vmatpush.xpose.msra.mxu0 %v1518
    %1585 = vmatpush.xpose.msra.mxu0 %v1515
    %1586 = vmatpush.xpose.msra.mxu0 %v1512
    %1587 = vmatpush.xpose.msra.mxu0 %v1509
    %1588 = vmatpush.xpose.msra.mxu0 %v1506
    %1589 = vmatpush.xpose.msra.mxu0 %v1503
    %1590 = vmatpush.xpose.msra.mxu0 %v1500
    %1591 = vmatpush.xpose.msra.mxu0 %v1497
    %1592 = vmatpush.xpose.msra.mxu0 %v1494
    %1593 = vmatpush.xpose.msra.mxu0 %v1491
    %1594 = vmatpush.xpose.msra.mxu0 %v1488
    %1595 = vmatpush.xpose.msra.mxu0 %v1485
    %1596 = vmatmul.f32.gmra.mxu0 %v1482
    %v1597 = vpop.f32.mrf.mxu0
    %v1598 = vadd.f32 %v1479, %v1597
    %1599 = vdwg.mxu0
    %1600 = vmatpush.xpose.msra.mxu0 %v1578
    %1601 = vmatpush.xpose.msra.mxu0 %v1575
    %1602 = vmatpush.xpose.msra.mxu0 %v1572
    %1603 = vmatpush.xpose.msra.mxu0 %v1569
    %1604 = vmatpush.xpose.msra.mxu0 %v1566
    %1605 = vmatpush.xpose.msra.mxu0 %v1563
    %1606 = vmatpush.xpose.msra.mxu0 %v1560
    %1607 = vmatpush.xpose.msra.mxu0 %v1557
    %1608 = vmatpush.xpose.msra.mxu0 %v1554
    %1609 = vmatpush.xpose.msra.mxu0 %v1551
    %1610 = vmatpush.xpose.msra.mxu0 %v1548
    %1611 = vmatpush.xpose.msra.mxu0 %v1545
    %1612 = vmatpush.xpose.msra.mxu0 %v1542
    %1613 = vmatpush.xpose.msra.mxu0 %v1539
    %1614 = vmatpush.xpose.msra.mxu0 %v1536
    %1615 = vmatpush.xpose.msra.mxu0 %v1533
    %1616 = vmatmul.f32.gmra.mxu0 %v1482
    %v1617 = vpop.f32.mrf.mxu0
    %v1618 = vadd.f32 %v1479, %v1617
    %1619 = vdwg.mxu0
    %v1620 = vadd.f32 %v1598, %v80
    %v1621 = vadd.f32 %v1618, %v81
    %1622 = vst [vmem:[#allocation9] sm:$0xff] %v1620
    %1623 = vst [vmem:[#allocation9 + $0x8] sm:$0xff] %v1621
    %s1624 = scalar_lea.vmem [#allocation3], 16
    %v1625 = vld [vmem:[%s1624] sm:$0xff]
    %v1626 = vld [vmem:[%s1624 + $0x8] sm:$0xff]
    %1627 = vxpose.xlu0.b32.start [1/16] %v1625, 128
    %1628 = vxpose.xlu0.b32.cont [2/16] 0.0, 128
    %1629 = vxpose.xlu0.b32.cont [3/16] 0.0, 128
    %1630 = vxpose.xlu0.b32.cont [4/16] 0.0, 128
    %1631 = vxpose.xlu0.b32.cont [5/16] 0.0, 128
    %1632 = vxpose.xlu0.b32.cont [6/16] 0.0, 128
    %1633 = vxpose.xlu0.b32.cont [7/16] 0.0, 128
    %1634 = vxpose.xlu0.b32.cont [8/16] 0.0, 128
    %1635 = vxpose.xlu0.b32.cont [9/16] 0.0, 128
    %1636 = vxpose.xlu0.b32.cont [10/16] 0.0, 128
    %1637 = vxpose.xlu0.b32.cont [11/16] 0.0, 128
    %1638 = vxpose.xlu0.b32.cont [12/16] 0.0, 128
    %1639 = vxpose.xlu0.b32.cont [13/16] 0.0, 128
    %1640 = vxpose.xlu0.b32.cont [14/16] 0.0, 128
    %1641 = vxpose.xlu0.b32.cont [15/16] 0.0, 128
    %1642 = vxpose.xlu0.b32.end [16/16] 0.0, 128
    %v1643 = vpop.trf.xlu0
    %v1644 = vpop.trf.xlu0
    %v1645 = vpop.trf.xlu0
    %v1646 = vpop.trf.xlu0
    %v1647 = vpop.trf.xlu0
    %v1648 = vpop.trf.xlu0
    %v1649 = vpop.trf.xlu0
    %v1650 = vpop.trf.xlu0
    %v1651 = vpop.trf.xlu0
    %v1652 = vpop.trf.xlu0
    %v1653 = vpop.trf.xlu0
    %v1654 = vpop.trf.xlu0
    %v1655 = vpop.trf.xlu0
    %v1656 = vpop.trf.xlu0
    %v1657 = vpop.trf.xlu0
    %v1658 = vpop.trf.xlu0
    %1659 = vxpose.xlu0.b32.start [1/16] %v1626, 128
    %1660 = vxpose.xlu0.b32.cont [2/16] 0.0, 128
    %1661 = vxpose.xlu0.b32.cont [3/16] 0.0, 128
    %1662 = vxpose.xlu0.b32.cont [4/16] 0.0, 128
    %1663 = vxpose.xlu0.b32.cont [5/16] 0.0, 128
    %1664 = vxpose.xlu0.b32.cont [6/16] 0.0, 128
    %1665 = vxpose.xlu0.b32.cont [7/16] 0.0, 128
    %1666 = vxpose.xlu0.b32.cont [8/16] 0.0, 128
    %1667 = vxpose.xlu0.b32.cont [9/16] 0.0, 128
    %1668 = vxpose.xlu0.b32.cont [10/16] 0.0, 128
    %1669 = vxpose.xlu0.b32.cont [11/16] 0.0, 128
    %1670 = vxpose.xlu0.b32.cont [12/16] 0.0, 128
    %1671 = vxpose.xlu0.b32.cont [13/16] 0.0, 128
    %1672 = vxpose.xlu0.b32.cont [14/16] 0.0, 128
    %1673 = vxpose.xlu0.b32.cont [15/16] 0.0, 128
    %1674 = vxpose.xlu0.b32.end [16/16] 0.0, 128
    %v1675 = vpop.trf.xlu0
    %v1676 = vpop.trf.xlu0
    %v1677 = vpop.trf.xlu0
    %v1678 = vpop.trf.xlu0
    %v1679 = vpop.trf.xlu0
    %v1680 = vpop.trf.xlu0
    %v1681 = vpop.trf.xlu0
    %v1682 = vpop.trf.xlu0
    %v1683 = vpop.trf.xlu0
    %v1684 = vpop.trf.xlu0
    %v1685 = vpop.trf.xlu0
    %v1686 = vpop.trf.xlu0
    %v1687 = vpop.trf.xlu0
    %v1688 = vpop.trf.xlu0
    %v1689 = vpop.trf.xlu0
    %v1690 = vpop.trf.xlu0
    %v1692 = vsel %vm149, %v1643, 0
    %v1695 = vsel %vm149, %v1644, 0
    %v1698 = vsel %vm149, %v1645, 0
    %v1701 = vsel %vm149, %v1646, 0
    %v1704 = vsel %vm149, %v1647, 0
    %v1707 = vsel %vm149, %v1648, 0
    %v1710 = vsel %vm149, %v1649, 0
    %v1713 = vsel %vm149, %v1650, 0
    %v1716 = vsel %vm149, %v1651, 0
    %v1719 = vsel %vm149, %v1652, 0
    %v1722 = vsel %vm149, %v1653, 0
    %v1725 = vsel %vm149, %v1654, 0
    %v1728 = vsel %vm149, %v1655, 0
    %v1731 = vsel %vm149, %v1656, 0
    %v1734 = vsel %vm149, %v1657, 0
    %v1737 = vsel %vm149, %v1658, 0
    %v1740 = vsel %vm149, %v1675, 0
    %v1743 = vsel %vm149, %v1676, 0
    %v1746 = vsel %vm149, %v1677, 0
    %v1749 = vsel %vm149, %v1678, 0
    %v1752 = vsel %vm149, %v1679, 0
    %v1755 = vsel %vm149, %v1680, 0
    %v1758 = vsel %vm149, %v1681, 0
    %v1761 = vsel %vm149, %v1682, 0
    %v1764 = vsel %vm149, %v1683, 0
    %v1767 = vsel %vm149, %v1684, 0
    %v1770 = vsel %vm149, %v1685, 0
    %v1773 = vsel %vm149, %v1686, 0
    %v1776 = vsel %vm149, %v1687, 0
    %v1779 = vsel %vm149, %v1688, 0
    %v1782 = vsel %vm149, %v1689, 0
    %v1785 = vsel %vm149, %v1690, 0
    %1787 = vmatpush.msra.mxu0 0.0
    %1788 = vmatpush.msra.mxu0 0.0
    %1789 = vmatpush.msra.mxu0 0.0
    %1790 = vmatpush.msra.mxu0 0.0
    %1791 = vmatpush.msra.mxu0 0.0
    %1792 = vmatpush.msra.mxu0 0.0
    %1793 = vmatpush.msra.mxu0 0.0
    %1794 = vmatpush.msra.mxu0 0.0
    %1795 = vmatpush.msra.mxu0 0.0
    %1796 = vmatpush.msra.mxu0 0.0
    %1797 = vmatpush.msra.mxu0 0.0
    %1798 = vmatpush.msra.mxu0 0.0
    %1799 = vmatpush.msra.mxu0 0.0
    %1800 = vmatpush.msra.mxu0 0.0
    %1801 = vmatpush.msra.mxu0 0.0
    %1802 = vmatpush.msra.mxu0 %v72
    %1803 = vmatmul.f32.gmra.mxu0 %v1692
    %v1804 = vpop.f32.mrf.mxu0
    %v1805 = vadd.f32 %v83, %v1804
    %1806 = vmatmul.f32.gmra.mxu0 %v1695
    %v1807 = vpop.f32.mrf.mxu0
    %v1808 = vadd.f32 %v83, %v1807
    %1809 = vmatmul.f32.gmra.mxu0 %v1698
    %v1810 = vpop.f32.mrf.mxu0
    %v1811 = vadd.f32 %v83, %v1810
    %1812 = vmatmul.f32.gmra.mxu0 %v1701
    %v1813 = vpop.f32.mrf.mxu0
    %v1814 = vadd.f32 %v83, %v1813
    %1815 = vmatmul.f32.gmra.mxu0 %v1704
    %v1816 = vpop.f32.mrf.mxu0
    %v1817 = vadd.f32 %v83, %v1816
    %1818 = vmatmul.f32.gmra.mxu0 %v1707
    %v1819 = vpop.f32.mrf.mxu0
    %v1820 = vadd.f32 %v83, %v1819
    %1821 = vmatmul.f32.gmra.mxu0 %v1710
    %v1822 = vpop.f32.mrf.mxu0
    %v1823 = vadd.f32 %v83, %v1822
    %1824 = vmatmul.f32.gmra.mxu0 %v1713
    %v1825 = vpop.f32.mrf.mxu0
    %v1826 = vadd.f32 %v83, %v1825
    %1827 = vmatmul.f32.gmra.mxu0 %v1716
    %v1828 = vpop.f32.mrf.mxu0
    %v1829 = vadd.f32 %v83, %v1828
    %1830 = vmatmul.f32.gmra.mxu0 %v1719
    %v1831 = vpop.f32.mrf.mxu0
    %v1832 = vadd.f32 %v83, %v1831
    %1833 = vmatmul.f32.gmra.mxu0 %v1722
    %v1834 = vpop.f32.mrf.mxu0
    %v1835 = vadd.f32 %v83, %v1834
    %1836 = vmatmul.f32.gmra.mxu0 %v1725
    %v1837 = vpop.f32.mrf.mxu0
    %v1838 = vadd.f32 %v83, %v1837
    %1839 = vmatmul.f32.gmra.mxu0 %v1728
    %v1840 = vpop.f32.mrf.mxu0
    %v1841 = vadd.f32 %v83, %v1840
    %1842 = vmatmul.f32.gmra.mxu0 %v1731
    %v1843 = vpop.f32.mrf.mxu0
    %v1844 = vadd.f32 %v83, %v1843
    %1845 = vmatmul.f32.gmra.mxu0 %v1734
    %v1846 = vpop.f32.mrf.mxu0
    %v1847 = vadd.f32 %v83, %v1846
    %1848 = vmatmul.f32.gmra.mxu0 %v1737
    %v1849 = vpop.f32.mrf.mxu0
    %v1850 = vadd.f32 %v83, %v1849
    %1851 = vmatmul.f32.gmra.mxu0 %v1740
    %v1852 = vpop.f32.mrf.mxu0
    %v1853 = vadd.f32 %v83, %v1852
    %1854 = vmatmul.f32.gmra.mxu0 %v1743
    %v1855 = vpop.f32.mrf.mxu0
    %v1856 = vadd.f32 %v83, %v1855
    %1857 = vmatmul.f32.gmra.mxu0 %v1746
    %v1858 = vpop.f32.mrf.mxu0
    %v1859 = vadd.f32 %v83, %v1858
    %1860 = vmatmul.f32.gmra.mxu0 %v1749
    %v1861 = vpop.f32.mrf.mxu0
    %v1862 = vadd.f32 %v83, %v1861
    %1863 = vmatmul.f32.gmra.mxu0 %v1752
    %v1864 = vpop.f32.mrf.mxu0
    %v1865 = vadd.f32 %v83, %v1864
    %1866 = vmatmul.f32.gmra.mxu0 %v1755
    %v1867 = vpop.f32.mrf.mxu0
    %v1868 = vadd.f32 %v83, %v1867
    %1869 = vmatmul.f32.gmra.mxu0 %v1758
    %v1870 = vpop.f32.mrf.mxu0
    %v1871 = vadd.f32 %v83, %v1870
    %1872 = vmatmul.f32.gmra.mxu0 %v1761
    %v1873 = vpop.f32.mrf.mxu0
    %v1874 = vadd.f32 %v83, %v1873
    %1875 = vmatmul.f32.gmra.mxu0 %v1764
    %v1876 = vpop.f32.mrf.mxu0
    %v1877 = vadd.f32 %v83, %v1876
    %1878 = vmatmul.f32.gmra.mxu0 %v1767
    %v1879 = vpop.f32.mrf.mxu0
    %v1880 = vadd.f32 %v83, %v1879
    %1881 = vmatmul.f32.gmra.mxu0 %v1770
    %v1882 = vpop.f32.mrf.mxu0
    %v1883 = vadd.f32 %v83, %v1882
    %1884 = vmatmul.f32.gmra.mxu0 %v1773
    %v1885 = vpop.f32.mrf.mxu0
    %v1886 = vadd.f32 %v83, %v1885
    %1887 = vmatmul.f32.gmra.mxu0 %v1776
    %v1888 = vpop.f32.mrf.mxu0
    %v1889 = vadd.f32 %v83, %v1888
    %1890 = vmatmul.f32.gmra.mxu0 %v1779
    %v1891 = vpop.f32.mrf.mxu0
    %v1892 = vadd.f32 %v83, %v1891
    %1893 = vmatmul.f32.gmra.mxu0 %v1782
    %v1894 = vpop.f32.mrf.mxu0
    %v1895 = vadd.f32 %v83, %v1894
    %1896 = vmatmul.f32.gmra.mxu0 %v1785
    %v1897 = vpop.f32.mrf.mxu0
    %v1898 = vadd.f32 %v83, %v1897
    %1899 = vdwg.mxu0
    %v1900 = vmax.f32 %v1805, 0.0
    %v1901 = vmax.f32 %v1808, 0.0
    %v1902 = vmax.f32 %v1811, 0.0
    %v1903 = vmax.f32 %v1814, 0.0
    %v1904 = vmax.f32 %v1817, 0.0
    %v1905 = vmax.f32 %v1820, 0.0
    %v1906 = vmax.f32 %v1823, 0.0
    %v1907 = vmax.f32 %v1826, 0.0
    %v1908 = vmax.f32 %v1829, 0.0
    %v1909 = vmax.f32 %v1832, 0.0
    %v1910 = vmax.f32 %v1835, 0.0
    %v1911 = vmax.f32 %v1838, 0.0
    %v1912 = vmax.f32 %v1841, 0.0
    %v1913 = vmax.f32 %v1844, 0.0
    %v1914 = vmax.f32 %v1847, 0.0
    %v1915 = vmax.f32 %v1850, 0.0
    %v1916 = vmax.f32 %v1853, 0.0
    %v1917 = vmax.f32 %v1856, 0.0
    %v1918 = vmax.f32 %v1859, 0.0
    %v1919 = vmax.f32 %v1862, 0.0
    %v1920 = vmax.f32 %v1865, 0.0
    %v1921 = vmax.f32 %v1868, 0.0
    %v1922 = vmax.f32 %v1871, 0.0
    %v1923 = vmax.f32 %v1874, 0.0
    %v1924 = vmax.f32 %v1877, 0.0
    %v1925 = vmax.f32 %v1880, 0.0
    %v1926 = vmax.f32 %v1883, 0.0
    %v1927 = vmax.f32 %v1886, 0.0
    %v1928 = vmax.f32 %v1889, 0.0
    %v1929 = vmax.f32 %v1892, 0.0
    %v1930 = vmax.f32 %v1895, 0.0
    %v1931 = vmax.f32 %v1898, 0.0
    %v1932 = vmin.f32 %v1900, 6.0
    %v1933 = vmin.f32 %v1901, 6.0
    %v1934 = vmin.f32 %v1902, 6.0
    %v1935 = vmin.f32 %v1903, 6.0
    %v1936 = vmin.f32 %v1904, 6.0
    %v1937 = vmin.f32 %v1905, 6.0
    %v1938 = vmin.f32 %v1906, 6.0
    %v1939 = vmin.f32 %v1907, 6.0
    %v1940 = vmin.f32 %v1908, 6.0
    %v1941 = vmin.f32 %v1909, 6.0
    %v1942 = vmin.f32 %v1910, 6.0
    %v1943 = vmin.f32 %v1911, 6.0
    %v1944 = vmin.f32 %v1912, 6.0
    %v1945 = vmin.f32 %v1913, 6.0
    %v1946 = vmin.f32 %v1914, 6.0
    %v1947 = vmin.f32 %v1915, 6.0
    %v1948 = vmin.f32 %v1916, 6.0
    %v1949 = vmin.f32 %v1917, 6.0
    %v1950 = vmin.f32 %v1918, 6.0
    %v1951 = vmin.f32 %v1919, 6.0
    %v1952 = vmin.f32 %v1920, 6.0
    %v1953 = vmin.f32 %v1921, 6.0
    %v1954 = vmin.f32 %v1922, 6.0
    %v1955 = vmin.f32 %v1923, 6.0
    %v1956 = vmin.f32 %v1924, 6.0
    %v1957 = vmin.f32 %v1925, 6.0
    %v1958 = vmin.f32 %v1926, 6.0
    %v1959 = vmin.f32 %v1927, 6.0
    %v1960 = vmin.f32 %v1928, 6.0
    %v1961 = vmin.f32 %v1929, 6.0
    %v1962 = vmin.f32 %v1930, 6.0
    %v1963 = vmin.f32 %v1931, 6.0
    %s1964 = scalar_lea.vmem [#allocation2], 576
    %1965 = vst.msk [vmem:[%s1964] sm:$0xff] %vm423, 0.0
    %1966 = vst.msk [vmem:[%s1964 + $0x8] sm:$0xff] %vm423, 0.0
    %1967 = vst.msk [vmem:[%s1964 + $0x10] sm:$0xff] %vm423, 0.0
    %1968 = vst.msk [vmem:[%s1964 + $0x18] sm:$0xff] %vm423, 0.0
    %s1969 = scalar_lea.vmem [#allocation2], 1120
    %1970 = vst.msk [vmem:[%s1969] sm:$0xff] %vm423, 0.0
    %1971 = vst.msk [vmem:[%s1969 + $0x8] sm:$0xff] %vm423, 0.0
    %1972 = vst.msk [vmem:[%s1969 + $0x10] sm:$0xff] %vm423, 0.0
    %1973 = vst.msk [vmem:[%s1969 + $0x18] sm:$0xff] %vm423, 0.0
    %1974 = vst.msk [vmem:[%s1964 + $0x7] sm:$0x1] %vm433, 0.0
    %1975 = vst.msk [vmem:[%s1964 + $0x27] sm:$0x1] %vm433, 0.0
    %1976 = vst.msk [vmem:[%s1964 + $0x47] sm:$0x1] %vm433, 0.0
    %1977 = vst.msk [vmem:[%s1964 + $0x67] sm:$0x1] %vm433, 0.0
    %1978 = vst.msk [vmem:[%s1964 + $0x87] sm:$0x1] %vm433, 0.0
    %1979 = vst.msk [vmem:[%s1964 + $0xa7] sm:$0x1] %vm433, 0.0
    %1980 = vst.msk [vmem:[%s1964 + $0xc7] sm:$0x1] %vm433, 0.0
    %1981 = vst.msk [vmem:[%s1964 + $0xe7] sm:$0x1] %vm433, 0.0
    %1982 = vst.msk [vmem:[%s1964 + $0x107] sm:$0x1] %vm433, 0.0
    %1983 = vst.msk [vmem:[%s1964 + $0x127] sm:$0x1] %vm433, 0.0
    %1984 = vst.msk [vmem:[%s1964 + $0x147] sm:$0x1] %vm433, 0.0
    %1985 = vst.msk [vmem:[%s1964 + $0x167] sm:$0x1] %vm433, 0.0
    %1986 = vst.msk [vmem:[%s1964 + $0x187] sm:$0x1] %vm433, 0.0
    %1987 = vst.msk [vmem:[%s1964 + $0x1a7] sm:$0x1] %vm433, 0.0
    %1988 = vst.msk [vmem:[%s1964 + $0x1c7] sm:$0x1] %vm433, 0.0
    %1989 = vst.msk [vmem:[%s1964 + $0x1e7] sm:$0x1] %vm433, 0.0
    %1990 = vst.msk [vmem:[%s1964 + $0x207] sm:$0x1] %vm433, 0.0
    %1991 = vst.msk [vmem:[%s1964 + $0x227] sm:$0x1] %vm433, 0.0
    %1992 = vst.msk [vmem:[%s1964 + $0x18] sm:$0x1] %vm433, 0.0
    %1993 = vst.msk [vmem:[%s1964 + $0x38] sm:$0x1] %vm433, 0.0
    %1994 = vst.msk [vmem:[%s1964 + $0x58] sm:$0x1] %vm433, 0.0
    %1995 = vst.msk [vmem:[%s1964 + $0x78] sm:$0x1] %vm433, 0.0
    %1996 = vst.msk [vmem:[%s1964 + $0x98] sm:$0x1] %vm433, 0.0
    %1997 = vst.msk [vmem:[%s1964 + $0xb8] sm:$0x1] %vm433, 0.0
    %1998 = vst.msk [vmem:[%s1964 + $0xd8] sm:$0x1] %vm433, 0.0
    %1999 = vst.msk [vmem:[%s1964 + $0xf8] sm:$0x1] %vm433, 0.0
    %2000 = vst.msk [vmem:[%s1964 + $0x118] sm:$0x1] %vm433, 0.0
    %2001 = vst.msk [vmem:[%s1964 + $0x138] sm:$0x1] %vm433, 0.0
    %2002 = vst.msk [vmem:[%s1964 + $0x158] sm:$0x1] %vm433, 0.0
    %2003 = vst.msk [vmem:[%s1964 + $0x178] sm:$0x1] %vm433, 0.0
    %2004 = vst.msk [vmem:[%s1964 + $0x198] sm:$0x1] %vm433, 0.0
    %2005 = vst.msk [vmem:[%s1964 + $0x1b8] sm:$0x1] %vm433, 0.0
    %2006 = vst.msk [vmem:[%s1964 + $0x1d8] sm:$0x1] %vm433, 0.0
    %2007 = vst.msk [vmem:[%s1964 + $0x1f8] sm:$0x1] %vm433, 0.0
    %2008 = vst.msk [vmem:[%s1964 + $0x218] sm:$0x1] %vm433, 0.0
    %2009 = vst.msk [vmem:[%s1964 + $0x238] sm:$0x1] %vm433, 0.0
    %s2010 = scalar_lea.vmem [#allocation2], 608
    %2011 = vst.msk [vmem:[%s2010 + $0x8] sm:$0xff] %vm423, %v1932
    %2012 = vst.msk [vmem:[%s2010 + $0x10] sm:$0xff] %vm423, %v1933
    %2013 = vst.msk [vmem:[%s2010 + $0x28] sm:$0xff] %vm423, %v1934
    %2014 = vst.msk [vmem:[%s2010 + $0x30] sm:$0xff] %vm423, %v1935
    %2015 = vst.msk [vmem:[%s2010 + $0x48] sm:$0xff] %vm423, %v1936
    %2016 = vst.msk [vmem:[%s2010 + $0x50] sm:$0xff] %vm423, %v1937
    %2017 = vst.msk [vmem:[%s2010 + $0x68] sm:$0xff] %vm423, %v1938
    %2018 = vst.msk [vmem:[%s2010 + $0x70] sm:$0xff] %vm423, %v1939
    %2019 = vst.msk [vmem:[%s2010 + $0x88] sm:$0xff] %vm423, %v1940
    %2020 = vst.msk [vmem:[%s2010 + $0x90] sm:$0xff] %vm423, %v1941
    %2021 = vst.msk [vmem:[%s2010 + $0xa8] sm:$0xff] %vm423, %v1942
    %2022 = vst.msk [vmem:[%s2010 + $0xb0] sm:$0xff] %vm423, %v1943
    %2023 = vst.msk [vmem:[%s2010 + $0xc8] sm:$0xff] %vm423, %v1944
    %2024 = vst.msk [vmem:[%s2010 + $0xd0] sm:$0xff] %vm423, %v1945
    %2025 = vst.msk [vmem:[%s2010 + $0xe8] sm:$0xff] %vm423, %v1946
    %2026 = vst.msk [vmem:[%s2010 + $0xf0] sm:$0xff] %vm423, %v1947
    %2027 = vst.msk [vmem:[%s2010 + $0x108] sm:$0xff] %vm423, %v1948
    %2028 = vst.msk [vmem:[%s2010 + $0x110] sm:$0xff] %vm423, %v1949
    %2029 = vst.msk [vmem:[%s2010 + $0x128] sm:$0xff] %vm423, %v1950
    %2030 = vst.msk [vmem:[%s2010 + $0x130] sm:$0xff] %vm423, %v1951
    %2031 = vst.msk [vmem:[%s2010 + $0x148] sm:$0xff] %vm423, %v1952
    %2032 = vst.msk [vmem:[%s2010 + $0x150] sm:$0xff] %vm423, %v1953
    %2033 = vst.msk [vmem:[%s2010 + $0x168] sm:$0xff] %vm423, %v1954
    %2034 = vst.msk [vmem:[%s2010 + $0x170] sm:$0xff] %vm423, %v1955
    %2035 = vst.msk [vmem:[%s2010 + $0x188] sm:$0xff] %vm423, %v1956
    %2036 = vst.msk [vmem:[%s2010 + $0x190] sm:$0xff] %vm423, %v1957
    %2037 = vst.msk [vmem:[%s2010 + $0x1a8] sm:$0xff] %vm423, %v1958
    %2038 = vst.msk [vmem:[%s2010 + $0x1b0] sm:$0xff] %vm423, %v1959
    %2039 = vst.msk [vmem:[%s2010 + $0x1c8] sm:$0xff] %vm423, %v1960
    %2040 = vst.msk [vmem:[%s2010 + $0x1d0] sm:$0xff] %vm423, %v1961
    %2041 = vst.msk [vmem:[%s2010 + $0x1e8] sm:$0xff] %vm423, %v1962
    %2042 = vst.msk [vmem:[%s2010 + $0x1f0] sm:$0xff] %vm423, %v1963
    %v2043 = vld [vmem:[%s1964 + $0x7] sm:$0xff]
    %v2044 = vld [vmem:[%s1964 + $0xf] sm:$0xff]
    %v2045 = vld [vmem:[%s1964 + $0x27] sm:$0xff]
    %v2046 = vld [vmem:[%s1964 + $0x2f] sm:$0xff]
    %v2047 = vld [vmem:[%s1964 + $0x47] sm:$0xff]
    %v2048 = vld [vmem:[%s1964 + $0x4f] sm:$0xff]
    %v2049 = vld [vmem:[%s1964 + $0x67] sm:$0xff]
    %v2050 = vld [vmem:[%s1964 + $0x6f] sm:$0xff]
    %v2051 = vld [vmem:[%s1964 + $0x87] sm:$0xff]
    %v2052 = vld [vmem:[%s1964 + $0x8f] sm:$0xff]
    %v2053 = vld [vmem:[%s1964 + $0xa7] sm:$0xff]
    %v2054 = vld [vmem:[%s1964 + $0xaf] sm:$0xff]
    %v2055 = vld [vmem:[%s1964 + $0xc7] sm:$0xff]
    %v2056 = vld [vmem:[%s1964 + $0xcf] sm:$0xff]
    %v2057 = vld [vmem:[%s1964 + $0xe7] sm:$0xff]
    %v2058 = vld [vmem:[%s1964 + $0xef] sm:$0xff]
    %v2059 = vld [vmem:[%s1964 + $0x107] sm:$0xff]
    %v2060 = vld [vmem:[%s1964 + $0x10f] sm:$0xff]
    %v2061 = vld [vmem:[%s1964 + $0x127] sm:$0xff]
    %v2062 = vld [vmem:[%s1964 + $0x12f] sm:$0xff]
    %v2063 = vld [vmem:[%s1964 + $0x147] sm:$0xff]
    %v2064 = vld [vmem:[%s1964 + $0x14f] sm:$0xff]
    %v2065 = vld [vmem:[%s1964 + $0x167] sm:$0xff]
    %v2066 = vld [vmem:[%s1964 + $0x16f] sm:$0xff]
    %v2067 = vld [vmem:[%s1964 + $0x187] sm:$0xff]
    %v2068 = vld [vmem:[%s1964 + $0x18f] sm:$0xff]
    %v2069 = vld [vmem:[%s1964 + $0x1a7] sm:$0xff]
    %v2070 = vld [vmem:[%s1964 + $0x1af] sm:$0xff]
    %v2071 = vld [vmem:[%s1964 + $0x1c7] sm:$0xff]
    %v2072 = vld [vmem:[%s1964 + $0x1cf] sm:$0xff]
    %v2073 = vld [vmem:[%s1964 + $0x1e7] sm:$0xff]
    %v2074 = vld [vmem:[%s1964 + $0x1ef] sm:$0xff]
    %v2075 = vmul.f32 %v2043, %v535
    %v2076 = vmul.f32 %v2044, %v535
    %v2077 = vmul.f32 %v2045, %v535
    %v2078 = vmul.f32 %v2046, %v535
    %v2079 = vmul.f32 %v2047, %v535
    %v2080 = vmul.f32 %v2048, %v535
    %v2081 = vmul.f32 %v2049, %v535
    %v2082 = vmul.f32 %v2050, %v535
    %v2083 = vmul.f32 %v2051, %v535
    %v2084 = vmul.f32 %v2052, %v535
    %v2085 = vmul.f32 %v2053, %v535
    %v2086 = vmul.f32 %v2054, %v535
    %v2087 = vmul.f32 %v2055, %v535
    %v2088 = vmul.f32 %v2056, %v535
    %v2089 = vmul.f32 %v2057, %v535
    %v2090 = vmul.f32 %v2058, %v535
    %v2091 = vmul.f32 %v2059, %v535
    %v2092 = vmul.f32 %v2060, %v535
    %v2093 = vmul.f32 %v2061, %v535
    %v2094 = vmul.f32 %v2062, %v535
    %v2095 = vmul.f32 %v2063, %v535
    %v2096 = vmul.f32 %v2064, %v535
    %v2097 = vmul.f32 %v2065, %v535
    %v2098 = vmul.f32 %v2066, %v535
    %v2099 = vmul.f32 %v2067, %v535
    %v2100 = vmul.f32 %v2068, %v535
    %v2101 = vmul.f32 %v2069, %v535
    %v2102 = vmul.f32 %v2070, %v535
    %v2103 = vmul.f32 %v2071, %v535
    %v2104 = vmul.f32 %v2072, %v535
    %v2105 = vmul.f32 %v2073, %v535
    %v2106 = vmul.f32 %v2074, %v535
    %v2107 = vadd.f32 %v2075, 0.0
    %v2108 = vadd.f32 %v2076, 0.0
    %v2109 = vadd.f32 %v2077, 0.0
    %v2110 = vadd.f32 %v2078, 0.0
    %v2111 = vadd.f32 %v2079, 0.0
    %v2112 = vadd.f32 %v2080, 0.0
    %v2113 = vadd.f32 %v2081, 0.0
    %v2114 = vadd.f32 %v2082, 0.0
    %v2115 = vadd.f32 %v2083, 0.0
    %v2116 = vadd.f32 %v2084, 0.0
    %v2117 = vadd.f32 %v2085, 0.0
    %v2118 = vadd.f32 %v2086, 0.0
    %v2119 = vadd.f32 %v2087, 0.0
    %v2120 = vadd.f32 %v2088, 0.0
    %v2121 = vadd.f32 %v2089, 0.0
    %v2122 = vadd.f32 %v2090, 0.0
    %v2123 = vadd.f32 %v2091, 0.0
    %v2124 = vadd.f32 %v2092, 0.0
    %v2125 = vadd.f32 %v2093, 0.0
    %v2126 = vadd.f32 %v2094, 0.0
    %v2127 = vadd.f32 %v2095, 0.0
    %v2128 = vadd.f32 %v2096, 0.0
    %v2129 = vadd.f32 %v2097, 0.0
    %v2130 = vadd.f32 %v2098, 0.0
    %v2131 = vadd.f32 %v2099, 0.0
    %v2132 = vadd.f32 %v2100, 0.0
    %v2133 = vadd.f32 %v2101, 0.0
    %v2134 = vadd.f32 %v2102, 0.0
    %v2135 = vadd.f32 %v2103, 0.0
    %v2136 = vadd.f32 %v2104, 0.0
    %v2137 = vadd.f32 %v2105, 0.0
    %v2138 = vadd.f32 %v2106, 0.0
    %v2139 = vld [vmem:[%s1964 + $0x8] sm:$0xff]
    %v2140 = vld [vmem:[%s1964 + $0x10] sm:$0xff]
    %v2141 = vld [vmem:[%s1964 + $0x28] sm:$0xff]
    %v2142 = vld [vmem:[%s1964 + $0x30] sm:$0xff]
    %v2143 = vld [vmem:[%s1964 + $0x48] sm:$0xff]
    %v2144 = vld [vmem:[%s1964 + $0x50] sm:$0xff]
    %v2145 = vld [vmem:[%s1964 + $0x68] sm:$0xff]
    %v2146 = vld [vmem:[%s1964 + $0x70] sm:$0xff]
    %v2147 = vld [vmem:[%s1964 + $0x88] sm:$0xff]
    %v2148 = vld [vmem:[%s1964 + $0x90] sm:$0xff]
    %v2149 = vld [vmem:[%s1964 + $0xa8] sm:$0xff]
    %v2150 = vld [vmem:[%s1964 + $0xb0] sm:$0xff]
    %v2151 = vld [vmem:[%s1964 + $0xc8] sm:$0xff]
    %v2152 = vld [vmem:[%s1964 + $0xd0] sm:$0xff]
    %v2153 = vld [vmem:[%s1964 + $0xe8] sm:$0xff]
    %v2154 = vld [vmem:[%s1964 + $0xf0] sm:$0xff]
    %v2155 = vld [vmem:[%s1964 + $0x108] sm:$0xff]
    %v2156 = vld [vmem:[%s1964 + $0x110] sm:$0xff]
    %v2157 = vld [vmem:[%s1964 + $0x128] sm:$0xff]
    %v2158 = vld [vmem:[%s1964 + $0x130] sm:$0xff]
    %v2159 = vld [vmem:[%s1964 + $0x148] sm:$0xff]
    %v2160 = vld [vmem:[%s1964 + $0x150] sm:$0xff]
    %v2161 = vld [vmem:[%s1964 + $0x168] sm:$0xff]
    %v2162 = vld [vmem:[%s1964 + $0x170] sm:$0xff]
    %v2163 = vld [vmem:[%s1964 + $0x188] sm:$0xff]
    %v2164 = vld [vmem:[%s1964 + $0x190] sm:$0xff]
    %v2165 = vld [vmem:[%s1964 + $0x1a8] sm:$0xff]
    %v2166 = vld [vmem:[%s1964 + $0x1b0] sm:$0xff]
    %v2167 = vld [vmem:[%s1964 + $0x1c8] sm:$0xff]
    %v2168 = vld [vmem:[%s1964 + $0x1d0] sm:$0xff]
    %v2169 = vld [vmem:[%s1964 + $0x1e8] sm:$0xff]
    %v2170 = vld [vmem:[%s1964 + $0x1f0] sm:$0xff]
    %v2171 = vmul.f32 %v2139, %v632
    %v2172 = vmul.f32 %v2140, %v632
    %v2173 = vmul.f32 %v2141, %v632
    %v2174 = vmul.f32 %v2142, %v632
    %v2175 = vmul.f32 %v2143, %v632
    %v2176 = vmul.f32 %v2144, %v632
    %v2177 = vmul.f32 %v2145, %v632
    %v2178 = vmul.f32 %v2146, %v632
    %v2179 = vmul.f32 %v2147, %v632
    %v2180 = vmul.f32 %v2148, %v632
    %v2181 = vmul.f32 %v2149, %v632
    %v2182 = vmul.f32 %v2150, %v632
    %v2183 = vmul.f32 %v2151, %v632
    %v2184 = vmul.f32 %v2152, %v632
    %v2185 = vmul.f32 %v2153, %v632
    %v2186 = vmul.f32 %v2154, %v632
    %v2187 = vmul.f32 %v2155, %v632
    %v2188 = vmul.f32 %v2156, %v632
    %v2189 = vmul.f32 %v2157, %v632
    %v2190 = vmul.f32 %v2158, %v632
    %v2191 = vmul.f32 %v2159, %v632
    %v2192 = vmul.f32 %v2160, %v632
    %v2193 = vmul.f32 %v2161, %v632
    %v2194 = vmul.f32 %v2162, %v632
    %v2195 = vmul.f32 %v2163, %v632
    %v2196 = vmul.f32 %v2164, %v632
    %v2197 = vmul.f32 %v2165, %v632
    %v2198 = vmul.f32 %v2166, %v632
    %v2199 = vmul.f32 %v2167, %v632
    %v2200 = vmul.f32 %v2168, %v632
    %v2201 = vmul.f32 %v2169, %v632
    %v2202 = vmul.f32 %v2170, %v632
    %v2203 = vadd.f32 %v2107, %v2171
    %v2204 = vadd.f32 %v2108, %v2172
    %v2205 = vadd.f32 %v2109, %v2173
    %v2206 = vadd.f32 %v2110, %v2174
    %v2207 = vadd.f32 %v2111, %v2175
    %v2208 = vadd.f32 %v2112, %v2176
    %v2209 = vadd.f32 %v2113, %v2177
    %v2210 = vadd.f32 %v2114, %v2178
    %v2211 = vadd.f32 %v2115, %v2179
    %v2212 = vadd.f32 %v2116, %v2180
    %v2213 = vadd.f32 %v2117, %v2181
    %v2214 = vadd.f32 %v2118, %v2182
    %v2215 = vadd.f32 %v2119, %v2183
    %v2216 = vadd.f32 %v2120, %v2184
    %v2217 = vadd.f32 %v2121, %v2185
    %v2218 = vadd.f32 %v2122, %v2186
    %v2219 = vadd.f32 %v2123, %v2187
    %v2220 = vadd.f32 %v2124, %v2188
    %v2221 = vadd.f32 %v2125, %v2189
    %v2222 = vadd.f32 %v2126, %v2190
    %v2223 = vadd.f32 %v2127, %v2191
    %v2224 = vadd.f32 %v2128, %v2192
    %v2225 = vadd.f32 %v2129, %v2193
    %v2226 = vadd.f32 %v2130, %v2194
    %v2227 = vadd.f32 %v2131, %v2195
    %v2228 = vadd.f32 %v2132, %v2196
    %v2229 = vadd.f32 %v2133, %v2197
    %v2230 = vadd.f32 %v2134, %v2198
    %v2231 = vadd.f32 %v2135, %v2199
    %v2232 = vadd.f32 %v2136, %v2200
    %v2233 = vadd.f32 %v2137, %v2201
    %v2234 = vadd.f32 %v2138, %v2202
    %v2235 = vld [vmem:[%s1964 + $0x9] sm:$0xff]
    %v2236 = vld [vmem:[%s1964 + $0x11] sm:$0xff]
    %v2237 = vld [vmem:[%s1964 + $0x29] sm:$0xff]
    %v2238 = vld [vmem:[%s1964 + $0x31] sm:$0xff]
    %v2239 = vld [vmem:[%s1964 + $0x49] sm:$0xff]
    %v2240 = vld [vmem:[%s1964 + $0x51] sm:$0xff]
    %v2241 = vld [vmem:[%s1964 + $0x69] sm:$0xff]
    %v2242 = vld [vmem:[%s1964 + $0x71] sm:$0xff]
    %v2243 = vld [vmem:[%s1964 + $0x89] sm:$0xff]
    %v2244 = vld [vmem:[%s1964 + $0x91] sm:$0xff]
    %v2245 = vld [vmem:[%s1964 + $0xa9] sm:$0xff]
    %v2246 = vld [vmem:[%s1964 + $0xb1] sm:$0xff]
    %v2247 = vld [vmem:[%s1964 + $0xc9] sm:$0xff]
    %v2248 = vld [vmem:[%s1964 + $0xd1] sm:$0xff]
    %v2249 = vld [vmem:[%s1964 + $0xe9] sm:$0xff]
    %v2250 = vld [vmem:[%s1964 + $0xf1] sm:$0xff]
    %v2251 = vld [vmem:[%s1964 + $0x109] sm:$0xff]
    %v2252 = vld [vmem:[%s1964 + $0x111] sm:$0xff]
    %v2253 = vld [vmem:[%s1964 + $0x129] sm:$0xff]
    %v2254 = vld [vmem:[%s1964 + $0x131] sm:$0xff]
    %v2255 = vld [vmem:[%s1964 + $0x149] sm:$0xff]
    %v2256 = vld [vmem:[%s1964 + $0x151] sm:$0xff]
    %v2257 = vld [vmem:[%s1964 + $0x169] sm:$0xff]
    %v2258 = vld [vmem:[%s1964 + $0x171] sm:$0xff]
    %v2259 = vld [vmem:[%s1964 + $0x189] sm:$0xff]
    %v2260 = vld [vmem:[%s1964 + $0x191] sm:$0xff]
    %v2261 = vld [vmem:[%s1964 + $0x1a9] sm:$0xff]
    %v2262 = vld [vmem:[%s1964 + $0x1b1] sm:$0xff]
    %v2263 = vld [vmem:[%s1964 + $0x1c9] sm:$0xff]
    %v2264 = vld [vmem:[%s1964 + $0x1d1] sm:$0xff]
    %v2265 = vld [vmem:[%s1964 + $0x1e9] sm:$0xff]
    %v2266 = vld [vmem:[%s1964 + $0x1f1] sm:$0xff]
    %v2267 = vmul.f32 %v2235, %v729
    %v2268 = vmul.f32 %v2236, %v729
    %v2269 = vmul.f32 %v2237, %v729
    %v2270 = vmul.f32 %v2238, %v729
    %v2271 = vmul.f32 %v2239, %v729
    %v2272 = vmul.f32 %v2240, %v729
    %v2273 = vmul.f32 %v2241, %v729
    %v2274 = vmul.f32 %v2242, %v729
    %v2275 = vmul.f32 %v2243, %v729
    %v2276 = vmul.f32 %v2244, %v729
    %v2277 = vmul.f32 %v2245, %v729
    %v2278 = vmul.f32 %v2246, %v729
    %v2279 = vmul.f32 %v2247, %v729
    %v2280 = vmul.f32 %v2248, %v729
    %v2281 = vmul.f32 %v2249, %v729
    %v2282 = vmul.f32 %v2250, %v729
    %v2283 = vmul.f32 %v2251, %v729
    %v2284 = vmul.f32 %v2252, %v729
    %v2285 = vmul.f32 %v2253, %v729
    %v2286 = vmul.f32 %v2254, %v729
    %v2287 = vmul.f32 %v2255, %v729
    %v2288 = vmul.f32 %v2256, %v729
    %v2289 = vmul.f32 %v2257, %v729
    %v2290 = vmul.f32 %v2258, %v729
    %v2291 = vmul.f32 %v2259, %v729
    %v2292 = vmul.f32 %v2260, %v729
    %v2293 = vmul.f32 %v2261, %v729
    %v2294 = vmul.f32 %v2262, %v729
    %v2295 = vmul.f32 %v2263, %v729
    %v2296 = vmul.f32 %v2264, %v729
    %v2297 = vmul.f32 %v2265, %v729
    %v2298 = vmul.f32 %v2266, %v729
    %v2299 = vadd.f32 %v2203, %v2267
    %v2300 = vadd.f32 %v2204, %v2268
    %v2301 = vadd.f32 %v2205, %v2269
    %v2302 = vadd.f32 %v2206, %v2270
    %v2303 = vadd.f32 %v2207, %v2271
    %v2304 = vadd.f32 %v2208, %v2272
    %v2305 = vadd.f32 %v2209, %v2273
    %v2306 = vadd.f32 %v2210, %v2274
    %v2307 = vadd.f32 %v2211, %v2275
    %v2308 = vadd.f32 %v2212, %v2276
    %v2309 = vadd.f32 %v2213, %v2277
    %v2310 = vadd.f32 %v2214, %v2278
    %v2311 = vadd.f32 %v2215, %v2279
    %v2312 = vadd.f32 %v2216, %v2280
    %v2313 = vadd.f32 %v2217, %v2281
    %v2314 = vadd.f32 %v2218, %v2282
    %v2315 = vadd.f32 %v2219, %v2283
    %v2316 = vadd.f32 %v2220, %v2284
    %v2317 = vadd.f32 %v2221, %v2285
    %v2318 = vadd.f32 %v2222, %v2286
    %v2319 = vadd.f32 %v2223, %v2287
    %v2320 = vadd.f32 %v2224, %v2288
    %v2321 = vadd.f32 %v2225, %v2289
    %v2322 = vadd.f32 %v2226, %v2290
    %v2323 = vadd.f32 %v2227, %v2291
    %v2324 = vadd.f32 %v2228, %v2292
    %v2325 = vadd.f32 %v2229, %v2293
    %v2326 = vadd.f32 %v2230, %v2294
    %v2327 = vadd.f32 %v2231, %v2295
    %v2328 = vadd.f32 %v2232, %v2296
    %v2329 = vadd.f32 %v2233, %v2297
    %v2330 = vadd.f32 %v2234, %v2298
    %v2331 = vld [vmem:[%s2010 + $0x7] sm:$0xff]
    %v2332 = vld [vmem:[%s2010 + $0xf] sm:$0xff]
    %v2333 = vld [vmem:[%s2010 + $0x27] sm:$0xff]
    %v2334 = vld [vmem:[%s2010 + $0x2f] sm:$0xff]
    %v2335 = vld [vmem:[%s2010 + $0x47] sm:$0xff]
    %v2336 = vld [vmem:[%s2010 + $0x4f] sm:$0xff]
    %v2337 = vld [vmem:[%s2010 + $0x67] sm:$0xff]
    %v2338 = vld [vmem:[%s2010 + $0x6f] sm:$0xff]
    %v2339 = vld [vmem:[%s2010 + $0x87] sm:$0xff]
    %v2340 = vld [vmem:[%s2010 + $0x8f] sm:$0xff]
    %v2341 = vld [vmem:[%s2010 + $0xa7] sm:$0xff]
    %v2342 = vld [vmem:[%s2010 + $0xaf] sm:$0xff]
    %v2343 = vld [vmem:[%s2010 + $0xc7] sm:$0xff]
    %v2344 = vld [vmem:[%s2010 + $0xcf] sm:$0xff]
    %v2345 = vld [vmem:[%s2010 + $0xe7] sm:$0xff]
    %v2346 = vld [vmem:[%s2010 + $0xef] sm:$0xff]
    %v2347 = vld [vmem:[%s2010 + $0x107] sm:$0xff]
    %v2348 = vld [vmem:[%s2010 + $0x10f] sm:$0xff]
    %v2349 = vld [vmem:[%s2010 + $0x127] sm:$0xff]
    %v2350 = vld [vmem:[%s2010 + $0x12f] sm:$0xff]
    %v2351 = vld [vmem:[%s2010 + $0x147] sm:$0xff]
    %v2352 = vld [vmem:[%s2010 + $0x14f] sm:$0xff]
    %v2353 = vld [vmem:[%s2010 + $0x167] sm:$0xff]
    %v2354 = vld [vmem:[%s2010 + $0x16f] sm:$0xff]
    %v2355 = vld [vmem:[%s2010 + $0x187] sm:$0xff]
    %v2356 = vld [vmem:[%s2010 + $0x18f] sm:$0xff]
    %v2357 = vld [vmem:[%s2010 + $0x1a7] sm:$0xff]
    %v2358 = vld [vmem:[%s2010 + $0x1af] sm:$0xff]
    %v2359 = vld [vmem:[%s2010 + $0x1c7] sm:$0xff]
    %v2360 = vld [vmem:[%s2010 + $0x1cf] sm:$0xff]
    %v2361 = vld [vmem:[%s2010 + $0x1e7] sm:$0xff]
    %v2362 = vld [vmem:[%s2010 + $0x1ef] sm:$0xff]
    %v2363 = vmul.f32 %v2331, %v826
    %v2364 = vmul.f32 %v2332, %v826
    %v2365 = vmul.f32 %v2333, %v826
    %v2366 = vmul.f32 %v2334, %v826
    %v2367 = vmul.f32 %v2335, %v826
    %v2368 = vmul.f32 %v2336, %v826
    %v2369 = vmul.f32 %v2337, %v826
    %v2370 = vmul.f32 %v2338, %v826
    %v2371 = vmul.f32 %v2339, %v826
    %v2372 = vmul.f32 %v2340, %v826
    %v2373 = vmul.f32 %v2341, %v826
    %v2374 = vmul.f32 %v2342, %v826
    %v2375 = vmul.f32 %v2343, %v826
    %v2376 = vmul.f32 %v2344, %v826
    %v2377 = vmul.f32 %v2345, %v826
    %v2378 = vmul.f32 %v2346, %v826
    %v2379 = vmul.f32 %v2347, %v826
    %v2380 = vmul.f32 %v2348, %v826
    %v2381 = vmul.f32 %v2349, %v826
    %v2382 = vmul.f32 %v2350, %v826
    %v2383 = vmul.f32 %v2351, %v826
    %v2384 = vmul.f32 %v2352, %v826
    %v2385 = vmul.f32 %v2353, %v826
    %v2386 = vmul.f32 %v2354, %v826
    %v2387 = vmul.f32 %v2355, %v826
    %v2388 = vmul.f32 %v2356, %v826
    %v2389 = vmul.f32 %v2357, %v826
    %v2390 = vmul.f32 %v2358, %v826
    %v2391 = vmul.f32 %v2359, %v826
    %v2392 = vmul.f32 %v2360, %v826
    %v2393 = vmul.f32 %v2361, %v826
    %v2394 = vmul.f32 %v2362, %v826
    %v2395 = vadd.f32 %v2299, %v2363
    %v2396 = vadd.f32 %v2300, %v2364
    %v2397 = vadd.f32 %v2301, %v2365
    %v2398 = vadd.f32 %v2302, %v2366
    %v2399 = vadd.f32 %v2303, %v2367
    %v2400 = vadd.f32 %v2304, %v2368
    %v2401 = vadd.f32 %v2305, %v2369
    %v2402 = vadd.f32 %v2306, %v2370
    %v2403 = vadd.f32 %v2307, %v2371
    %v2404 = vadd.f32 %v2308, %v2372
    %v2405 = vadd.f32 %v2309, %v2373
    %v2406 = vadd.f32 %v2310, %v2374
    %v2407 = vadd.f32 %v2311, %v2375
    %v2408 = vadd.f32 %v2312, %v2376
    %v2409 = vadd.f32 %v2313, %v2377
    %v2410 = vadd.f32 %v2314, %v2378
    %v2411 = vadd.f32 %v2315, %v2379
    %v2412 = vadd.f32 %v2316, %v2380
    %v2413 = vadd.f32 %v2317, %v2381
    %v2414 = vadd.f32 %v2318, %v2382
    %v2415 = vadd.f32 %v2319, %v2383
    %v2416 = vadd.f32 %v2320, %v2384
    %v2417 = vadd.f32 %v2321, %v2385
    %v2418 = vadd.f32 %v2322, %v2386
    %v2419 = vadd.f32 %v2323, %v2387
    %v2420 = vadd.f32 %v2324, %v2388
    %v2421 = vadd.f32 %v2325, %v2389
    %v2422 = vadd.f32 %v2326, %v2390
    %v2423 = vadd.f32 %v2327, %v2391
    %v2424 = vadd.f32 %v2328, %v2392
    %v2425 = vadd.f32 %v2329, %v2393
    %v2426 = vadd.f32 %v2330, %v2394
    %v2427 = vld [vmem:[%s2010 + $0x8] sm:$0xff]
    %v2428 = vld [vmem:[%s2010 + $0x10] sm:$0xff]
    %v2429 = vld [vmem:[%s2010 + $0x28] sm:$0xff]
    %v2430 = vld [vmem:[%s2010 + $0x30] sm:$0xff]
    %v2431 = vld [vmem:[%s2010 + $0x48] sm:$0xff]
    %v2432 = vld [vmem:[%s2010 + $0x50] sm:$0xff]
    %v2433 = vld [vmem:[%s2010 + $0x68] sm:$0xff]
    %v2434 = vld [vmem:[%s2010 + $0x70] sm:$0xff]
    %v2435 = vld [vmem:[%s2010 + $0x88] sm:$0xff]
    %v2436 = vld [vmem:[%s2010 + $0x90] sm:$0xff]
    %v2437 = vld [vmem:[%s2010 + $0xa8] sm:$0xff]
    %v2438 = vld [vmem:[%s2010 + $0xb0] sm:$0xff]
    %v2439 = vld [vmem:[%s2010 + $0xc8] sm:$0xff]
    %v2440 = vld [vmem:[%s2010 + $0xd0] sm:$0xff]
    %v2441 = vld [vmem:[%s2010 + $0xe8] sm:$0xff]
    %v2442 = vld [vmem:[%s2010 + $0xf0] sm:$0xff]
    %v2443 = vld [vmem:[%s2010 + $0x108] sm:$0xff]
    %v2444 = vld [vmem:[%s2010 + $0x110] sm:$0xff]
    %v2445 = vld [vmem:[%s2010 + $0x128] sm:$0xff]
    %v2446 = vld [vmem:[%s2010 + $0x130] sm:$0xff]
    %v2447 = vld [vmem:[%s2010 + $0x148] sm:$0xff]
    %v2448 = vld [vmem:[%s2010 + $0x150] sm:$0xff]
    %v2449 = vld [vmem:[%s2010 + $0x168] sm:$0xff]
    %v2450 = vld [vmem:[%s2010 + $0x170] sm:$0xff]
    %v2451 = vld [vmem:[%s2010 + $0x188] sm:$0xff]
    %v2452 = vld [vmem:[%s2010 + $0x190] sm:$0xff]
    %v2453 = vld [vmem:[%s2010 + $0x1a8] sm:$0xff]
    %v2454 = vld [vmem:[%s2010 + $0x1b0] sm:$0xff]
    %v2455 = vld [vmem:[%s2010 + $0x1c8] sm:$0xff]
    %v2456 = vld [vmem:[%s2010 + $0x1d0] sm:$0xff]
    %v2457 = vld [vmem:[%s2010 + $0x1e8] sm:$0xff]
    %v2458 = vld [vmem:[%s2010 + $0x1f0] sm:$0xff]
    %v2459 = vmul.f32 %v2427, %v923
    %v2460 = vmul.f32 %v2428, %v923
    %v2461 = vmul.f32 %v2429, %v923
    %v2462 = vmul.f32 %v2430, %v923
    %v2463 = vmul.f32 %v2431, %v923
    %v2464 = vmul.f32 %v2432, %v923
    %v2465 = vmul.f32 %v2433, %v923
    %v2466 = vmul.f32 %v2434, %v923
    %v2467 = vmul.f32 %v2435, %v923
    %v2468 = vmul.f32 %v2436, %v923
    %v2469 = vmul.f32 %v2437, %v923
    %v2470 = vmul.f32 %v2438, %v923
    %v2471 = vmul.f32 %v2439, %v923
    %v2472 = vmul.f32 %v2440, %v923
    %v2473 = vmul.f32 %v2441, %v923
    %v2474 = vmul.f32 %v2442, %v923
    %v2475 = vmul.f32 %v2443, %v923
    %v2476 = vmul.f32 %v2444, %v923
    %v2477 = vmul.f32 %v2445, %v923
    %v2478 = vmul.f32 %v2446, %v923
    %v2479 = vmul.f32 %v2447, %v923
    %v2480 = vmul.f32 %v2448, %v923
    %v2481 = vmul.f32 %v2449, %v923
    %v2482 = vmul.f32 %v2450, %v923
    %v2483 = vmul.f32 %v2451, %v923
    %v2484 = vmul.f32 %v2452, %v923
    %v2485 = vmul.f32 %v2453, %v923
    %v2486 = vmul.f32 %v2454, %v923
    %v2487 = vmul.f32 %v2455, %v923
    %v2488 = vmul.f32 %v2456, %v923
    %v2489 = vmul.f32 %v2457, %v923
    %v2490 = vmul.f32 %v2458, %v923
    %v2491 = vadd.f32 %v2395, %v2459
    %v2492 = vadd.f32 %v2396, %v2460
    %v2493 = vadd.f32 %v2397, %v2461
    %v2494 = vadd.f32 %v2398, %v2462
    %v2495 = vadd.f32 %v2399, %v2463
    %v2496 = vadd.f32 %v2400, %v2464
    %v2497 = vadd.f32 %v2401, %v2465
    %v2498 = vadd.f32 %v2402, %v2466
    %v2499 = vadd.f32 %v2403, %v2467
    %v2500 = vadd.f32 %v2404, %v2468
    %v2501 = vadd.f32 %v2405, %v2469
    %v2502 = vadd.f32 %v2406, %v2470
    %v2503 = vadd.f32 %v2407, %v2471
    %v2504 = vadd.f32 %v2408, %v2472
    %v2505 = vadd.f32 %v2409, %v2473
    %v2506 = vadd.f32 %v2410, %v2474
    %v2507 = vadd.f32 %v2411, %v2475
    %v2508 = vadd.f32 %v2412, %v2476
    %v2509 = vadd.f32 %v2413, %v2477
    %v2510 = vadd.f32 %v2414, %v2478
    %v2511 = vadd.f32 %v2415, %v2479
    %v2512 = vadd.f32 %v2416, %v2480
    %v2513 = vadd.f32 %v2417, %v2481
    %v2514 = vadd.f32 %v2418, %v2482
    %v2515 = vadd.f32 %v2419, %v2483
    %v2516 = vadd.f32 %v2420, %v2484
    %v2517 = vadd.f32 %v2421, %v2485
    %v2518 = vadd.f32 %v2422, %v2486
    %v2519 = vadd.f32 %v2423, %v2487
    %v2520 = vadd.f32 %v2424, %v2488
    %v2521 = vadd.f32 %v2425, %v2489
    %v2522 = vadd.f32 %v2426, %v2490
    %v2523 = vld [vmem:[%s2010 + $0x9] sm:$0xff]
    %v2524 = vld [vmem:[%s2010 + $0x11] sm:$0xff]
    %v2525 = vld [vmem:[%s2010 + $0x29] sm:$0xff]
    %v2526 = vld [vmem:[%s2010 + $0x31] sm:$0xff]
    %v2527 = vld [vmem:[%s2010 + $0x49] sm:$0xff]
    %v2528 = vld [vmem:[%s2010 + $0x51] sm:$0xff]
    %v2529 = vld [vmem:[%s2010 + $0x69] sm:$0xff]
    %v2530 = vld [vmem:[%s2010 + $0x71] sm:$0xff]
    %v2531 = vld [vmem:[%s2010 + $0x89] sm:$0xff]
    %v2532 = vld [vmem:[%s2010 + $0x91] sm:$0xff]
    %v2533 = vld [vmem:[%s2010 + $0xa9] sm:$0xff]
    %v2534 = vld [vmem:[%s2010 + $0xb1] sm:$0xff]
    %v2535 = vld [vmem:[%s2010 + $0xc9] sm:$0xff]
    %v2536 = vld [vmem:[%s2010 + $0xd1] sm:$0xff]
    %v2537 = vld [vmem:[%s2010 + $0xe9] sm:$0xff]
    %v2538 = vld [vmem:[%s2010 + $0xf1] sm:$0xff]
    %v2539 = vld [vmem:[%s2010 + $0x109] sm:$0xff]
    %v2540 = vld [vmem:[%s2010 + $0x111] sm:$0xff]
    %v2541 = vld [vmem:[%s2010 + $0x129] sm:$0xff]
    %v2542 = vld [vmem:[%s2010 + $0x131] sm:$0xff]
    %v2543 = vld [vmem:[%s2010 + $0x149] sm:$0xff]
    %v2544 = vld [vmem:[%s2010 + $0x151] sm:$0xff]
    %v2545 = vld [vmem:[%s2010 + $0x169] sm:$0xff]
    %v2546 = vld [vmem:[%s2010 + $0x171] sm:$0xff]
    %v2547 = vld [vmem:[%s2010 + $0x189] sm:$0xff]
    %v2548 = vld [vmem:[%s2010 + $0x191] sm:$0xff]
    %v2549 = vld [vmem:[%s2010 + $0x1a9] sm:$0xff]
    %v2550 = vld [vmem:[%s2010 + $0x1b1] sm:$0xff]
    %v2551 = vld [vmem:[%s2010 + $0x1c9] sm:$0xff]
    %v2552 = vld [vmem:[%s2010 + $0x1d1] sm:$0xff]
    %v2553 = vld [vmem:[%s2010 + $0x1e9] sm:$0xff]
    %v2554 = vld [vmem:[%s2010 + $0x1f1] sm:$0xff]
    %v2555 = vmul.f32 %v2523, %v1020
    %v2556 = vmul.f32 %v2524, %v1020
    %v2557 = vmul.f32 %v2525, %v1020
    %v2558 = vmul.f32 %v2526, %v1020
    %v2559 = vmul.f32 %v2527, %v1020
    %v2560 = vmul.f32 %v2528, %v1020
    %v2561 = vmul.f32 %v2529, %v1020
    %v2562 = vmul.f32 %v2530, %v1020
    %v2563 = vmul.f32 %v2531, %v1020
    %v2564 = vmul.f32 %v2532, %v1020
    %v2565 = vmul.f32 %v2533, %v1020
    %v2566 = vmul.f32 %v2534, %v1020
    %v2567 = vmul.f32 %v2535, %v1020
    %v2568 = vmul.f32 %v2536, %v1020
    %v2569 = vmul.f32 %v2537, %v1020
    %v2570 = vmul.f32 %v2538, %v1020
    %v2571 = vmul.f32 %v2539, %v1020
    %v2572 = vmul.f32 %v2540, %v1020
    %v2573 = vmul.f32 %v2541, %v1020
    %v2574 = vmul.f32 %v2542, %v1020
    %v2575 = vmul.f32 %v2543, %v1020
    %v2576 = vmul.f32 %v2544, %v1020
    %v2577 = vmul.f32 %v2545, %v1020
    %v2578 = vmul.f32 %v2546, %v1020
    %v2579 = vmul.f32 %v2547, %v1020
    %v2580 = vmul.f32 %v2548, %v1020
    %v2581 = vmul.f32 %v2549, %v1020
    %v2582 = vmul.f32 %v2550, %v1020
    %v2583 = vmul.f32 %v2551, %v1020
    %v2584 = vmul.f32 %v2552, %v1020
    %v2585 = vmul.f32 %v2553, %v1020
    %v2586 = vmul.f32 %v2554, %v1020
    %v2587 = vadd.f32 %v2491, %v2555
    %v2588 = vadd.f32 %v2492, %v2556
    %v2589 = vadd.f32 %v2493, %v2557
    %v2590 = vadd.f32 %v2494, %v2558
    %v2591 = vadd.f32 %v2495, %v2559
    %v2592 = vadd.f32 %v2496, %v2560
    %v2593 = vadd.f32 %v2497, %v2561
    %v2594 = vadd.f32 %v2498, %v2562
    %v2595 = vadd.f32 %v2499, %v2563
    %v2596 = vadd.f32 %v2500, %v2564
    %v2597 = vadd.f32 %v2501, %v2565
    %v2598 = vadd.f32 %v2502, %v2566
    %v2599 = vadd.f32 %v2503, %v2567
    %v2600 = vadd.f32 %v2504, %v2568
    %v2601 = vadd.f32 %v2505, %v2569
    %v2602 = vadd.f32 %v2506, %v2570
    %v2603 = vadd.f32 %v2507, %v2571
    %v2604 = vadd.f32 %v2508, %v2572
    %v2605 = vadd.f32 %v2509, %v2573
    %v2606 = vadd.f32 %v2510, %v2574
    %v2607 = vadd.f32 %v2511, %v2575
    %v2608 = vadd.f32 %v2512, %v2576
    %v2609 = vadd.f32 %v2513, %v2577
    %v2610 = vadd.f32 %v2514, %v2578
    %v2611 = vadd.f32 %v2515, %v2579
    %v2612 = vadd.f32 %v2516, %v2580
    %v2613 = vadd.f32 %v2517, %v2581
    %v2614 = vadd.f32 %v2518, %v2582
    %v2615 = vadd.f32 %v2519, %v2583
    %v2616 = vadd.f32 %v2520, %v2584
    %v2617 = vadd.f32 %v2521, %v2585
    %v2618 = vadd.f32 %v2522, %v2586
    %s2619 = scalar_lea.vmem [#allocation2], 640
    %v2620 = vld [vmem:[%s2619 + $0x7] sm:$0xff]
    %v2621 = vld [vmem:[%s2619 + $0xf] sm:$0xff]
    %v2622 = vld [vmem:[%s2619 + $0x27] sm:$0xff]
    %v2623 = vld [vmem:[%s2619 + $0x2f] sm:$0xff]
    %v2624 = vld [vmem:[%s2619 + $0x47] sm:$0xff]
    %v2625 = vld [vmem:[%s2619 + $0x4f] sm:$0xff]
    %v2626 = vld [vmem:[%s2619 + $0x67] sm:$0xff]
    %v2627 = vld [vmem:[%s2619 + $0x6f] sm:$0xff]
    %v2628 = vld [vmem:[%s2619 + $0x87] sm:$0xff]
    %v2629 = vld [vmem:[%s2619 + $0x8f] sm:$0xff]
    %v2630 = vld [vmem:[%s2619 + $0xa7] sm:$0xff]
    %v2631 = vld [vmem:[%s2619 + $0xaf] sm:$0xff]
    %v2632 = vld [vmem:[%s2619 + $0xc7] sm:$0xff]
    %v2633 = vld [vmem:[%s2619 + $0xcf] sm:$0xff]
    %v2634 = vld [vmem:[%s2619 + $0xe7] sm:$0xff]
    %v2635 = vld [vmem:[%s2619 + $0xef] sm:$0xff]
    %v2636 = vld [vmem:[%s2619 + $0x107] sm:$0xff]
    %v2637 = vld [vmem:[%s2619 + $0x10f] sm:$0xff]
    %v2638 = vld [vmem:[%s2619 + $0x127] sm:$0xff]
    %v2639 = vld [vmem:[%s2619 + $0x12f] sm:$0xff]
    %v2640 = vld [vmem:[%s2619 + $0x147] sm:$0xff]
    %v2641 = vld [vmem:[%s2619 + $0x14f] sm:$0xff]
    %v2642 = vld [vmem:[%s2619 + $0x167] sm:$0xff]
    %v2643 = vld [vmem:[%s2619 + $0x16f] sm:$0xff]
    %v2644 = vld [vmem:[%s2619 + $0x187] sm:$0xff]
    %v2645 = vld [vmem:[%s2619 + $0x18f] sm:$0xff]
    %v2646 = vld [vmem:[%s2619 + $0x1a7] sm:$0xff]
    %v2647 = vld [vmem:[%s2619 + $0x1af] sm:$0xff]
    %v2648 = vld [vmem:[%s2619 + $0x1c7] sm:$0xff]
    %v2649 = vld [vmem:[%s2619 + $0x1cf] sm:$0xff]
    %v2650 = vld [vmem:[%s2619 + $0x1e7] sm:$0xff]
    %v2651 = vld [vmem:[%s2619 + $0x1ef] sm:$0xff]
    %v2652 = vmul.f32 %v2620, %v1118
    %v2653 = vmul.f32 %v2621, %v1118
    %v2654 = vmul.f32 %v2622, %v1118
    %v2655 = vmul.f32 %v2623, %v1118
    %v2656 = vmul.f32 %v2624, %v1118
    %v2657 = vmul.f32 %v2625, %v1118
    %v2658 = vmul.f32 %v2626, %v1118
    %v2659 = vmul.f32 %v2627, %v1118
    %v2660 = vmul.f32 %v2628, %v1118
    %v2661 = vmul.f32 %v2629, %v1118
    %v2662 = vmul.f32 %v2630, %v1118
    %v2663 = vmul.f32 %v2631, %v1118
    %v2664 = vmul.f32 %v2632, %v1118
    %v2665 = vmul.f32 %v2633, %v1118
    %v2666 = vmul.f32 %v2634, %v1118
    %v2667 = vmul.f32 %v2635, %v1118
    %v2668 = vmul.f32 %v2636, %v1118
    %v2669 = vmul.f32 %v2637, %v1118
    %v2670 = vmul.f32 %v2638, %v1118
    %v2671 = vmul.f32 %v2639, %v1118
    %v2672 = vmul.f32 %v2640, %v1118
    %v2673 = vmul.f32 %v2641, %v1118
    %v2674 = vmul.f32 %v2642, %v1118
    %v2675 = vmul.f32 %v2643, %v1118
    %v2676 = vmul.f32 %v2644, %v1118
    %v2677 = vmul.f32 %v2645, %v1118
    %v2678 = vmul.f32 %v2646, %v1118
    %v2679 = vmul.f32 %v2647, %v1118
    %v2680 = vmul.f32 %v2648, %v1118
    %v2681 = vmul.f32 %v2649, %v1118
    %v2682 = vmul.f32 %v2650, %v1118
    %v2683 = vmul.f32 %v2651, %v1118
    %v2684 = vadd.f32 %v2587, %v2652
    %v2685 = vadd.f32 %v2588, %v2653
    %v2686 = vadd.f32 %v2589, %v2654
    %v2687 = vadd.f32 %v2590, %v2655
    %v2688 = vadd.f32 %v2591, %v2656
    %v2689 = vadd.f32 %v2592, %v2657
    %v2690 = vadd.f32 %v2593, %v2658
    %v2691 = vadd.f32 %v2594, %v2659
    %v2692 = vadd.f32 %v2595, %v2660
    %v2693 = vadd.f32 %v2596, %v2661
    %v2694 = vadd.f32 %v2597, %v2662
    %v2695 = vadd.f32 %v2598, %v2663
    %v2696 = vadd.f32 %v2599, %v2664
    %v2697 = vadd.f32 %v2600, %v2665
    %v2698 = vadd.f32 %v2601, %v2666
    %v2699 = vadd.f32 %v2602, %v2667
    %v2700 = vadd.f32 %v2603, %v2668
    %v2701 = vadd.f32 %v2604, %v2669
    %v2702 = vadd.f32 %v2605, %v2670
    %v2703 = vadd.f32 %v2606, %v2671
    %v2704 = vadd.f32 %v2607, %v2672
    %v2705 = vadd.f32 %v2608, %v2673
    %v2706 = vadd.f32 %v2609, %v2674
    %v2707 = vadd.f32 %v2610, %v2675
    %v2708 = vadd.f32 %v2611, %v2676
    %v2709 = vadd.f32 %v2612, %v2677
    %v2710 = vadd.f32 %v2613, %v2678
    %v2711 = vadd.f32 %v2614, %v2679
    %v2712 = vadd.f32 %v2615, %v2680
    %v2713 = vadd.f32 %v2616, %v2681
    %v2714 = vadd.f32 %v2617, %v2682
    %v2715 = vadd.f32 %v2618, %v2683
    %v2716 = vld [vmem:[%s2619 + $0x8] sm:$0xff]
    %v2717 = vld [vmem:[%s2619 + $0x10] sm:$0xff]
    %v2718 = vld [vmem:[%s2619 + $0x28] sm:$0xff]
    %v2719 = vld [vmem:[%s2619 + $0x30] sm:$0xff]
    %v2720 = vld [vmem:[%s2619 + $0x48] sm:$0xff]
    %v2721 = vld [vmem:[%s2619 + $0x50] sm:$0xff]
    %v2722 = vld [vmem:[%s2619 + $0x68] sm:$0xff]
    %v2723 = vld [vmem:[%s2619 + $0x70] sm:$0xff]
    %v2724 = vld [vmem:[%s2619 + $0x88] sm:$0xff]
    %v2725 = vld [vmem:[%s2619 + $0x90] sm:$0xff]
    %v2726 = vld [vmem:[%s2619 + $0xa8] sm:$0xff]
    %v2727 = vld [vmem:[%s2619 + $0xb0] sm:$0xff]
    %v2728 = vld [vmem:[%s2619 + $0xc8] sm:$0xff]
    %v2729 = vld [vmem:[%s2619 + $0xd0] sm:$0xff]
    %v2730 = vld [vmem:[%s2619 + $0xe8] sm:$0xff]
    %v2731 = vld [vmem:[%s2619 + $0xf0] sm:$0xff]
    %v2732 = vld [vmem:[%s2619 + $0x108] sm:$0xff]
    %v2733 = vld [vmem:[%s2619 + $0x110] sm:$0xff]
    %v2734 = vld [vmem:[%s2619 + $0x128] sm:$0xff]
    %v2735 = vld [vmem:[%s2619 + $0x130] sm:$0xff]
    %v2736 = vld [vmem:[%s2619 + $0x148] sm:$0xff]
    %v2737 = vld [vmem:[%s2619 + $0x150] sm:$0xff]
    %v2738 = vld [vmem:[%s2619 + $0x168] sm:$0xff]
    %v2739 = vld [vmem:[%s2619 + $0x170] sm:$0xff]
    %v2740 = vld [vmem:[%s2619 + $0x188] sm:$0xff]
    %v2741 = vld [vmem:[%s2619 + $0x190] sm:$0xff]
    %v2742 = vld [vmem:[%s2619 + $0x1a8] sm:$0xff]
    %v2743 = vld [vmem:[%s2619 + $0x1b0] sm:$0xff]
    %v2744 = vld [vmem:[%s2619 + $0x1c8] sm:$0xff]
    %v2745 = vld [vmem:[%s2619 + $0x1d0] sm:$0xff]
    %v2746 = vld [vmem:[%s2619 + $0x1e8] sm:$0xff]
    %v2747 = vld [vmem:[%s2619 + $0x1f0] sm:$0xff]
    %v2748 = vmul.f32 %v2716, %v1215
    %v2749 = vmul.f32 %v2717, %v1215
    %v2750 = vmul.f32 %v2718, %v1215
    %v2751 = vmul.f32 %v2719, %v1215
    %v2752 = vmul.f32 %v2720, %v1215
    %v2753 = vmul.f32 %v2721, %v1215
    %v2754 = vmul.f32 %v2722, %v1215
    %v2755 = vmul.f32 %v2723, %v1215
    %v2756 = vmul.f32 %v2724, %v1215
    %v2757 = vmul.f32 %v2725, %v1215
    %v2758 = vmul.f32 %v2726, %v1215
    %v2759 = vmul.f32 %v2727, %v1215
    %v2760 = vmul.f32 %v2728, %v1215
    %v2761 = vmul.f32 %v2729, %v1215
    %v2762 = vmul.f32 %v2730, %v1215
    %v2763 = vmul.f32 %v2731, %v1215
    %v2764 = vmul.f32 %v2732, %v1215
    %v2765 = vmul.f32 %v2733, %v1215
    %v2766 = vmul.f32 %v2734, %v1215
    %v2767 = vmul.f32 %v2735, %v1215
    %v2768 = vmul.f32 %v2736, %v1215
    %v2769 = vmul.f32 %v2737, %v1215
    %v2770 = vmul.f32 %v2738, %v1215
    %v2771 = vmul.f32 %v2739, %v1215
    %v2772 = vmul.f32 %v2740, %v1215
    %v2773 = vmul.f32 %v2741, %v1215
    %v2774 = vmul.f32 %v2742, %v1215
    %v2775 = vmul.f32 %v2743, %v1215
    %v2776 = vmul.f32 %v2744, %v1215
    %v2777 = vmul.f32 %v2745, %v1215
    %v2778 = vmul.f32 %v2746, %v1215
    %v2779 = vmul.f32 %v2747, %v1215
    %v2780 = vadd.f32 %v2684, %v2748
    %v2781 = vadd.f32 %v2685, %v2749
    %v2782 = vadd.f32 %v2686, %v2750
    %v2783 = vadd.f32 %v2687, %v2751
    %v2784 = vadd.f32 %v2688, %v2752
    %v2785 = vadd.f32 %v2689, %v2753
    %v2786 = vadd.f32 %v2690, %v2754
    %v2787 = vadd.f32 %v2691, %v2755
    %v2788 = vadd.f32 %v2692, %v2756
    %v2789 = vadd.f32 %v2693, %v2757
    %v2790 = vadd.f32 %v2694, %v2758
    %v2791 = vadd.f32 %v2695, %v2759
    %v2792 = vadd.f32 %v2696, %v2760
    %v2793 = vadd.f32 %v2697, %v2761
    %v2794 = vadd.f32 %v2698, %v2762
    %v2795 = vadd.f32 %v2699, %v2763
    %v2796 = vadd.f32 %v2700, %v2764
    %v2797 = vadd.f32 %v2701, %v2765
    %v2798 = vadd.f32 %v2702, %v2766
    %v2799 = vadd.f32 %v2703, %v2767
    %v2800 = vadd.f32 %v2704, %v2768
    %v2801 = vadd.f32 %v2705, %v2769
    %v2802 = vadd.f32 %v2706, %v2770
    %v2803 = vadd.f32 %v2707, %v2771
    %v2804 = vadd.f32 %v2708, %v2772
    %v2805 = vadd.f32 %v2709, %v2773
    %v2806 = vadd.f32 %v2710, %v2774
    %v2807 = vadd.f32 %v2711, %v2775
    %v2808 = vadd.f32 %v2712, %v2776
    %v2809 = vadd.f32 %v2713, %v2777
    %v2810 = vadd.f32 %v2714, %v2778
    %v2811 = vadd.f32 %v2715, %v2779
    %v2812 = vld [vmem:[%s2619 + $0x9] sm:$0xff]
    %v2813 = vld [vmem:[%s2619 + $0x11] sm:$0xff]
    %v2814 = vld [vmem:[%s2619 + $0x29] sm:$0xff]
    %v2815 = vld [vmem:[%s2619 + $0x31] sm:$0xff]
    %v2816 = vld [vmem:[%s2619 + $0x49] sm:$0xff]
    %v2817 = vld [vmem:[%s2619 + $0x51] sm:$0xff]
    %v2818 = vld [vmem:[%s2619 + $0x69] sm:$0xff]
    %v2819 = vld [vmem:[%s2619 + $0x71] sm:$0xff]
    %v2820 = vld [vmem:[%s2619 + $0x89] sm:$0xff]
    %v2821 = vld [vmem:[%s2619 + $0x91] sm:$0xff]
    %v2822 = vld [vmem:[%s2619 + $0xa9] sm:$0xff]
    %v2823 = vld [vmem:[%s2619 + $0xb1] sm:$0xff]
    %v2824 = vld [vmem:[%s2619 + $0xc9] sm:$0xff]
    %v2825 = vld [vmem:[%s2619 + $0xd1] sm:$0xff]
    %v2826 = vld [vmem:[%s2619 + $0xe9] sm:$0xff]
    %v2827 = vld [vmem:[%s2619 + $0xf1] sm:$0xff]
    %v2828 = vld [vmem:[%s2619 + $0x109] sm:$0xff]
    %v2829 = vld [vmem:[%s2619 + $0x111] sm:$0xff]
    %v2830 = vld [vmem:[%s2619 + $0x129] sm:$0xff]
    %v2831 = vld [vmem:[%s2619 + $0x131] sm:$0xff]
    %v2832 = vld [vmem:[%s2619 + $0x149] sm:$0xff]
    %v2833 = vld [vmem:[%s2619 + $0x151] sm:$0xff]
    %v2834 = vld [vmem:[%s2619 + $0x169] sm:$0xff]
    %v2835 = vld [vmem:[%s2619 + $0x171] sm:$0xff]
    %v2836 = vld [vmem:[%s2619 + $0x189] sm:$0xff]
    %v2837 = vld [vmem:[%s2619 + $0x191] sm:$0xff]
    %v2838 = vld [vmem:[%s2619 + $0x1a9] sm:$0xff]
    %v2839 = vld [vmem:[%s2619 + $0x1b1] sm:$0xff]
    %v2840 = vld [vmem:[%s2619 + $0x1c9] sm:$0xff]
    %v2841 = vld [vmem:[%s2619 + $0x1d1] sm:$0xff]
    %v2842 = vld [vmem:[%s2619 + $0x1e9] sm:$0xff]
    %v2843 = vld [vmem:[%s2619 + $0x1f1] sm:$0xff]
    %v2844 = vmul.f32 %v2812, %v1312
    %v2845 = vmul.f32 %v2813, %v1312
    %v2846 = vmul.f32 %v2814, %v1312
    %v2847 = vmul.f32 %v2815, %v1312
    %v2848 = vmul.f32 %v2816, %v1312
    %v2849 = vmul.f32 %v2817, %v1312
    %v2850 = vmul.f32 %v2818, %v1312
    %v2851 = vmul.f32 %v2819, %v1312
    %v2852 = vmul.f32 %v2820, %v1312
    %v2853 = vmul.f32 %v2821, %v1312
    %v2854 = vmul.f32 %v2822, %v1312
    %v2855 = vmul.f32 %v2823, %v1312
    %v2856 = vmul.f32 %v2824, %v1312
    %v2857 = vmul.f32 %v2825, %v1312
    %v2858 = vmul.f32 %v2826, %v1312
    %v2859 = vmul.f32 %v2827, %v1312
    %v2860 = vmul.f32 %v2828, %v1312
    %v2861 = vmul.f32 %v2829, %v1312
    %v2862 = vmul.f32 %v2830, %v1312
    %v2863 = vmul.f32 %v2831, %v1312
    %v2864 = vmul.f32 %v2832, %v1312
    %v2865 = vmul.f32 %v2833, %v1312
    %v2866 = vmul.f32 %v2834, %v1312
    %v2867 = vmul.f32 %v2835, %v1312
    %v2868 = vmul.f32 %v2836, %v1312
    %v2869 = vmul.f32 %v2837, %v1312
    %v2870 = vmul.f32 %v2838, %v1312
    %v2871 = vmul.f32 %v2839, %v1312
    %v2872 = vmul.f32 %v2840, %v1312
    %v2873 = vmul.f32 %v2841, %v1312
    %v2874 = vmul.f32 %v2842, %v1312
    %v2875 = vmul.f32 %v2843, %v1312
    %v2876 = vadd.f32 %v2780, %v2844
    %v2877 = vadd.f32 %v2781, %v2845
    %v2878 = vadd.f32 %v2782, %v2846
    %v2879 = vadd.f32 %v2783, %v2847
    %v2880 = vadd.f32 %v2784, %v2848
    %v2881 = vadd.f32 %v2785, %v2849
    %v2882 = vadd.f32 %v2786, %v2850
    %v2883 = vadd.f32 %v2787, %v2851
    %v2884 = vadd.f32 %v2788, %v2852
    %v2885 = vadd.f32 %v2789, %v2853
    %v2886 = vadd.f32 %v2790, %v2854
    %v2887 = vadd.f32 %v2791, %v2855
    %v2888 = vadd.f32 %v2792, %v2856
    %v2889 = vadd.f32 %v2793, %v2857
    %v2890 = vadd.f32 %v2794, %v2858
    %v2891 = vadd.f32 %v2795, %v2859
    %v2892 = vadd.f32 %v2796, %v2860
    %v2893 = vadd.f32 %v2797, %v2861
    %v2894 = vadd.f32 %v2798, %v2862
    %v2895 = vadd.f32 %v2799, %v2863
    %v2896 = vadd.f32 %v2800, %v2864
    %v2897 = vadd.f32 %v2801, %v2865
    %v2898 = vadd.f32 %v2802, %v2866
    %v2899 = vadd.f32 %v2803, %v2867
    %v2900 = vadd.f32 %v2804, %v2868
    %v2901 = vadd.f32 %v2805, %v2869
    %v2902 = vadd.f32 %v2806, %v2870
    %v2903 = vadd.f32 %v2807, %v2871
    %v2904 = vadd.f32 %v2808, %v2872
    %v2905 = vadd.f32 %v2809, %v2873
    %v2906 = vadd.f32 %v2810, %v2874
    %v2907 = vadd.f32 %v2811, %v2875
    %v2908 = vadd.f32 %v2876, %v1378
    %v2909 = vadd.f32 %v2877, %v1378
    %v2910 = vadd.f32 %v2878, %v1378
    %v2911 = vadd.f32 %v2879, %v1378
    %v2912 = vadd.f32 %v2880, %v1378
    %v2913 = vadd.f32 %v2881, %v1378
    %v2914 = vadd.f32 %v2882, %v1378
    %v2915 = vadd.f32 %v2883, %v1378
    %v2916 = vadd.f32 %v2884, %v1378
    %v2917 = vadd.f32 %v2885, %v1378
    %v2918 = vadd.f32 %v2886, %v1378
    %v2919 = vadd.f32 %v2887, %v1378
    %v2920 = vadd.f32 %v2888, %v1378
    %v2921 = vadd.f32 %v2889, %v1378
    %v2922 = vadd.f32 %v2890, %v1378
    %v2923 = vadd.f32 %v2891, %v1378
    %v2924 = vadd.f32 %v2892, %v1378
    %v2925 = vadd.f32 %v2893, %v1378
    %v2926 = vadd.f32 %v2894, %v1378
    %v2927 = vadd.f32 %v2895, %v1378
    %v2928 = vadd.f32 %v2896, %v1378
    %v2929 = vadd.f32 %v2897, %v1378
    %v2930 = vadd.f32 %v2898, %v1378
    %v2931 = vadd.f32 %v2899, %v1378
    %v2932 = vadd.f32 %v2900, %v1378
    %v2933 = vadd.f32 %v2901, %v1378
    %v2934 = vadd.f32 %v2902, %v1378
    %v2935 = vadd.f32 %v2903, %v1378
    %v2936 = vadd.f32 %v2904, %v1378
    %v2937 = vadd.f32 %v2905, %v1378
    %v2938 = vadd.f32 %v2906, %v1378
    %v2939 = vadd.f32 %v2907, %v1378
    %v2940 = vmax.f32 %v2908, 0.0
    %v2941 = vmax.f32 %v2909, 0.0
    %v2942 = vmax.f32 %v2910, 0.0
    %v2943 = vmax.f32 %v2911, 0.0
    %v2944 = vmax.f32 %v2912, 0.0
    %v2945 = vmax.f32 %v2913, 0.0
    %v2946 = vmax.f32 %v2914, 0.0
    %v2947 = vmax.f32 %v2915, 0.0
    %v2948 = vmax.f32 %v2916, 0.0
    %v2949 = vmax.f32 %v2917, 0.0
    %v2950 = vmax.f32 %v2918, 0.0
    %v2951 = vmax.f32 %v2919, 0.0
    %v2952 = vmax.f32 %v2920, 0.0
    %v2953 = vmax.f32 %v2921, 0.0
    %v2954 = vmax.f32 %v2922, 0.0
    %v2955 = vmax.f32 %v2923, 0.0
    %v2956 = vmax.f32 %v2924, 0.0
    %v2957 = vmax.f32 %v2925, 0.0
    %v2958 = vmax.f32 %v2926, 0.0
    %v2959 = vmax.f32 %v2927, 0.0
    %v2960 = vmax.f32 %v2928, 0.0
    %v2961 = vmax.f32 %v2929, 0.0
    %v2962 = vmax.f32 %v2930, 0.0
    %v2963 = vmax.f32 %v2931, 0.0
    %v2964 = vmax.f32 %v2932, 0.0
    %v2965 = vmax.f32 %v2933, 0.0
    %v2966 = vmax.f32 %v2934, 0.0
    %v2967 = vmax.f32 %v2935, 0.0
    %v2968 = vmax.f32 %v2936, 0.0
    %v2969 = vmax.f32 %v2937, 0.0
    %v2970 = vmax.f32 %v2938, 0.0
    %v2971 = vmax.f32 %v2939, 0.0
    %v2972 = vmin.f32 %v2940, 6.0
    %v2973 = vmin.f32 %v2941, 6.0
    %v2974 = vmin.f32 %v2942, 6.0
    %v2975 = vmin.f32 %v2943, 6.0
    %v2976 = vmin.f32 %v2944, 6.0
    %v2977 = vmin.f32 %v2945, 6.0
    %v2978 = vmin.f32 %v2946, 6.0
    %v2979 = vmin.f32 %v2947, 6.0
    %v2980 = vmin.f32 %v2948, 6.0
    %v2981 = vmin.f32 %v2949, 6.0
    %v2982 = vmin.f32 %v2950, 6.0
    %v2983 = vmin.f32 %v2951, 6.0
    %v2984 = vmin.f32 %v2952, 6.0
    %v2985 = vmin.f32 %v2953, 6.0
    %v2986 = vmin.f32 %v2954, 6.0
    %v2987 = vmin.f32 %v2955, 6.0
    %v2988 = vmin.f32 %v2956, 6.0
    %v2989 = vmin.f32 %v2957, 6.0
    %v2990 = vmin.f32 %v2958, 6.0
    %v2991 = vmin.f32 %v2959, 6.0
    %v2992 = vmin.f32 %v2960, 6.0
    %v2993 = vmin.f32 %v2961, 6.0
    %v2994 = vmin.f32 %v2962, 6.0
    %v2995 = vmin.f32 %v2963, 6.0
    %v2996 = vmin.f32 %v2964, 6.0
    %v2997 = vmin.f32 %v2965, 6.0
    %v2998 = vmin.f32 %v2966, 6.0
    %v2999 = vmin.f32 %v2967, 6.0
    %v3000 = vmin.f32 %v2968, 6.0
    %v3001 = vmin.f32 %v2969, 6.0
    %v3002 = vmin.f32 %v2970, 6.0
    %v3003 = vmin.f32 %v2971, 6.0
    %v3005 = vsel %vm423, %v2972, 0
    %v3008 = vsel %vm423, %v2973, 0
    %v3011 = vsel %vm423, %v2974, 0
    %v3014 = vsel %vm423, %v2975, 0
    %v3017 = vsel %vm423, %v2976, 0
    %v3020 = vsel %vm423, %v2977, 0
    %v3023 = vsel %vm423, %v2978, 0
    %v3026 = vsel %vm423, %v2979, 0
    %v3029 = vsel %vm423, %v2980, 0
    %v3032 = vsel %vm423, %v2981, 0
    %v3035 = vsel %vm423, %v2982, 0
    %v3038 = vsel %vm423, %v2983, 0
    %v3041 = vsel %vm423, %v2984, 0
    %v3044 = vsel %vm423, %v2985, 0
    %v3047 = vsel %vm423, %v2986, 0
    %v3050 = vsel %vm423, %v2987, 0
    %v3053 = vsel %vm423, %v2988, 0
    %v3056 = vsel %vm423, %v2989, 0
    %v3059 = vsel %vm423, %v2990, 0
    %v3062 = vsel %vm423, %v2991, 0
    %v3065 = vsel %vm423, %v2992, 0
    %v3068 = vsel %vm423, %v2993, 0
    %v3071 = vsel %vm423, %v2994, 0
    %v3074 = vsel %vm423, %v2995, 0
    %v3077 = vsel %vm423, %v2996, 0
    %v3080 = vsel %vm423, %v2997, 0
    %v3083 = vsel %vm423, %v2998, 0
    %v3086 = vsel %vm423, %v2999, 0
    %v3089 = vsel %vm423, %v3000, 0
    %v3092 = vsel %vm423, %v3001, 0
    %v3095 = vsel %vm423, %v3002, 0
    %v3098 = vsel %vm423, %v3003, 0
    %3100 = vmatpush.xpose.msra.mxu0 %v3050
    %3101 = vmatpush.xpose.msra.mxu0 %v3047
    %3102 = vmatpush.xpose.msra.mxu0 %v3044
    %3103 = vmatpush.xpose.msra.mxu0 %v3041
    %3104 = vmatpush.xpose.msra.mxu0 %v3038
    %3105 = vmatpush.xpose.msra.mxu0 %v3035
    %3106 = vmatpush.xpose.msra.mxu0 %v3032
    %3107 = vmatpush.xpose.msra.mxu0 %v3029
    %3108 = vmatpush.xpose.msra.mxu0 %v3026
    %3109 = vmatpush.xpose.msra.mxu0 %v3023
    %3110 = vmatpush.xpose.msra.mxu0 %v3020
    %3111 = vmatpush.xpose.msra.mxu0 %v3017
    %3112 = vmatpush.xpose.msra.mxu0 %v3014
    %3113 = vmatpush.xpose.msra.mxu0 %v3011
    %3114 = vmatpush.xpose.msra.mxu0 %v3008
    %3115 = vmatpush.xpose.msra.mxu0 %v3005
    %3116 = vmatmul.f32.gmra.mxu0 %v1482
    %v3117 = vpop.f32.mrf.mxu0
    %v3118 = vadd.f32 %v1479, %v3117
    %3119 = vdwg.mxu0
    %3120 = vmatpush.xpose.msra.mxu0 %v3098
    %3121 = vmatpush.xpose.msra.mxu0 %v3095
    %3122 = vmatpush.xpose.msra.mxu0 %v3092
    %3123 = vmatpush.xpose.msra.mxu0 %v3089
    %3124 = vmatpush.xpose.msra.mxu0 %v3086
    %3125 = vmatpush.xpose.msra.mxu0 %v3083
    %3126 = vmatpush.xpose.msra.mxu0 %v3080
    %3127 = vmatpush.xpose.msra.mxu0 %v3077
    %3128 = vmatpush.xpose.msra.mxu0 %v3074
    %3129 = vmatpush.xpose.msra.mxu0 %v3071
    %3130 = vmatpush.xpose.msra.mxu0 %v3068
    %3131 = vmatpush.xpose.msra.mxu0 %v3065
    %3132 = vmatpush.xpose.msra.mxu0 %v3062
    %3133 = vmatpush.xpose.msra.mxu0 %v3059
    %3134 = vmatpush.xpose.msra.mxu0 %v3056
    %3135 = vmatpush.xpose.msra.mxu0 %v3053
    %3136 = vmatmul.f32.gmra.mxu0 %v1482
    %v3137 = vpop.f32.mrf.mxu0
    %v3138 = vadd.f32 %v1479, %v3137
    %3139 = vdwg.mxu0
    %v3140 = vadd.f32 %v3118, %v1625
    %v3141 = vadd.f32 %v3138, %v1626
    %s3142 = scalar_lea.vmem [#allocation9], 16
    %3143 = vst [vmem:[%s3142] sm:$0xff] %v3140
    %3144 = vst [vmem:[%s3142 + $0x8] sm:$0xff] %v3141
    // Predicated region
    $region42: #{tpu_custom_call.1} parent=1 // pred_check
      _
    $region43: #{tpu_custom_call.1} parent=1 // pred_check_branch
      %3146 = sbr.rel (0) target = $region45
    $region44: #{tpu_custom_call.1} parent=1 // pred_region
      %3148 = vsyncadd [#allocation5], 0
      %s3149 = sshll.u32 [#allocation9], 4
      %s3150 = int_to_ptr.vmem [resolvable:$true] %s3149
      %s3151 = sshll.u32 %s7, 4
      %s3152 = int_to_ptr.hbm [resolvable:$true] %s3151
      %3157 = dma.vmem_to_hbm [thread:$0]  %s3150, 512, %s3152, [#allocation5], 256, 256, 16
    $region45: #{tpu_custom_call.1} parent=1 // pred_fallthru
      _
    // Predicated region
    $region46: #{tpu_custom_call.1} parent=1 // pred_check
      _
    $region47: #{tpu_custom_call.1} parent=1 // pred_check_branch
      %3159 = sbr.rel (0) target = $region49
    $region48: #{tpu_custom_call.1} parent=1 // pred_region
      %3161 = dma.done [#allocation5], 512
    $region49: #{tpu_custom_call.1} parent=1 // pred_fallthru
      _
    %3162 = vsyncpa [#allocation4], 1
    %3163 = vsyncpa [#allocation7], 1
    %3164 = vsyncpa [#allocation5], 1

</llo_original>
